<compile_context>
chip_gen: v6e
topology: v6e:2x2x1
jax: 0.10.0
libtpu: 0.0.40
codegen_flags: <defaults>
</compile_context>

<pallas_src>
import functools

import numpy as np
import jax
import jax.numpy as jnp
from jax import lax
from jax.experimental import pallas as pl
from jax.experimental.pallas import tpu as pltpu

THRESHOLD = 1.0
BN_EPS = 1e-5


# --------------------------- in-kernel helpers ------------------------------

def _lif(y, mem_prev, beta):
    """snn.Leaky (init_hidden=True, reset-by-subtraction, threshold=1.0)."""
    reset = (mem_prev > THRESHOLD).astype(jnp.float32)
    new_mem = beta * mem_prev + y - reset * THRESHOLD
    spk = (new_mem > THRESHOLD).astype(jnp.float32)
    return spk, new_mem


# ------------------------------ fused kernel --------------------------------

def _snn_kernel(y1_ref, bnw2_ref, seg_ref, exp_ref,
                w2_ref, b2_ref, g2_ref, bb2_ref,
                w3_ref, b3_ref, g3_ref, bb3_ref,
                wf1_ref, bf1_ref, wf2_ref, bf2_ref, wf3_ref, bf3_ref,
                out_ref,
                mem1, mem2, mem3, mem4, mem5, mem6,
                *, num_steps, batch, kwta_k, taps3, n_pos3, n_bn2, n_bn3):
    # init_hidden=True: membranes start at zero (single kernel invocation, no grid)
    mem1[...] = jnp.zeros_like(mem1)
    mem2[...] = jnp.zeros_like(mem2)
    mem3[...] = jnp.zeros_like(mem3)
    mem4[...] = jnp.zeros_like(mem4)
    mem5[...] = jnp.zeros_like(mem5)
    mem6[...] = jnp.zeros_like(mem6)

    m3rows = n_pos3 * batch          # rows per conv3 tap block == conv3 output rows

    def _step(t, _prev_out):
        # recurrent combinations only apply for step > 0
        rec = (t > 0).astype(jnp.float32)

        # ----- layer 1: LIF(0.5) + k-WTA, in conv2-patch layout (lane dense) -----
        y1 = y1_ref[t]                                               # (R2, 400) f32
        spk1, new_mem1 = _lif(y1, mem1[...], 0.5)
        mem1[...] = new_mem1
        # Per-pixel spike count: each 16-lane segment of a row is one conv1 pixel's
        # channels.  For binary spikes, k-WTA == zero the pixel iff it has >= k
        # ones (k-th largest is 1 -> relu(x-1)=0), else pass through unchanged.
        # Two exact 0/1 matmuls replace the cross-lane segmented reduce.
        counts = jnp.dot(spk1.astype(jnp.bfloat16), seg_ref[...],
                         preferred_element_type=jnp.float32)         # (R2, 25)
        keep = (counts < kwta_k).astype(jnp.bfloat16)
        keep_full = jnp.dot(keep, exp_ref[...],
                            preferred_element_type=jnp.float32)      # (R2, 400)
        spk1 = spk1 * keep_full                                      # still exactly 0/1

        # ----- conv2 (single K=400 matmul) + BN2 + LIF(0.6) -----
        # combined_spike1 = spike1 + 0.9*spike1 (step>0) folded as a scalar factor
        # on the linear conv output so the matmul operand stays exactly binary.
        y2 = jnp.dot(spk1.astype(jnp.bfloat16), w2_ref[...],
                     preferred_element_type=jnp.float32)             # (R2, 32)
        y2 = y2 * (1.0 + 0.9 * rec) + b2_ref[...]
        # Training-mode batch stats over the 50 *distinct* conv2 output pixels:
        # rows are duplicated, so weight each row by 1/multiplicity (exact).
        wgt = bnw2_ref[...]                                          # (R2, 1)
        mu2 = jnp.sum(y2 * wgt, axis=0, keepdims=True) * (1.0 / n_bn2)
        d2 = y2 - mu2
        var2 = jnp.sum(d2 * d2 * wgt, axis=0, keepdims=True) * (1.0 / n_bn2)
        y2 = d2 * lax.rsqrt(var2 + BN_EPS) * g2_ref[...] + bb2_ref[...]
        spk2, new_mem2 = _lif(y2, mem2[...], 0.6)
        mem2[...] = new_mem2

        # ----- conv3 (single K=288 matmul) + BN3 + LIF(0.7) -----
        # spk2 rows are ordered (tap3, pos3, batch): the patch block is taps3
        # contiguous, tile-aligned row slices concatenated along lanes.
        patch3 = jnp.concatenate(
            [spk2[tap * m3rows:(tap + 1) * m3rows, :] for tap in range(taps3)],
            axis=1)                                                  # (8, 288)
        y3 = jnp.dot(patch3.astype(jnp.bfloat16), w3_ref[...],
                     preferred_element_type=jnp.float32)             # (8, 32)
        y3 = y3 * (1.0 + 0.8 * rec) + b3_ref[...]
        mu3 = jnp.sum(y3, axis=0, keepdims=True) * (1.0 / n_bn3)
        d3 = y3 - mu3
        var3 = jnp.sum(d3 * d3, axis=0, keepdims=True) * (1.0 / n_bn3)
        y3 = d3 * lax.rsqrt(var3 + BN_EPS) * g3_ref[...] + bb3_ref[...]
        spk3, new_mem3 = _lif(y3, mem3[...], 0.7)
        mem3[...] = new_mem3

        # ----- Flatten + fc1 (single K=128 matmul) + LIF(0.7) -----
        # The NCHW flatten permutation is absorbed into wf1's row order; here we
        # only concatenate each spatial position's batch rows along lanes.
        fc1_in = jnp.concatenate(
            [spk3[p * batch:(p + 1) * batch, :] for p in range(n_pos3)],
            axis=1)                                                  # (B, 128)
        y4 = jnp.dot(fc1_in.astype(jnp.bfloat16), wf1_ref[...],
                     preferred_element_type=jnp.float32)
        y4 = y4 * (1.0 + 0.7 * rec) + bf1_ref[...]
        spk4, new_mem4 = _lif(y4, mem4[...], 0.7)
        mem4[...] = new_mem4

        # ----- fc2 + LIF(0.75) -----
        y5 = jnp.dot(spk4.astype(jnp.bfloat16), wf2_ref[...],
                     preferred_element_type=jnp.float32)
        y5 = y5 * (1.0 + 0.6 * rec) + bf2_ref[...]
        spk5, new_mem5 = _lif(y5, mem5[...], 0.75)
        mem5[...] = new_mem5
        # NB: the reference feeds the *un-combined* spike5 into fc3 and the
        # combined value is never used afterwards, so it is not computed.

        # ----- fc3 + LIF out(0.9, output=True) -----
        y6 = jnp.dot(spk5.astype(jnp.bfloat16), wf3_ref[...],
                     preferred_element_type=jnp.float32) + bf3_ref[...]
        spk6, new_mem6 = _lif(y6, mem6[...], 0.9)
        mem6[...] = new_mem6
        return spk6

    spk_out = lax.fori_loop(0, num_steps, _step,
                            jnp.zeros(out_ref.shape, out_ref.dtype))
    out_ref[...] = spk_out        # single store of the last step's output spikes


# ------------------------------ host-side glue ------------------------------

def _im2col(x_nhwc, k, stride):
    """Valid kxk patches.  Returns (B, Ho, Wo, k*k*C) with tap-major columns."""
    B, H, W, C = x_nhwc.shape
    Ho = (H - k) // stride + 1
    Wo = (W - k) // stride + 1
    cols = []
    for di in range(k):
        for dj in range(k):
            cols.append(x_nhwc[:, di: di + (Ho - 1) * stride + 1: stride,
                                  dj: dj + (Wo - 1) * stride + 1: stride, :])
    p = jnp.stack(cols, axis=3)                      # (B, Ho, Wo, k*k, C)
    return p.reshape(B, Ho, Wo, k * k * C), (Ho, Wo)


def _build_conv2_patch_plan(B, h1, h2, h3, k2, s2, k3, s3):
    """Row plan for the duplicated conv2-patch layout.

    Rows are ordered (tap3, pos3, batch) so that conv3's patch block can later be
    assembled from contiguous, tile-aligned row slices.  Returns gather indices
    into the (B, h1, h1, C1) conv1 output, the 1/multiplicity weights that make
    BN2 statistics exact over the B*h2*h2 distinct conv2 output pixels, and the
    number of duplicated rows.
    """
    rows = []
    for di3 in range(k3):
        for dj3 in range(k3):
            for oh3 in range(h3):
                for ow3 in range(h3):
                    for b in range(B):
                        rows.append((b, s3 * oh3 + di3, s3 * ow3 + dj3))
    n_rows = len(rows)
    taps2 = k2 * k2
    idx_b = np.array([r[0] for r in rows], np.int32)
    idx_h = np.zeros((n_rows, taps2), np.int32)
    idx_w = np.zeros((n_rows, taps2), np.int32)
    for r, (b, y2, x2) in enumerate(rows):
        for di2 in range(k2):
            for dj2 in range(k2):
                tap = di2 * k2 + dj2
                idx_h[r, tap] = s2 * y2 + di2
                idx_w[r, tap] = s2 * x2 + dj2
    assert idx_h.max() < h1 and idx_w.max() < h1
    mult = np.zeros((B, h2, h2), np.int64)
    for (b, y2, x2) in rows:
        mult[b, y2, x2] += 1
    # every distinct conv2 output pixel must appear, otherwise the weighted BN2
    # statistics would not be exact
    assert (mult > 0).all()
    bn2_w = np.array([1.0 / mult[b, y2, x2] for (b, y2, x2) in rows],
                     np.float32).reshape(n_rows, 1)
    return idx_b, idx_h, idx_w, bn2_w, n_rows


def _kwta_mats(taps2, c1, dtype):
    """0/1 segment-sum (taps2*c1, taps2) and expand (taps2, taps2*c1) matrices."""
    seg = np.zeros((taps2 * c1, taps2), np.float32)
    exp = np.zeros((taps2, taps2 * c1), np.float32)
    for tap in range(taps2):
        seg[tap * c1:(tap + 1) * c1, tap] = 1.0
        exp[tap, tap * c1:(tap + 1) * c1] = 1.0
    return jnp.asarray(seg, dtype), jnp.asarray(exp, dtype)


def init_params(key, num_classes, n_pos3):
    ks = jax.random.split(key, 12)

    def w(k_, shape, scale):
        return scale * jax.random.normal(k_, shape, jnp.float32)

    p = {}
    # conv1 weight (25, 16): row = tap (single input channel); torch w[cout,0,di,dj]
    p['w1'] = w(ks[0], (25, 16), 0.2)
    p['b1'] = w(ks[1], (1, 16), 0.1)
    p['g1'] = jnp.ones((1, 16), jnp.float32); p['bb1'] = jnp.zeros((1, 16), jnp.float32)
    # conv2 weight tap-stacked (400, 32): row = tap2*16 + cin  == torch w[cout,cin,di,dj]
    p['w2'] = w(ks[2], (400, 32), 0.05).astype(jnp.bfloat16)
    p['b2'] = w(ks[3], (1, 32), 0.1)
    p['g2'] = jnp.ones((1, 32), jnp.float32); p['bb2'] = jnp.zeros((1, 32), jnp.float32)
    # conv3 weight tap-stacked (288, 32): row = tap3*32 + cin
    p['w3'] = w(ks[4], (288, 32), 0.05).astype(jnp.bfloat16)
    p['b3'] = w(ks[5], (1, 32), 0.1)
    p['g3'] = jnp.ones((1, 32), jnp.float32); p['bb3'] = jnp.zeros((1, 32), jnp.float32)
    # fc1: torch NCHW-flatten row order (c*n_pos3 + p) pre-permuted at init time to
    # the kernel's NHWC-flatten order (p*32 + c) -> no runtime transpose.
    wf1 = w(ks[6], (32 * n_pos3, 256), 0.1)
    p['wf1'] = jnp.transpose(wf1.reshape(32, n_pos3, 256), (1, 0, 2)).reshape(
        32 * n_pos3, 256).astype(jnp.bfloat16)
    p['bf1'] = w(ks[7], (1, 256), 0.1)
    p['wf2'] = w(ks[8], (256, 192), 0.1).astype(jnp.bfloat16)
    p['bf2'] = w(ks[9], (1, 192), 0.1)
    p['wf3'] = w(ks[10], (192, num_classes), 0.1).astype(jnp.bfloat16)
    p['bf3'] = w(ks[11], (1, num_classes), 0.1)
    return p


def forward(x, params, seg_mat, exp_mat, bn2_w, idx_b, idx_h, idx_w):
    """x: (num_steps, B, 1, H, W) -- PyTorch NCHW per step.  Returns the final
    step's spike_out (B, num_classes)."""
    T, B, _, H, W = x.shape
    C1 = params['w1'].shape[1]                    # 16
    C2 = params['w2'].shape[1]                    # 32
    C3 = params['w3'].shape[1]                    # 32
    num_classes = params['wf3'].shape[1]
    taps2 = params['w2'].shape[0] // C1           # 25
    taps3 = params['w3'].shape[0] // C2           # 9
    n_pos3 = params['wf1'].shape[0] // C3         # 4

    h1 = (H - 5) // 2 + 1
    h2 = (h1 - 5) // 2 + 1
    n_bn2 = B * h2 * h2                           # 50 distinct conv2 output pixels
    n_bn3 = B * n_pos3                            # 8 conv3 output pixels
    R2 = idx_b.shape[0]                           # 72 duplicated conv2-patch rows
    assert R2 == taps3 * n_pos3 * B

    # ---- hoisted conv1 + bias + bn1 (training-mode batch stats) for all steps ----
    x_nhwc = jnp.transpose(x, (0, 1, 3, 4, 2)).reshape(T * B, H, W, 1)
    p1, (hh, ww) = _im2col(x_nhwc, 5, 2)          # (T*B, h1, h1, 25)
    y1 = jnp.dot(p1.reshape(-1, taps2), params['w1']) + params['b1']
    y1 = y1.reshape(T, B * hh * ww, C1)
    mu1 = jnp.mean(y1, axis=1, keepdims=True)
    var1 = jnp.mean(jnp.square(y1 - mu1), axis=1, keepdims=True)   # biased batch var
    y1 = (y1 - mu1) * lax.rsqrt(var1 + BN_EPS) * params['g1'] + params['bb1']
    y1 = y1.reshape(T, B, hh, ww, C1)

    # ---- pre-gather into conv2's duplicated im2col patch layout (T, R2, 400) ----
    # Kept in f32 so the in-kernel LIF1 membrane / threshold path has full precision.
    y1_patches = y1[:, idx_b[:, None], idx_h, idx_w, :].reshape(T, R2, taps2 * C1)

    kernel = functools.partial(
        _snn_kernel,
        num_steps=T, batch=B,
        kwta_k=float(int(0.6 * C1)),              # k = int(sparsity_level * C) = 9
        taps3=taps3, n_pos3=n_pos3, n_bn2=n_bn2, n_bn3=n_bn3)

    # No grid: one kernel invocation, every input fully VMEM-resident, the time
    # loop runs in-kernel; membranes persist in VMEM scratch.
    return pl.pallas_call(
        kernel,
        out_shape=jax.ShapeDtypeStruct((B, num_classes), jnp.float32),
        scratch_shapes=[
            pltpu.VMEM((R2, taps2 * C1), jnp.float32),   # mem1 (conv2-patch layout)
            pltpu.VMEM((R2, C2), jnp.float32),           # mem2 (duplicated rows)
            pltpu.VMEM((n_bn3, C3), jnp.float32),        # mem3
            pltpu.VMEM((B, 256), jnp.float32),           # mem4
            pltpu.VMEM((B, 192), jnp.float32),           # mem5
            pltpu.VMEM((B, num_classes), jnp.float32),   # mem6
        ],
    )(y1_patches, bn2_w, seg_mat, exp_mat,
      params['w2'], params['b2'], params['g2'], params['bb2'],
      params['w3'], params['b3'], params['g3'], params['bb3'],
      params['wf1'], params['bf1'], params['wf2'], params['bf2'],
      params['wf3'], params['bf3'])


# ---------------------------------- main -------------------------------------

if __name__ == "__main__":
    num_steps = 4
    B, H, W = 2, 29, 29
    num_classes = 10

    # spatial chain: 29 -(5,s2)-> 13 -(5,s2)-> 5 -(3,s2)-> 2
    h1 = (H - 5) // 2 + 1
    h2 = (h1 - 5) // 2 + 1
    h3 = (h2 - 3) // 2 + 1
    n_pos3 = h3 * h3

    key = jax.random.PRNGKey(0)
    k_in, k_par = jax.random.split(key)
    x = jax.random.normal(k_in, (num_steps, B, 1, H, W), jnp.float32)
    params = init_params(k_par, num_classes, n_pos3)

    idx_b, idx_h, idx_w, bn2_w, _ = _build_conv2_patch_plan(
        B, h1, h2, h3, k2=5, s2=2, k3=3, s3=2)
    seg_mat, exp_mat = _kwta_mats(25, 16, jnp.bfloat16)

    # TODO(synk): the PyTorch reference never defines combined_spike1 at step 0
    # (NameError); as before we intentionally feed the un-combined spike1 there.
    fwd = jax.jit(forward)
    out = fwd(x, params, seg_mat, exp_mat,
              jnp.asarray(bn2_w), jnp.asarray(idx_b),
              jnp.asarray(idx_h), jnp.asarray(idx_w))
    out = jax.block_until_ready(out)

    assert out.shape == (B, num_classes)
    assert bool(jnp.all((out == 0.0) | (out == 1.0)))     # spikes are binary
    print("KERNEL_OK")
</pallas_src>

<mosaic_0001>
module attributes {stable_mosaic.version = 11 : i64} {
  func.func @_snn_kernel(%arg0: memref<4x72x400xf32, #tpu.memory_space<vmem>>, %arg1: memref<72x1xf32, #tpu.memory_space<vmem>>, %arg2: memref<400x25xbf16, #tpu.memory_space<vmem>>, %arg3: memref<25x400xbf16, #tpu.memory_space<vmem>>, %arg4: memref<400x32xbf16, #tpu.memory_space<vmem>>, %arg5: memref<1x32xf32, #tpu.memory_space<vmem>>, %arg6: memref<1x32xf32, #tpu.memory_space<vmem>>, %arg7: memref<1x32xf32, #tpu.memory_space<vmem>>, %arg8: memref<288x32xbf16, #tpu.memory_space<vmem>>, %arg9: memref<1x32xf32, #tpu.memory_space<vmem>>, %arg10: memref<1x32xf32, #tpu.memory_space<vmem>>, %arg11: memref<1x32xf32, #tpu.memory_space<vmem>>, %arg12: memref<128x256xbf16, #tpu.memory_space<vmem>>, %arg13: memref<1x256xf32, #tpu.memory_space<vmem>>, %arg14: memref<256x192xbf16, #tpu.memory_space<vmem>>, %arg15: memref<1x192xf32, #tpu.memory_space<vmem>>, %arg16: memref<192x10xbf16, #tpu.memory_space<vmem>>, %arg17: memref<1x10xf32, #tpu.memory_space<vmem>>, %arg18: memref<2x10xf32, #tpu.memory_space<vmem>>, %arg19: memref<72x400xf32, #tpu.memory_space<vmem>>, %arg20: memref<72x32xf32, #tpu.memory_space<vmem>>, %arg21: memref<8x32xf32, #tpu.memory_space<vmem>>, %arg22: memref<2x256xf32, #tpu.memory_space<vmem>>, %arg23: memref<2x192xf32, #tpu.memory_space<vmem>>, %arg24: memref<2x10xf32, #tpu.memory_space<vmem>>) attributes {dimension_semantics = [], scalar_prefetch = 0 : i64, scratch_operands = 6 : i64, tpu.core_type = #tpu.core_type<tc>} {
    %cst = arith.constant 0.000000e+00 : f32
    %0 = vector.broadcast %cst : f32 to vector<72x400xf32>
    %c0 = arith.constant 0 : index
    %c0_0 = arith.constant 0 : index
    %1 = vector.load %arg19[%c0, %c0_0] : memref<72x400xf32, #tpu.memory_space<vmem>>, vector<72x400xf32>
    tpu.vector_store %arg19[%c0, %c0_0], %0 {strides = array<i32>} : memref<72x400xf32, #tpu.memory_space<vmem>>, vector<72x400xf32>,
    %cst_1 = arith.constant 0.000000e+00 : f32
    %2 = vector.broadcast %cst_1 : f32 to vector<72x32xf32>
    %c0_2 = arith.constant 0 : index
    %c0_3 = arith.constant 0 : index
    %3 = vector.load %arg20[%c0_2, %c0_3] : memref<72x32xf32, #tpu.memory_space<vmem>>, vector<72x32xf32>
    tpu.vector_store %arg20[%c0_2, %c0_3], %2 {strides = array<i32>} : memref<72x32xf32, #tpu.memory_space<vmem>>, vector<72x32xf32>,
    %cst_4 = arith.constant 0.000000e+00 : f32
    %4 = vector.broadcast %cst_4 : f32 to vector<8x32xf32>
    %c0_5 = arith.constant 0 : index
    %c0_6 = arith.constant 0 : index
    %5 = vector.load %arg21[%c0_5, %c0_6] : memref<8x32xf32, #tpu.memory_space<vmem>>, vector<8x32xf32>
    tpu.vector_store %arg21[%c0_5, %c0_6], %4 {strides = array<i32>} : memref<8x32xf32, #tpu.memory_space<vmem>>, vector<8x32xf32>,
    %cst_7 = arith.constant 0.000000e+00 : f32
    %6 = vector.broadcast %cst_7 : f32 to vector<2x256xf32>
    %c0_8 = arith.constant 0 : index
    %c0_9 = arith.constant 0 : index
    %7 = vector.load %arg22[%c0_8, %c0_9] : memref<2x256xf32, #tpu.memory_space<vmem>>, vector<2x256xf32>
    tpu.vector_store %arg22[%c0_8, %c0_9], %6 {strides = array<i32>} : memref<2x256xf32, #tpu.memory_space<vmem>>, vector<2x256xf32>,
    %cst_10 = arith.constant 0.000000e+00 : f32
    %8 = vector.broadcast %cst_10 : f32 to vector<2x192xf32>
    %c0_11 = arith.constant 0 : index
    %c0_12 = arith.constant 0 : index
    %9 = vector.load %arg23[%c0_11, %c0_12] : memref<2x192xf32, #tpu.memory_space<vmem>>, vector<2x192xf32>
    tpu.vector_store %arg23[%c0_11, %c0_12], %8 {strides = array<i32>} : memref<2x192xf32, #tpu.memory_space<vmem>>, vector<2x192xf32>,
    %cst_13 = arith.constant 0.000000e+00 : f32
    %10 = vector.broadcast %cst_13 : f32 to vector<2x10xf32>
    %c0_14 = arith.constant 0 : index
    %c0_15 = arith.constant 0 : index
    %11 = vector.load %arg24[%c0_14, %c0_15] : memref<2x10xf32, #tpu.memory_space<vmem>>, vector<2x10xf32>
    tpu.vector_store %arg24[%c0_14, %c0_15], %10 {strides = array<i32>} : memref<2x10xf32, #tpu.memory_space<vmem>>, vector<2x10xf32>,
    %cst_16 = arith.constant 0.000000e+00 : f32
    %12 = vector.broadcast %cst_16 : f32 to vector<2x10xf32>
    %c0_i32 = arith.constant 0 : i32
    %c4_i32 = arith.constant 4 : i32
    %13 = arith.addi %c0_i32, %c4_i32 : i32
    %c1_i32 = arith.constant 1 : i32
    %14 = scf.for %arg25 = %c0_i32 to %13 step %c1_i32 iter_args(%arg26 = %12) -> (vector<2x10xf32>)  : i32 {
      %c0_i32_20 = arith.constant 0 : i32
      %16 = arith.cmpi sgt, %arg25, %c0_i32_20 : i32
      %17 = arith.extui %16 : i1 to i32
      %18 = arith.sitofp %17 : i32 to f32
      %19 = arith.index_cast %arg25 : i32 to index
      %c0_21 = arith.constant 0 : index
      %c0_22 = arith.constant 0 : index
      %20 = vector.load %arg0[%19, %c0_21, %c0_22] : memref<4x72x400xf32, #tpu.memory_space<vmem>>, vector<1x72x400xf32>
      %21 = vector.shape_cast %20 : vector<1x72x400xf32> to vector<72x400xf32>
      %c0_23 = arith.constant 0 : index
      %c0_24 = arith.constant 0 : index
      %22 = vector.load %arg19[%c0_23, %c0_24] : memref<72x400xf32, #tpu.memory_space<vmem>>, vector<72x400xf32>
      %cst_25 = arith.constant 1.000000e+00 : f32
      %23 = vector.broadcast %cst_25 : f32 to vector<72x400xf32>
      %24 = arith.cmpf ogt, %22, %23 : vector<72x400xf32>
      %25 = arith.extui %24 : vector<72x400xi1> to vector<72x400xi32>
      %26 = arith.sitofp %25 : vector<72x400xi32> to vector<72x400xf32>
      %cst_26 = arith.constant 5.000000e-01 : f32
      %27 = vector.broadcast %cst_26 : f32 to vector<72x400xf32>
      %28 = arith.mulf %27, %22 : vector<72x400xf32>
      %29 = arith.addf %28, %21 : vector<72x400xf32>
      %cst_27 = arith.constant 1.000000e+00 : f32
      %30 = vector.broadcast %cst_27 : f32 to vector<72x400xf32>
      %31 = arith.mulf %26, %30 : vector<72x400xf32>
      %32 = arith.subf %29, %31 : vector<72x400xf32>
      %cst_28 = arith.constant 1.000000e+00 : f32
      %33 = vector.broadcast %cst_28 : f32 to vector<72x400xf32>
      %34 = arith.cmpf ogt, %32, %33 : vector<72x400xf32>
      %35 = arith.extui %34 : vector<72x400xi1> to vector<72x400xi32>
      %36 = arith.sitofp %35 : vector<72x400xi32> to vector<72x400xf32>
      %c0_29 = arith.constant 0 : index
      %c0_30 = arith.constant 0 : index
      %37 = vector.load %arg19[%c0_29, %c0_30] : memref<72x400xf32, #tpu.memory_space<vmem>>, vector<72x400xf32>
      tpu.vector_store %arg19[%c0_29, %c0_30], %32 {strides = array<i32>} : memref<72x400xf32, #tpu.memory_space<vmem>>, vector<72x400xf32>,
      %38 = arith.truncf %36 : vector<72x400xf32> to vector<72x400xbf16>
      %c0_31 = arith.constant 0 : index
      %c0_32 = arith.constant 0 : index
      %39 = vector.load %arg2[%c0_31, %c0_32] : memref<400x25xbf16, #tpu.memory_space<vmem>>, vector<400x25xbf16>
      %cst_33 = arith.constant dense<0.000000e+00> : vector<72x25xf32>
      %40 = tpu.matmul %38, %39, %cst_33 {dimension_numbers = #tpu.dot_dimension_numbers<[1], [0], [0], [1], [0, 0, 1, 1], [], []>} : vector<72x400xbf16>, vector<400x25xbf16>, vector<72x25xf32> -> vector<72x25xf32>
      %cst_34 = arith.constant 9.000000e+00 : f32
      %41 = vector.broadcast %cst_34 : f32 to vector<72x25xf32>
      %42 = arith.cmpf olt, %40, %41 : vector<72x25xf32>
      %43 = arith.extui %42 : vector<72x25xi1> to vector<72x25xi32>
      %44 = arith.sitofp %43 : vector<72x25xi32> to vector<72x25xf32>
      %45 = arith.truncf %44 : vector<72x25xf32> to vector<72x25xbf16>
      %c0_35 = arith.constant 0 : index
      %c0_36 = arith.constant 0 : index
      %46 = vector.load %arg3[%c0_35, %c0_36] : memref<25x400xbf16, #tpu.memory_space<vmem>>, vector<25x400xbf16>
      %cst_37 = arith.constant dense<0.000000e+00> : vector<72x400xf32>
      %47 = tpu.matmul %45, %46, %cst_37 {dimension_numbers = #tpu.dot_dimension_numbers<[1], [0], [0], [1], [0, 0, 1, 1], [], []>} : vector<72x25xbf16>, vector<25x400xbf16>, vector<72x400xf32> -> vector<72x400xf32>
      %48 = arith.mulf %36, %47 : vector<72x400xf32>
      %49 = arith.truncf %48 : vector<72x400xf32> to vector<72x400xbf16>
      %c0_38 = arith.constant 0 : index
      %c0_39 = arith.constant 0 : index
      %50 = vector.load %arg4[%c0_38, %c0_39] : memref<400x32xbf16, #tpu.memory_space<vmem>>, vector<400x32xbf16>
      %cst_40 = arith.constant dense<0.000000e+00> : vector<72x32xf32>
      %51 = tpu.matmul %49, %50, %cst_40 {dimension_numbers = #tpu.dot_dimension_numbers<[1], [0], [0], [1], [0, 0, 1, 1], [], []>} : vector<72x400xbf16>, vector<400x32xbf16>, vector<72x32xf32> -> vector<72x32xf32>
      %cst_41 = arith.constant 0.899999976 : f32
      %52 = arith.mulf %cst_41, %18 : f32
      %cst_42 = arith.constant 1.000000e+00 : f32
      %53 = arith.addf %cst_42, %52 : f32
      %54 = vector.broadcast %53 : f32 to vector<72x32xf32>
      %55 = arith.mulf %51, %54 : vector<72x32xf32>
      %c0_43 = arith.constant 0 : index
      %c0_44 = arith.constant 0 : index
      %56 = vector.load %arg5[%c0_43, %c0_44] : memref<1x32xf32, #tpu.memory_space<vmem>>, vector<1x32xf32>
      %57 = vector.broadcast %56 : vector<1x32xf32> to vector<72x32xf32>
      %58 = arith.addf %55, %57 : vector<72x32xf32>
      %c0_45 = arith.constant 0 : index
      %c0_46 = arith.constant 0 : index
      %59 = vector.load %arg1[%c0_45, %c0_46] : memref<72x1xf32, #tpu.memory_space<vmem>>, vector<72x1xf32>
      %60 = vector.broadcast %59 : vector<72x1xf32> to vector<72x32xf32>
      %61 = arith.mulf %58, %60 : vector<72x32xf32>
      %cst_47 = arith.constant dense<0.000000e+00> : vector<32xf32>
      %62 = vector.multi_reduction <add>, %61, %cst_47 [0] : vector<72x32xf32> to vector<32xf32>
      %63 = vector.shape_cast %62 : vector<32xf32> to vector<1x32xf32>
      %cst_48 = arith.constant 2.000000e-02 : f32
      %64 = vector.broadcast %cst_48 : f32 to vector<1x32xf32>
      %65 = arith.mulf %63, %64 : vector<1x32xf32>
      %66 = vector.broadcast %65 : vector<1x32xf32> to vector<72x32xf32>
      %67 = arith.subf %58, %66 : vector<72x32xf32>
      %68 = arith.mulf %67, %67 : vector<72x32xf32>
      %69 = vector.broadcast %59 : vector<72x1xf32> to vector<72x32xf32>
      %70 = arith.mulf %68, %69 : vector<72x32xf32>
      %cst_49 = arith.constant dense<0.000000e+00> : vector<32xf32>
      %71 = vector.multi_reduction <add>, %70, %cst_49 [0] : vector<72x32xf32> to vector<32xf32>
      %72 = vector.shape_cast %71 : vector<32xf32> to vector<1x32xf32>
      %cst_50 = arith.constant 2.000000e-02 : f32
      %73 = vector.broadcast %cst_50 : f32 to vector<1x32xf32>
      %74 = arith.mulf %72, %73 : vector<1x32xf32>
      %cst_51 = arith.constant 9.99999974E-6 : f32
      %75 = vector.broadcast %cst_51 : f32 to vector<1x32xf32>
      %76 = arith.addf %74, %75 : vector<1x32xf32>
      %77 = math.rsqrt %76 : vector<1x32xf32>
      %78 = vector.broadcast %77 : vector<1x32xf32> to vector<72x32xf32>
      %79 = arith.mulf %67, %78 : vector<72x32xf32>
      %c0_52 = arith.constant 0 : index
      %c0_53 = arith.constant 0 : index
      %80 = vector.load %arg6[%c0_52, %c0_53] : memref<1x32xf32, #tpu.memory_space<vmem>>, vector<1x32xf32>
      %81 = vector.broadcast %80 : vector<1x32xf32> to vector<72x32xf32>
      %82 = arith.mulf %79, %81 : vector<72x32xf32>
      %c0_54 = arith.constant 0 : index
      %c0_55 = arith.constant 0 : index
      %83 = vector.load %arg7[%c0_54, %c0_55] : memref<1x32xf32, #tpu.memory_space<vmem>>, vector<1x32xf32>
      %84 = vector.broadcast %83 : vector<1x32xf32> to vector<72x32xf32>
      %85 = arith.addf %82, %84 : vector<72x32xf32>
      %c0_56 = arith.constant 0 : index
      %c0_57 = arith.constant 0 : index
      %86 = vector.load %arg20[%c0_56, %c0_57] : memref<72x32xf32, #tpu.memory_space<vmem>>, vector<72x32xf32>
      %cst_58 = arith.constant 1.000000e+00 : f32
      %87 = vector.broadcast %cst_58 : f32 to vector<72x32xf32>
      %88 = arith.cmpf ogt, %86, %87 : vector<72x32xf32>
      %89 = arith.extui %88 : vector<72x32xi1> to vector<72x32xi32>
      %90 = arith.sitofp %89 : vector<72x32xi32> to vector<72x32xf32>
      %cst_59 = arith.constant 6.000000e-01 : f32
      %91 = vector.broadcast %cst_59 : f32 to vector<72x32xf32>
      %92 = arith.mulf %91, %86 : vector<72x32xf32>
      %93 = arith.addf %92, %85 : vector<72x32xf32>
      %cst_60 = arith.constant 1.000000e+00 : f32
      %94 = vector.broadcast %cst_60 : f32 to vector<72x32xf32>
      %95 = arith.mulf %90, %94 : vector<72x32xf32>
      %96 = arith.subf %93, %95 : vector<72x32xf32>
      %cst_61 = arith.constant 1.000000e+00 : f32
      %97 = vector.broadcast %cst_61 : f32 to vector<72x32xf32>
      %98 = arith.cmpf ogt, %96, %97 : vector<72x32xf32>
      %99 = arith.extui %98 : vector<72x32xi1> to vector<72x32xi32>
      %100 = arith.sitofp %99 : vector<72x32xi32> to vector<72x32xf32>
      %c0_62 = arith.constant 0 : index
      %c0_63 = arith.constant 0 : index
      %101 = vector.load %arg20[%c0_62, %c0_63] : memref<72x32xf32, #tpu.memory_space<vmem>>, vector<72x32xf32>
      tpu.vector_store %arg20[%c0_62, %c0_63], %96 {strides = array<i32>} : memref<72x32xf32, #tpu.memory_space<vmem>>, vector<72x32xf32>,
      %102 = vector.extract_strided_slice %100 {offsets = [0, 0], sizes = [8, 32], strides = [1, 1]} : vector<72x32xf32> to vector<8x32xf32>
      %103 = vector.extract_strided_slice %100 {offsets = [8, 0], sizes = [8, 32], strides = [1, 1]} : vector<72x32xf32> to vector<8x32xf32>
      %104 = vector.extract_strided_slice %100 {offsets = [16, 0], sizes = [8, 32], strides = [1, 1]} : vector<72x32xf32> to vector<8x32xf32>
      %105 = vector.extract_strided_slice %100 {offsets = [24, 0], sizes = [8, 32], strides = [1, 1]} : vector<72x32xf32> to vector<8x32xf32>
      %106 = vector.extract_strided_slice %100 {offsets = [32, 0], sizes = [8, 32], strides = [1, 1]} : vector<72x32xf32> to vector<8x32xf32>
      %107 = vector.extract_strided_slice %100 {offsets = [40, 0], sizes = [8, 32], strides = [1, 1]} : vector<72x32xf32> to vector<8x32xf32>
      %108 = vector.extract_strided_slice %100 {offsets = [48, 0], sizes = [8, 32], strides = [1, 1]} : vector<72x32xf32> to vector<8x32xf32>
      %109 = vector.extract_strided_slice %100 {offsets = [56, 0], sizes = [8, 32], strides = [1, 1]} : vector<72x32xf32> to vector<8x32xf32>
      %110 = vector.extract_strided_slice %100 {offsets = [64, 0], sizes = [8, 32], strides = [1, 1]} : vector<72x32xf32> to vector<8x32xf32>
      %111 = tpu.concatenate %102, %103, %104, %105, %106, %107, %108, %109, %110 in 1 : vector<8x32xf32>, vector<8x32xf32>, vector<8x32xf32>, vector<8x32xf32>, vector<8x32xf32>, vector<8x32xf32>, vector<8x32xf32>, vector<8x32xf32>, vector<8x32xf32> -> vector<8x288xf32>
      %112 = arith.truncf %111 : vector<8x288xf32> to vector<8x288xbf16>
      %c0_64 = arith.constant 0 : index
      %c0_65 = arith.constant 0 : index
      %113 = vector.load %arg8[%c0_64, %c0_65] : memref<288x32xbf16, #tpu.memory_space<vmem>>, vector<288x32xbf16>
      %cst_66 = arith.constant dense<0.000000e+00> : vector<8x32xf32>
      %114 = tpu.matmul %112, %113, %cst_66 {dimension_numbers = #tpu.dot_dimension_numbers<[1], [0], [0], [1], [0, 0, 1, 1], [], []>} : vector<8x288xbf16>, vector<288x32xbf16>, vector<8x32xf32> -> vector<8x32xf32>
      %cst_67 = arith.constant 8.000000e-01 : f32
      %115 = arith.mulf %cst_67, %18 : f32
      %cst_68 = arith.constant 1.000000e+00 : f32
      %116 = arith.addf %cst_68, %115 : f32
      %117 = vector.broadcast %116 : f32 to vector<8x32xf32>
      %118 = arith.mulf %114, %117 : vector<8x32xf32>
      %c0_69 = arith.constant 0 : index
      %c0_70 = arith.constant 0 : index
      %119 = vector.load %arg9[%c0_69, %c0_70] : memref<1x32xf32, #tpu.memory_space<vmem>>, vector<1x32xf32>
      %120 = vector.broadcast %119 : vector<1x32xf32> to vector<8x32xf32>
      %121 = arith.addf %118, %120 : vector<8x32xf32>
      %cst_71 = arith.constant dense<0.000000e+00> : vector<32xf32>
      %122 = vector.multi_reduction <add>, %121, %cst_71 [0] : vector<8x32xf32> to vector<32xf32>
      %123 = vector.shape_cast %122 : vector<32xf32> to vector<1x32xf32>
      %cst_72 = arith.constant 1.250000e-01 : f32
      %124 = vector.broadcast %cst_72 : f32 to vector<1x32xf32>
      %125 = arith.mulf %123, %124 : vector<1x32xf32>
      %126 = vector.broadcast %125 : vector<1x32xf32> to vector<8x32xf32>
      %127 = arith.subf %121, %126 : vector<8x32xf32>
      %128 = arith.mulf %127, %127 : vector<8x32xf32>
      %cst_73 = arith.constant dense<0.000000e+00> : vector<32xf32>
      %129 = vector.multi_reduction <add>, %128, %cst_73 [0] : vector<8x32xf32> to vector<32xf32>
      %130 = vector.shape_cast %129 : vector<32xf32> to vector<1x32xf32>
      %cst_74 = arith.constant 1.250000e-01 : f32
      %131 = vector.broadcast %cst_74 : f32 to vector<1x32xf32>
      %132 = arith.mulf %130, %131 : vector<1x32xf32>
      %cst_75 = arith.constant 9.99999974E-6 : f32
      %133 = vector.broadcast %cst_75 : f32 to vector<1x32xf32>
      %134 = arith.addf %132, %133 : vector<1x32xf32>
      %135 = math.rsqrt %134 : vector<1x32xf32>
      %136 = vector.broadcast %135 : vector<1x32xf32> to vector<8x32xf32>
      %137 = arith.mulf %127, %136 : vector<8x32xf32>
      %c0_76 = arith.constant 0 : index
      %c0_77 = arith.constant 0 : index
      %138 = vector.load %arg10[%c0_76, %c0_77] : memref<1x32xf32, #tpu.memory_space<vmem>>, vector<1x32xf32>
      %139 = vector.broadcast %138 : vector<1x32xf32> to vector<8x32xf32>
      %140 = arith.mulf %137, %139 : vector<8x32xf32>
      %c0_78 = arith.constant 0 : index
      %c0_79 = arith.constant 0 : index
      %141 = vector.load %arg11[%c0_78, %c0_79] : memref<1x32xf32, #tpu.memory_space<vmem>>, vector<1x32xf32>
      %142 = vector.broadcast %141 : vector<1x32xf32> to vector<8x32xf32>
      %143 = arith.addf %140, %142 : vector<8x32xf32>
      %c0_80 = arith.constant 0 : index
      %c0_81 = arith.constant 0 : index
      %144 = vector.load %arg21[%c0_80, %c0_81] : memref<8x32xf32, #tpu.memory_space<vmem>>, vector<8x32xf32>
      %cst_82 = arith.constant 1.000000e+00 : f32
      %145 = vector.broadcast %cst_82 : f32 to vector<8x32xf32>
      %146 = arith.cmpf ogt, %144, %145 : vector<8x32xf32>
      %147 = arith.extui %146 : vector<8x32xi1> to vector<8x32xi32>
      %148 = arith.sitofp %147 : vector<8x32xi32> to vector<8x32xf32>
      %cst_83 = arith.constant 0.699999988 : f32
      %149 = vector.broadcast %cst_83 : f32 to vector<8x32xf32>
      %150 = arith.mulf %149, %144 : vector<8x32xf32>
      %151 = arith.addf %150, %143 : vector<8x32xf32>
      %cst_84 = arith.constant 1.000000e+00 : f32
      %152 = vector.broadcast %cst_84 : f32 to vector<8x32xf32>
      %153 = arith.mulf %148, %152 : vector<8x32xf32>
      %154 = arith.subf %151, %153 : vector<8x32xf32>
      %cst_85 = arith.constant 1.000000e+00 : f32
      %155 = vector.broadcast %cst_85 : f32 to vector<8x32xf32>
      %156 = arith.cmpf ogt, %154, %155 : vector<8x32xf32>
      %157 = arith.extui %156 : vector<8x32xi1> to vector<8x32xi32>
      %158 = arith.sitofp %157 : vector<8x32xi32> to vector<8x32xf32>
      %c0_86 = arith.constant 0 : index
      %c0_87 = arith.constant 0 : index
      %159 = vector.load %arg21[%c0_86, %c0_87] : memref<8x32xf32, #tpu.memory_space<vmem>>, vector<8x32xf32>
      tpu.vector_store %arg21[%c0_86, %c0_87], %154 {strides = array<i32>} : memref<8x32xf32, #tpu.memory_space<vmem>>, vector<8x32xf32>,
      %160 = vector.extract_strided_slice %158 {offsets = [0, 0], sizes = [2, 32], strides = [1, 1]} : vector<8x32xf32> to vector<2x32xf32>
      %161 = vector.extract_strided_slice %158 {offsets = [2, 0], sizes = [2, 32], strides = [1, 1]} : vector<8x32xf32> to vector<2x32xf32>
      %162 = vector.extract_strided_slice %158 {offsets = [4, 0], sizes = [2, 32], strides = [1, 1]} : vector<8x32xf32> to vector<2x32xf32>
      %163 = vector.extract_strided_slice %158 {offsets = [6, 0], sizes = [2, 32], strides = [1, 1]} : vector<8x32xf32> to vector<2x32xf32>
      %164 = tpu.concatenate %160, %161, %162, %163 in 1 : vector<2x32xf32>, vector<2x32xf32>, vector<2x32xf32>, vector<2x32xf32> -> vector<2x128xf32>
      %165 = arith.truncf %164 : vector<2x128xf32> to vector<2x128xbf16>
      %c0_88 = arith.constant 0 : index
      %c0_89 = arith.constant 0 : index
      %166 = vector.load %arg12[%c0_88, %c0_89] : memref<128x256xbf16, #tpu.memory_space<vmem>>, vector<128x256xbf16>
      %cst_90 = arith.constant dense<0.000000e+00> : vector<2x256xf32>
      %167 = tpu.matmul %165, %166, %cst_90 {dimension_numbers = #tpu.dot_dimension_numbers<[1], [0], [0], [1], [0, 0, 1, 1], [], []>} : vector<2x128xbf16>, vector<128x256xbf16>, vector<2x256xf32> -> vector<2x256xf32>
      %cst_91 = arith.constant 0.699999988 : f32
      %168 = arith.mulf %cst_91, %18 : f32
      %cst_92 = arith.constant 1.000000e+00 : f32
      %169 = arith.addf %cst_92, %168 : f32
      %170 = vector.broadcast %169 : f32 to vector<2x256xf32>
      %171 = arith.mulf %167, %170 : vector<2x256xf32>
      %c0_93 = arith.constant 0 : index
      %c0_94 = arith.constant 0 : index
      %172 = vector.load %arg13[%c0_93, %c0_94] : memref<1x256xf32, #tpu.memory_space<vmem>>, vector<1x256xf32>
      %173 = vector.broadcast %172 : vector<1x256xf32> to vector<2x256xf32>
      %174 = arith.addf %171, %173 : vector<2x256xf32>
      %c0_95 = arith.constant 0 : index
      %c0_96 = arith.constant 0 : index
      %175 = vector.load %arg22[%c0_95, %c0_96] : memref<2x256xf32, #tpu.memory_space<vmem>>, vector<2x256xf32>
      %cst_97 = arith.constant 1.000000e+00 : f32
      %176 = vector.broadcast %cst_97 : f32 to vector<2x256xf32>
      %177 = arith.cmpf ogt, %175, %176 : vector<2x256xf32>
      %178 = arith.extui %177 : vector<2x256xi1> to vector<2x256xi32>
      %179 = arith.sitofp %178 : vector<2x256xi32> to vector<2x256xf32>
      %cst_98 = arith.constant 0.699999988 : f32
      %180 = vector.broadcast %cst_98 : f32 to vector<2x256xf32>
      %181 = arith.mulf %180, %175 : vector<2x256xf32>
      %182 = arith.addf %181, %174 : vector<2x256xf32>
      %cst_99 = arith.constant 1.000000e+00 : f32
      %183 = vector.broadcast %cst_99 : f32 to vector<2x256xf32>
      %184 = arith.mulf %179, %183 : vector<2x256xf32>
      %185 = arith.subf %182, %184 : vector<2x256xf32>
      %cst_100 = arith.constant 1.000000e+00 : f32
      %186 = vector.broadcast %cst_100 : f32 to vector<2x256xf32>
      %187 = arith.cmpf ogt, %185, %186 : vector<2x256xf32>
      %188 = arith.extui %187 : vector<2x256xi1> to vector<2x256xi32>
      %189 = arith.sitofp %188 : vector<2x256xi32> to vector<2x256xf32>
      %c0_101 = arith.constant 0 : index
      %c0_102 = arith.constant 0 : index
      %190 = vector.load %arg22[%c0_101, %c0_102] : memref<2x256xf32, #tpu.memory_space<vmem>>, vector<2x256xf32>
      tpu.vector_store %arg22[%c0_101, %c0_102], %185 {strides = array<i32>} : memref<2x256xf32, #tpu.memory_space<vmem>>, vector<2x256xf32>,
      %191 = arith.truncf %189 : vector<2x256xf32> to vector<2x256xbf16>
      %c0_103 = arith.constant 0 : index
      %c0_104 = arith.constant 0 : index
      %192 = vector.load %arg14[%c0_103, %c0_104] : memref<256x192xbf16, #tpu.memory_space<vmem>>, vector<256x192xbf16>
      %cst_105 = arith.constant dense<0.000000e+00> : vector<2x192xf32>
      %193 = tpu.matmul %191, %192, %cst_105 {dimension_numbers = #tpu.dot_dimension_numbers<[1], [0], [0], [1], [0, 0, 1, 1], [], []>} : vector<2x256xbf16>, vector<256x192xbf16>, vector<2x192xf32> -> vector<2x192xf32>
      %cst_106 = arith.constant 6.000000e-01 : f32
      %194 = arith.mulf %cst_106, %18 : f32
      %cst_107 = arith.constant 1.000000e+00 : f32
      %195 = arith.addf %cst_107, %194 : f32
      %196 = vector.broadcast %195 : f32 to vector<2x192xf32>
      %197 = arith.mulf %193, %196 : vector<2x192xf32>
      %c0_108 = arith.constant 0 : index
      %c0_109 = arith.constant 0 : index
      %198 = vector.load %arg15[%c0_108, %c0_109] : memref<1x192xf32, #tpu.memory_space<vmem>>, vector<1x192xf32>
      %199 = vector.broadcast %198 : vector<1x192xf32> to vector<2x192xf32>
      %200 = arith.addf %197, %199 : vector<2x192xf32>
      %c0_110 = arith.constant 0 : index
      %c0_111 = arith.constant 0 : index
      %201 = vector.load %arg23[%c0_110, %c0_111] : memref<2x192xf32, #tpu.memory_space<vmem>>, vector<2x192xf32>
      %cst_112 = arith.constant 1.000000e+00 : f32
      %202 = vector.broadcast %cst_112 : f32 to vector<2x192xf32>
      %203 = arith.cmpf ogt, %201, %202 : vector<2x192xf32>
      %204 = arith.extui %203 : vector<2x192xi1> to vector<2x192xi32>
      %205 = arith.sitofp %204 : vector<2x192xi32> to vector<2x192xf32>
      %cst_113 = arith.constant 7.500000e-01 : f32
      %206 = vector.broadcast %cst_113 : f32 to vector<2x192xf32>
      %207 = arith.mulf %206, %201 : vector<2x192xf32>
      %208 = arith.addf %207, %200 : vector<2x192xf32>
      %cst_114 = arith.constant 1.000000e+00 : f32
      %209 = vector.broadcast %cst_114 : f32 to vector<2x192xf32>
      %210 = arith.mulf %205, %209 : vector<2x192xf32>
      %211 = arith.subf %208, %210 : vector<2x192xf32>
      %cst_115 = arith.constant 1.000000e+00 : f32
      %212 = vector.broadcast %cst_115 : f32 to vector<2x192xf32>
      %213 = arith.cmpf ogt, %211, %212 : vector<2x192xf32>
      %214 = arith.extui %213 : vector<2x192xi1> to vector<2x192xi32>
      %215 = arith.sitofp %214 : vector<2x192xi32> to vector<2x192xf32>
      %c0_116 = arith.constant 0 : index
      %c0_117 = arith.constant 0 : index
      %216 = vector.load %arg23[%c0_116, %c0_117] : memref<2x192xf32, #tpu.memory_space<vmem>>, vector<2x192xf32>
      tpu.vector_store %arg23[%c0_116, %c0_117], %211 {strides = array<i32>} : memref<2x192xf32, #tpu.memory_space<vmem>>, vector<2x192xf32>,
      %217 = arith.truncf %215 : vector<2x192xf32> to vector<2x192xbf16>
      %c0_118 = arith.constant 0 : index
      %c0_119 = arith.constant 0 : index
      %218 = vector.load %arg16[%c0_118, %c0_119] : memref<192x10xbf16, #tpu.memory_space<vmem>>, vector<192x10xbf16>
      %cst_120 = arith.constant dense<0.000000e+00> : vector<2x10xf32>
      %219 = tpu.matmul %217, %218, %cst_120 {dimension_numbers = #tpu.dot_dimension_numbers<[1], [0], [0], [1], [0, 0, 1, 1], [], []>} : vector<2x192xbf16>, vector<192x10xbf16>, vector<2x10xf32> -> vector<2x10xf32>
      %c0_121 = arith.constant 0 : index
      %c0_122 = arith.constant 0 : index
      %220 = vector.load %arg17[%c0_121, %c0_122] : memref<1x10xf32, #tpu.memory_space<vmem>>, vector<1x10xf32>
      %221 = vector.broadcast %220 : vector<1x10xf32> to vector<2x10xf32>
      %222 = arith.addf %219, %221 : vector<2x10xf32>
      %c0_123 = arith.constant 0 : index
      %c0_124 = arith.constant 0 : index
      %223 = vector.load %arg24[%c0_123, %c0_124] : memref<2x10xf32, #tpu.memory_space<vmem>>, vector<2x10xf32>
      %cst_125 = arith.constant 1.000000e+00 : f32
      %224 = vector.broadcast %cst_125 : f32 to vector<2x10xf32>
      %225 = arith.cmpf ogt, %223, %224 : vector<2x10xf32>
      %226 = arith.extui %225 : vector<2x10xi1> to vector<2x10xi32>
      %227 = arith.sitofp %226 : vector<2x10xi32> to vector<2x10xf32>
      %cst_126 = arith.constant 0.899999976 : f32
      %228 = vector.broadcast %cst_126 : f32 to vector<2x10xf32>
      %229 = arith.mulf %228, %223 : vector<2x10xf32>
      %230 = arith.addf %229, %222 : vector<2x10xf32>
      %cst_127 = arith.constant 1.000000e+00 : f32
      %231 = vector.broadcast %cst_127 : f32 to vector<2x10xf32>
      %232 = arith.mulf %227, %231 : vector<2x10xf32>
      %233 = arith.subf %230, %232 : vector<2x10xf32>
      %cst_128 = arith.constant 1.000000e+00 : f32
      %234 = vector.broadcast %cst_128 : f32 to vector<2x10xf32>
      %235 = arith.cmpf ogt, %233, %234 : vector<2x10xf32>
      %236 = arith.extui %235 : vector<2x10xi1> to vector<2x10xi32>
      %237 = arith.sitofp %236 : vector<2x10xi32> to vector<2x10xf32>
      %c0_129 = arith.constant 0 : index
      %c0_130 = arith.constant 0 : index
      %238 = vector.load %arg24[%c0_129, %c0_130] : memref<2x10xf32, #tpu.memory_space<vmem>>, vector<2x10xf32>
      tpu.vector_store %arg24[%c0_129, %c0_130], %233 {strides = array<i32>} : memref<2x10xf32, #tpu.memory_space<vmem>>, vector<2x10xf32>,
      scf.yield %237 : vector<2x10xf32>
    }
    %c4_i32_17 = arith.constant 4 : i32
    %c0_18 = arith.constant 0 : index
    %c0_19 = arith.constant 0 : index
    %15 = vector.load %arg18[%c0_18, %c0_19] : memref<2x10xf32, #tpu.memory_space<vmem>>, vector<2x10xf32>
    tpu.vector_store %arg18[%c0_18, %c0_19], %14 {strides = array<i32>} : memref<2x10xf32, #tpu.memory_space<vmem>>, vector<2x10xf32>,
    return
  }
}

</mosaic_0001>

<llo_original>
// kernel: forward.1
$region0: #{forward.1}
  #allocation0 [shape = 'u32[]', space=smem, size = 0x4, offset = 0x4, fixed_abs, tag = 'smem constant byte address 0x4 - core index']
  #allocation1 [shape = 'u32[144,128]{1,0:T(1,128)}', space=vmem, size = 0x12000, scoped, tag = 'internal scratch']
  #allocation2 [shape = 'f32[72,400]{1,0:T(8,128)}', space=vmem, size = 0x24000, scoped, tag = 'scratch operand']
  #allocation3 [shape = 'f32[72,32]{1,0:T(8,128)}', space=vmem, size = 0x9000, scoped, tag = 'scratch operand']
  #allocation4 [shape = 'f32[8,32]{1,0:T(8,128)}', space=vmem, size = 0x1000, scoped, tag = 'scratch operand']
  #allocation5 [shape = 'f32[2,256]{1,0:T(2,128)}', space=vmem, size = 0x800, scoped, tag = 'scratch operand']
  #allocation6 [shape = 'f32[2,192]{1,0:T(2,128)}', space=vmem, size = 0x800, scoped, tag = 'scratch operand']
  #allocation7 [shape = 'f32[2,10]{1,0:T(2,128)}', space=vmem, size = 0x400, scoped, tag = 'scratch operand']
  %s0 = inlined_call_operand.vmem [shape: f32[4,72,400], index: 0, kind: input, shape index: {}]
  %s1 = inlined_call_operand.vmem [shape: f32[72,1], index: 1, kind: input, shape index: {}]
  %s2 = inlined_call_operand.vmem [shape: bf16[400,25], index: 2, kind: input, shape index: {}]
  %s3 = inlined_call_operand.vmem [shape: bf16[25,400], index: 3, kind: input, shape index: {}]
  %s4 = inlined_call_operand.vmem [shape: bf16[400,32], index: 4, kind: input, shape index: {}]
  %s5 = inlined_call_operand.vmem [shape: f32[1,32], index: 5, kind: input, shape index: {}]
  %s6 = inlined_call_operand.vmem [shape: f32[1,32], index: 6, kind: input, shape index: {}]
  %s7 = inlined_call_operand.vmem [shape: f32[1,32], index: 7, kind: input, shape index: {}]
  %s8 = inlined_call_operand.vmem [shape: bf16[288,32], index: 8, kind: input, shape index: {}]
  %s9 = inlined_call_operand.vmem [shape: f32[1,32], index: 9, kind: input, shape index: {}]
  %s10 = inlined_call_operand.vmem [shape: f32[1,32], index: 10, kind: input, shape index: {}]
  %s11 = inlined_call_operand.vmem [shape: f32[1,32], index: 11, kind: input, shape index: {}]
  %s12 = inlined_call_operand.vmem [shape: bf16[128,256], index: 12, kind: input, shape index: {}]
  %s13 = inlined_call_operand.vmem [shape: f32[1,256], index: 13, kind: input, shape index: {}]
  %s14 = inlined_call_operand.vmem [shape: bf16[256,192], index: 14, kind: input, shape index: {}]
  %s15 = inlined_call_operand.vmem [shape: f32[1,192], index: 15, kind: input, shape index: {}]
  %s16 = inlined_call_operand.vmem [shape: bf16[192,10], index: 16, kind: input, shape index: {}]
  %s17 = inlined_call_operand.vmem [shape: f32[1,10], index: 17, kind: input, shape index: {}]
  %s18 = inlined_call_operand.hbm [shape: f32[2,10], index: 18, kind: output, shape index: {}]
  %s19 = sld [smem:[#allocation0]]
  $region89: #{forward.1} parent=0
    _
  %s21 = ssub.s32 1, %s19
  %s22 = scalar_select 0, %s21, %s19
  $region1: #{forward.1} parent=0
    #allocation8 [shape = 'u8[1024]{0}', space=vmem, size = 0x400, scoped, tag = 'output window, operand 0, single buffered']
    #allocation9 [shape = 's32[1]{0}', space=sflag, size = 0x4, scoped, tag = 'scoped memory for forward.1']
    %23 = vsyncpa [#allocation9], 0
    // Predicated region
    $region2: #{forward.1} parent=1 // pred_check
      _
    $region3: #{forward.1} parent=1 // pred_check_branch
      %25 = sbr.rel (0) target = $region5
    $region4: #{forward.1} parent=1 // pred_region
      _
    $region5: #{forward.1} parent=1 // pred_fallthru
      _
    // Predicated region
    $region6: #{forward.1} parent=1 // pred_check
      _
    $region7: #{forward.1} parent=1 // pred_check_branch
      %27 = sbr.rel (0) target = $region9
    $region8: #{forward.1} parent=1 // pred_region
      _
    $region9: #{forward.1} parent=1 // pred_fallthru
      _
    // Predicated region
    $region10: #{forward.1} parent=1 // pred_check
      _
    $region11: #{forward.1} parent=1 // pred_check_branch
      %29 = sbr.rel (0) target = $region13
    $region12: #{forward.1} parent=1 // pred_region
      _
    $region13: #{forward.1} parent=1 // pred_fallthru
      _
    // Predicated region
    $region14: #{forward.1} parent=1 // pred_check
      _
    $region15: #{forward.1} parent=1 // pred_check_branch
      %31 = sbr.rel (0) target = $region17
    $region16: #{forward.1} parent=1 // pred_region
      _
    $region17: #{forward.1} parent=1 // pred_fallthru
      _
    // Predicated region
    $region18: #{forward.1} parent=1 // pred_check
      _
    $region19: #{forward.1} parent=1 // pred_check_branch
      %33 = sbr.rel (0) target = $region21
    $region20: #{forward.1} parent=1 // pred_region
      _
    $region21: #{forward.1} parent=1 // pred_fallthru
      _
    // Predicated region
    $region22: #{forward.1} parent=1 // pred_check
      _
    $region23: #{forward.1} parent=1 // pred_check_branch
      %35 = sbr.rel (0) target = $region25
    $region24: #{forward.1} parent=1 // pred_region
      _
    $region25: #{forward.1} parent=1 // pred_fallthru
      _
    // Predicated region
    $region26: #{forward.1} parent=1 // pred_check
      _
    $region27: #{forward.1} parent=1 // pred_check_branch
      %37 = sbr.rel (0) target = $region29
    $region28: #{forward.1} parent=1 // pred_region
      _
    $region29: #{forward.1} parent=1 // pred_fallthru
      _
    // Predicated region
    $region30: #{forward.1} parent=1 // pred_check
      _
    $region31: #{forward.1} parent=1 // pred_check_branch
      %39 = sbr.rel (0) target = $region33
    $region32: #{forward.1} parent=1 // pred_region
      _
    $region33: #{forward.1} parent=1 // pred_fallthru
      _
    // Predicated region
    $region34: #{forward.1} parent=1 // pred_check
      _
    $region35: #{forward.1} parent=1 // pred_check_branch
      %41 = sbr.rel (0) target = $region37
    $region36: #{forward.1} parent=1 // pred_region
      _
    $region37: #{forward.1} parent=1 // pred_fallthru
      _
    // Predicated region
    $region38: #{forward.1} parent=1 // pred_check
      _
    $region39: #{forward.1} parent=1 // pred_check_branch
      %43 = sbr.rel (0) target = $region41
    $region40: #{forward.1} parent=1 // pred_region
      _
    $region41: #{forward.1} parent=1 // pred_fallthru
      _
    // Predicated region
    $region42: #{forward.1} parent=1 // pred_check
      _
    $region43: #{forward.1} parent=1 // pred_check_branch
      %45 = sbr.rel (0) target = $region45
    $region44: #{forward.1} parent=1 // pred_region
      _
    $region45: #{forward.1} parent=1 // pred_fallthru
      _
    // Predicated region
    $region46: #{forward.1} parent=1 // pred_check
      _
    $region47: #{forward.1} parent=1 // pred_check_branch
      %47 = sbr.rel (0) target = $region49
    $region48: #{forward.1} parent=1 // pred_region
      _
    $region49: #{forward.1} parent=1 // pred_fallthru
      _
    // Predicated region
    $region50: #{forward.1} parent=1 // pred_check
      _
    $region51: #{forward.1} parent=1 // pred_check_branch
      %49 = sbr.rel (0) target = $region53
    $region52: #{forward.1} parent=1 // pred_region
      _
    $region53: #{forward.1} parent=1 // pred_fallthru
      _
    // Predicated region
    $region54: #{forward.1} parent=1 // pred_check
      _
    $region55: #{forward.1} parent=1 // pred_check_branch
      %51 = sbr.rel (0) target = $region57
    $region56: #{forward.1} parent=1 // pred_region
      _
    $region57: #{forward.1} parent=1 // pred_fallthru
      _
    // Predicated region
    $region58: #{forward.1} parent=1 // pred_check
      _
    $region59: #{forward.1} parent=1 // pred_check_branch
      %53 = sbr.rel (0) target = $region61
    $region60: #{forward.1} parent=1 // pred_region
      _
    $region61: #{forward.1} parent=1 // pred_fallthru
      _
    // Predicated region
    $region62: #{forward.1} parent=1 // pred_check
      _
    $region63: #{forward.1} parent=1 // pred_check_branch
      %55 = sbr.rel (0) target = $region65
    $region64: #{forward.1} parent=1 // pred_region
      _
    $region65: #{forward.1} parent=1 // pred_fallthru
      _
    // Predicated region
    $region66: #{forward.1} parent=1 // pred_check
      _
    $region67: #{forward.1} parent=1 // pred_check_branch
      %57 = sbr.rel (0) target = $region69
    $region68: #{forward.1} parent=1 // pred_region
      _
    $region69: #{forward.1} parent=1 // pred_fallthru
      _
    // Predicated region
    $region70: #{forward.1} parent=1 // pred_check
      _
    $region71: #{forward.1} parent=1 // pred_check_branch
      %59 = sbr.rel (0) target = $region73
    $region72: #{forward.1} parent=1 // pred_region
      _
    $region73: #{forward.1} parent=1 // pred_fallthru
      _
    %61 = vst [vmem:[#allocation2] sm:$0xff] 0.0
    %62 = vst [vmem:[#allocation2 + $0x8] sm:$0xff] 0.0
    %63 = vst [vmem:[#allocation2 + $0x10] sm:$0xff] 0.0
    %vm64 = vcmask 130048
    %65 = vst.msk [vmem:[#allocation2 + $0x18] sm:$0xff] %vm64, 0.0
    %66 = vst [vmem:[#allocation2 + $0x20] sm:$0xff] 0.0
    %67 = vst [vmem:[#allocation2 + $0x28] sm:$0xff] 0.0
    %68 = vst [vmem:[#allocation2 + $0x30] sm:$0xff] 0.0
    %69 = vst.msk [vmem:[#allocation2 + $0x38] sm:$0xff] %vm64, 0.0
    %70 = vst [vmem:[#allocation2 + $0x40] sm:$0xff] 0.0
    %71 = vst [vmem:[#allocation2 + $0x48] sm:$0xff] 0.0
    %72 = vst [vmem:[#allocation2 + $0x50] sm:$0xff] 0.0
    %73 = vst.msk [vmem:[#allocation2 + $0x58] sm:$0xff] %vm64, 0.0
    %74 = vst [vmem:[#allocation2 + $0x60] sm:$0xff] 0.0
    %75 = vst [vmem:[#allocation2 + $0x68] sm:$0xff] 0.0
    %76 = vst [vmem:[#allocation2 + $0x70] sm:$0xff] 0.0
    %77 = vst.msk [vmem:[#allocation2 + $0x78] sm:$0xff] %vm64, 0.0
    %78 = vst [vmem:[#allocation2 + $0x80] sm:$0xff] 0.0
    %79 = vst [vmem:[#allocation2 + $0x88] sm:$0xff] 0.0
    %80 = vst [vmem:[#allocation2 + $0x90] sm:$0xff] 0.0
    %81 = vst.msk [vmem:[#allocation2 + $0x98] sm:$0xff] %vm64, 0.0
    %82 = vst [vmem:[#allocation2 + $0xa0] sm:$0xff] 0.0
    %83 = vst [vmem:[#allocation2 + $0xa8] sm:$0xff] 0.0
    %84 = vst [vmem:[#allocation2 + $0xb0] sm:$0xff] 0.0
    %85 = vst.msk [vmem:[#allocation2 + $0xb8] sm:$0xff] %vm64, 0.0
    %86 = vst [vmem:[#allocation2 + $0xc0] sm:$0xff] 0.0
    %87 = vst [vmem:[#allocation2 + $0xc8] sm:$0xff] 0.0
    %88 = vst [vmem:[#allocation2 + $0xd0] sm:$0xff] 0.0
    %89 = vst.msk [vmem:[#allocation2 + $0xd8] sm:$0xff] %vm64, 0.0
    %90 = vst [vmem:[#allocation2 + $0xe0] sm:$0xff] 0.0
    %91 = vst [vmem:[#allocation2 + $0xe8] sm:$0xff] 0.0
    %92 = vst [vmem:[#allocation2 + $0xf0] sm:$0xff] 0.0
    %93 = vst.msk [vmem:[#allocation2 + $0xf8] sm:$0xff] %vm64, 0.0
    %94 = vst [vmem:[#allocation2 + $0x100] sm:$0xff] 0.0
    %95 = vst [vmem:[#allocation2 + $0x108] sm:$0xff] 0.0
    %96 = vst [vmem:[#allocation2 + $0x110] sm:$0xff] 0.0
    %97 = vst.msk [vmem:[#allocation2 + $0x118] sm:$0xff] %vm64, 0.0
    %vm98 = vcmask 261120
    %99 = vst.msk [vmem:[#allocation3] sm:$0xff] %vm98, 0.0
    %100 = vst.msk [vmem:[#allocation3 + $0x8] sm:$0xff] %vm98, 0.0
    %101 = vst.msk [vmem:[#allocation3 + $0x10] sm:$0xff] %vm98, 0.0
    %102 = vst.msk [vmem:[#allocation3 + $0x18] sm:$0xff] %vm98, 0.0
    %103 = vst.msk [vmem:[#allocation3 + $0x20] sm:$0xff] %vm98, 0.0
    %104 = vst.msk [vmem:[#allocation3 + $0x28] sm:$0xff] %vm98, 0.0
    %105 = vst.msk [vmem:[#allocation3 + $0x30] sm:$0xff] %vm98, 0.0
    %106 = vst.msk [vmem:[#allocation3 + $0x38] sm:$0xff] %vm98, 0.0
    %107 = vst.msk [vmem:[#allocation3 + $0x40] sm:$0xff] %vm98, 0.0
    %108 = vst.msk [vmem:[#allocation4] sm:$0xff] %vm98, 0.0
    %109 = vst [vmem:[#allocation5] sm:$0xf] 0.0
    %vm110 = vcmask 1041408
    %vm111 = vcmask 519170
    %vm112 = vmor %vm111, %vm110
    %113 = vst.msk [vmem:[#allocation6] sm:$0xf] %vm112, 0.0
    %vm114 = vcmask 74752
    %115 = vst.msk [vmem:[#allocation7] sm:$0x3] %vm114, 0.0
    loop: start=0, step=1, limit=4
    $region74: #{forward.1} parent=1 // loop_pre_header
      _
    $region75: #{forward.1} parent=1 // loop_header
      %s117 = sphi 0, %s121
      %p118 = scmp.ge.s32.totalorder %s117, 4
      %v122 = vphi 0.0, %v2905
    $region76: #{forward.1} parent=1 // loop_header_branch
      %120 = sbr.rel (%p118) target = $region80
    $region77: #{forward.1} parent=1 // loop_body
      %p123 = scmp.gt.s32.totalorder %s117, 0
      %s124 = scalar_select %p123, 1, 0
      %s125 = scvt.s32.f32 %s124
      %s126 = smul.u32 %s117, 36
      %s127 = smul.addr %s126, 8
      %s128 = scalar_lea.vmem %s0, %s127
      %v129 = vld [vmem:[%s128] sm:$0xff]
      %v130 = vld [vmem:[%s128 + $0x8] sm:$0xff]
      %v131 = vld [vmem:[%s128 + $0x10] sm:$0xff]
      %v132 = vld [vmem:[%s128 + $0x18] sm:$0xff]
      %v133 = vld [vmem:[%s128 + $0x20] sm:$0xff]
      %v134 = vld [vmem:[%s128 + $0x28] sm:$0xff]
      %v135 = vld [vmem:[%s128 + $0x30] sm:$0xff]
      %v136 = vld [vmem:[%s128 + $0x38] sm:$0xff]
      %v137 = vld [vmem:[%s128 + $0x40] sm:$0xff]
      %v138 = vld [vmem:[%s128 + $0x48] sm:$0xff]
      %v139 = vld [vmem:[%s128 + $0x50] sm:$0xff]
      %v140 = vld [vmem:[%s128 + $0x58] sm:$0xff]
      %v141 = vld [vmem:[%s128 + $0x60] sm:$0xff]
      %v142 = vld [vmem:[%s128 + $0x68] sm:$0xff]
      %v143 = vld [vmem:[%s128 + $0x70] sm:$0xff]
      %v144 = vld [vmem:[%s128 + $0x78] sm:$0xff]
      %v145 = vld [vmem:[%s128 + $0x80] sm:$0xff]
      %v146 = vld [vmem:[%s128 + $0x88] sm:$0xff]
      %v147 = vld [vmem:[%s128 + $0x90] sm:$0xff]
      %v148 = vld [vmem:[%s128 + $0x98] sm:$0xff]
      %v149 = vld [vmem:[%s128 + $0xa0] sm:$0xff]
      %v150 = vld [vmem:[%s128 + $0xa8] sm:$0xff]
      %v151 = vld [vmem:[%s128 + $0xb0] sm:$0xff]
      %v152 = vld [vmem:[%s128 + $0xb8] sm:$0xff]
      %v153 = vld [vmem:[%s128 + $0xc0] sm:$0xff]
      %v154 = vld [vmem:[%s128 + $0xc8] sm:$0xff]
      %v155 = vld [vmem:[%s128 + $0xd0] sm:$0xff]
      %v156 = vld [vmem:[%s128 + $0xd8] sm:$0xff]
      %v157 = vld [vmem:[%s128 + $0xe0] sm:$0xff]
      %v158 = vld [vmem:[%s128 + $0xe8] sm:$0xff]
      %v159 = vld [vmem:[%s128 + $0xf0] sm:$0xff]
      %v160 = vld [vmem:[%s128 + $0xf8] sm:$0xff]
      %v161 = vld [vmem:[%s128 + $0x100] sm:$0xff]
      %v162 = vld [vmem:[%s128 + $0x108] sm:$0xff]
      %v163 = vld [vmem:[%s128 + $0x110] sm:$0xff]
      %v164 = vld [vmem:[%s128 + $0x118] sm:$0xff]
      %v165 = vld [vmem:[#allocation2] sm:$0xff]
      %v166 = vld [vmem:[#allocation2 + $0x8] sm:$0xff]
      %v167 = vld [vmem:[#allocation2 + $0x10] sm:$0xff]
      %v168 = vld [vmem:[#allocation2 + $0x18] sm:$0xff]
      %v169 = vld [vmem:[#allocation2 + $0x20] sm:$0xff]
      %v170 = vld [vmem:[#allocation2 + $0x28] sm:$0xff]
      %v171 = vld [vmem:[#allocation2 + $0x30] sm:$0xff]
      %v172 = vld [vmem:[#allocation2 + $0x38] sm:$0xff]
      %v173 = vld [vmem:[#allocation2 + $0x40] sm:$0xff]
      %v174 = vld [vmem:[#allocation2 + $0x48] sm:$0xff]
      %v175 = vld [vmem:[#allocation2 + $0x50] sm:$0xff]
      %v176 = vld [vmem:[#allocation2 + $0x58] sm:$0xff]
      %v177 = vld [vmem:[#allocation2 + $0x60] sm:$0xff]
      %v178 = vld [vmem:[#allocation2 + $0x68] sm:$0xff]
      %v179 = vld [vmem:[#allocation2 + $0x70] sm:$0xff]
      %v180 = vld [vmem:[#allocation2 + $0x78] sm:$0xff]
      %v181 = vld [vmem:[#allocation2 + $0x80] sm:$0xff]
      %v182 = vld [vmem:[#allocation2 + $0x88] sm:$0xff]
      %v183 = vld [vmem:[#allocation2 + $0x90] sm:$0xff]
      %v184 = vld [vmem:[#allocation2 + $0x98] sm:$0xff]
      %v185 = vld [vmem:[#allocation2 + $0xa0] sm:$0xff]
      %v186 = vld [vmem:[#allocation2 + $0xa8] sm:$0xff]
      %v187 = vld [vmem:[#allocation2 + $0xb0] sm:$0xff]
      %v188 = vld [vmem:[#allocation2 + $0xb8] sm:$0xff]
      %v189 = vld [vmem:[#allocation2 + $0xc0] sm:$0xff]
      %v190 = vld [vmem:[#allocation2 + $0xc8] sm:$0xff]
      %v191 = vld [vmem:[#allocation2 + $0xd0] sm:$0xff]
      %v192 = vld [vmem:[#allocation2 + $0xd8] sm:$0xff]
      %v193 = vld [vmem:[#allocation2 + $0xe0] sm:$0xff]
      %v194 = vld [vmem:[#allocation2 + $0xe8] sm:$0xff]
      %v195 = vld [vmem:[#allocation2 + $0xf0] sm:$0xff]
      %v196 = vld [vmem:[#allocation2 + $0xf8] sm:$0xff]
      %v197 = vld [vmem:[#allocation2 + $0x100] sm:$0xff]
      %v198 = vld [vmem:[#allocation2 + $0x108] sm:$0xff]
      %v199 = vld [vmem:[#allocation2 + $0x110] sm:$0xff]
      %v200 = vld [vmem:[#allocation2 + $0x118] sm:$0xff]
      %vm201 = vcmp.gt.f32.partialorder %v165, 1.0
      %vm202 = vcmp.gt.f32.partialorder %v166, 1.0
      %vm203 = vcmp.gt.f32.partialorder %v167, 1.0
      %vm204 = vcmp.gt.f32.partialorder %v168, 1.0
      %vm205 = vcmp.gt.f32.partialorder %v169, 1.0
      %vm206 = vcmp.gt.f32.partialorder %v170, 1.0
      %vm207 = vcmp.gt.f32.partialorder %v171, 1.0
      %vm208 = vcmp.gt.f32.partialorder %v172, 1.0
      %vm209 = vcmp.gt.f32.partialorder %v173, 1.0
      %vm210 = vcmp.gt.f32.partialorder %v174, 1.0
      %vm211 = vcmp.gt.f32.partialorder %v175, 1.0
      %vm212 = vcmp.gt.f32.partialorder %v176, 1.0
      %vm213 = vcmp.gt.f32.partialorder %v177, 1.0
      %vm214 = vcmp.gt.f32.partialorder %v178, 1.0
      %vm215 = vcmp.gt.f32.partialorder %v179, 1.0
      %vm216 = vcmp.gt.f32.partialorder %v180, 1.0
      %vm217 = vcmp.gt.f32.partialorder %v181, 1.0
      %vm218 = vcmp.gt.f32.partialorder %v182, 1.0
      %vm219 = vcmp.gt.f32.partialorder %v183, 1.0
      %vm220 = vcmp.gt.f32.partialorder %v184, 1.0
      %vm221 = vcmp.gt.f32.partialorder %v185, 1.0
      %vm222 = vcmp.gt.f32.partialorder %v186, 1.0
      %vm223 = vcmp.gt.f32.partialorder %v187, 1.0
      %vm224 = vcmp.gt.f32.partialorder %v188, 1.0
      %vm225 = vcmp.gt.f32.partialorder %v189, 1.0
      %vm226 = vcmp.gt.f32.partialorder %v190, 1.0
      %vm227 = vcmp.gt.f32.partialorder %v191, 1.0
      %vm228 = vcmp.gt.f32.partialorder %v192, 1.0
      %vm229 = vcmp.gt.f32.partialorder %v193, 1.0
      %vm230 = vcmp.gt.f32.partialorder %v194, 1.0
      %vm231 = vcmp.gt.f32.partialorder %v195, 1.0
      %vm232 = vcmp.gt.f32.partialorder %v196, 1.0
      %vm233 = vcmp.gt.f32.partialorder %v197, 1.0
      %vm234 = vcmp.gt.f32.partialorder %v198, 1.0
      %vm235 = vcmp.gt.f32.partialorder %v199, 1.0
      %vm236 = vcmp.gt.f32.partialorder %v200, 1.0
      %v237 = vsel %vm201, 1, 0
      %v238 = vsel %vm202, 1, 0
      %v239 = vsel %vm203, 1, 0
      %v240 = vsel %vm204, 1, 0
      %v241 = vsel %vm205, 1, 0
      %v242 = vsel %vm206, 1, 0
      %v243 = vsel %vm207, 1, 0
      %v244 = vsel %vm208, 1, 0
      %v245 = vsel %vm209, 1, 0
      %v246 = vsel %vm210, 1, 0
      %v247 = vsel %vm211, 1, 0
      %v248 = vsel %vm212, 1, 0
      %v249 = vsel %vm213, 1, 0
      %v250 = vsel %vm214, 1, 0
      %v251 = vsel %vm215, 1, 0
      %v252 = vsel %vm216, 1, 0
      %v253 = vsel %vm217, 1, 0
      %v254 = vsel %vm218, 1, 0
      %v255 = vsel %vm219, 1, 0
      %v256 = vsel %vm220, 1, 0
      %v257 = vsel %vm221, 1, 0
      %v258 = vsel %vm222, 1, 0
      %v259 = vsel %vm223, 1, 0
      %v260 = vsel %vm224, 1, 0
      %v261 = vsel %vm225, 1, 0
      %v262 = vsel %vm226, 1, 0
      %v263 = vsel %vm227, 1, 0
      %v264 = vsel %vm228, 1, 0
      %v265 = vsel %vm229, 1, 0
      %v266 = vsel %vm230, 1, 0
      %v267 = vsel %vm231, 1, 0
      %v268 = vsel %vm232, 1, 0
      %v269 = vsel %vm233, 1, 0
      %v270 = vsel %vm234, 1, 0
      %v271 = vsel %vm235, 1, 0
      %v272 = vsel %vm236, 1, 0
      %v273 = vcvt.s32.f32 %v237
      %v274 = vcvt.s32.f32 %v238
      %v275 = vcvt.s32.f32 %v239
      %v276 = vcvt.s32.f32 %v240
      %v277 = vcvt.s32.f32 %v241
      %v278 = vcvt.s32.f32 %v242
      %v279 = vcvt.s32.f32 %v243
      %v280 = vcvt.s32.f32 %v244
      %v281 = vcvt.s32.f32 %v245
      %v282 = vcvt.s32.f32 %v246
      %v283 = vcvt.s32.f32 %v247
      %v284 = vcvt.s32.f32 %v248
      %v285 = vcvt.s32.f32 %v249
      %v286 = vcvt.s32.f32 %v250
      %v287 = vcvt.s32.f32 %v251
      %v288 = vcvt.s32.f32 %v252
      %v289 = vcvt.s32.f32 %v253
      %v290 = vcvt.s32.f32 %v254
      %v291 = vcvt.s32.f32 %v255
      %v292 = vcvt.s32.f32 %v256
      %v293 = vcvt.s32.f32 %v257
      %v294 = vcvt.s32.f32 %v258
      %v295 = vcvt.s32.f32 %v259
      %v296 = vcvt.s32.f32 %v260
      %v297 = vcvt.s32.f32 %v261
      %v298 = vcvt.s32.f32 %v262
      %v299 = vcvt.s32.f32 %v263
      %v300 = vcvt.s32.f32 %v264
      %v301 = vcvt.s32.f32 %v265
      %v302 = vcvt.s32.f32 %v266
      %v303 = vcvt.s32.f32 %v267
      %v304 = vcvt.s32.f32 %v268
      %v305 = vcvt.s32.f32 %v269
      %v306 = vcvt.s32.f32 %v270
      %v307 = vcvt.s32.f32 %v271
      %v308 = vcvt.s32.f32 %v272
      %v309 = vmul.f32 %v165, 0.5
      %v310 = vmul.f32 %v166, 0.5
      %v311 = vmul.f32 %v167, 0.5
      %v312 = vmul.f32 %v168, 0.5
      %v313 = vmul.f32 %v169, 0.5
      %v314 = vmul.f32 %v170, 0.5
      %v315 = vmul.f32 %v171, 0.5
      %v316 = vmul.f32 %v172, 0.5
      %v317 = vmul.f32 %v173, 0.5
      %v318 = vmul.f32 %v174, 0.5
      %v319 = vmul.f32 %v175, 0.5
      %v320 = vmul.f32 %v176, 0.5
      %v321 = vmul.f32 %v177, 0.5
      %v322 = vmul.f32 %v178, 0.5
      %v323 = vmul.f32 %v179, 0.5
      %v324 = vmul.f32 %v180, 0.5
      %v325 = vmul.f32 %v181, 0.5
      %v326 = vmul.f32 %v182, 0.5
      %v327 = vmul.f32 %v183, 0.5
      %v328 = vmul.f32 %v184, 0.5
      %v329 = vmul.f32 %v185, 0.5
      %v330 = vmul.f32 %v186, 0.5
      %v331 = vmul.f32 %v187, 0.5
      %v332 = vmul.f32 %v188, 0.5
      %v333 = vmul.f32 %v189, 0.5
      %v334 = vmul.f32 %v190, 0.5
      %v335 = vmul.f32 %v191, 0.5
      %v336 = vmul.f32 %v192, 0.5
      %v337 = vmul.f32 %v193, 0.5
      %v338 = vmul.f32 %v194, 0.5
      %v339 = vmul.f32 %v195, 0.5
      %v340 = vmul.f32 %v196, 0.5
      %v341 = vmul.f32 %v197, 0.5
      %v342 = vmul.f32 %v198, 0.5
      %v343 = vmul.f32 %v199, 0.5
      %v344 = vmul.f32 %v200, 0.5
      %v345 = vadd.f32 %v309, %v129
      %v346 = vadd.f32 %v310, %v130
      %v347 = vadd.f32 %v311, %v131
      %v348 = vadd.f32 %v312, %v132
      %v349 = vadd.f32 %v313, %v133
      %v350 = vadd.f32 %v314, %v134
      %v351 = vadd.f32 %v315, %v135
      %v352 = vadd.f32 %v316, %v136
      %v353 = vadd.f32 %v317, %v137
      %v354 = vadd.f32 %v318, %v138
      %v355 = vadd.f32 %v319, %v139
      %v356 = vadd.f32 %v320, %v140
      %v357 = vadd.f32 %v321, %v141
      %v358 = vadd.f32 %v322, %v142
      %v359 = vadd.f32 %v323, %v143
      %v360 = vadd.f32 %v324, %v144
      %v361 = vadd.f32 %v325, %v145
      %v362 = vadd.f32 %v326, %v146
      %v363 = vadd.f32 %v327, %v147
      %v364 = vadd.f32 %v328, %v148
      %v365 = vadd.f32 %v329, %v149
      %v366 = vadd.f32 %v330, %v150
      %v367 = vadd.f32 %v331, %v151
      %v368 = vadd.f32 %v332, %v152
      %v369 = vadd.f32 %v333, %v153
      %v370 = vadd.f32 %v334, %v154
      %v371 = vadd.f32 %v335, %v155
      %v372 = vadd.f32 %v336, %v156
      %v373 = vadd.f32 %v337, %v157
      %v374 = vadd.f32 %v338, %v158
      %v375 = vadd.f32 %v339, %v159
      %v376 = vadd.f32 %v340, %v160
      %v377 = vadd.f32 %v341, %v161
      %v378 = vadd.f32 %v342, %v162
      %v379 = vadd.f32 %v343, %v163
      %v380 = vadd.f32 %v344, %v164
      %v381 = vsub.f32 %v345, %v273
      %v382 = vsub.f32 %v346, %v274
      %v383 = vsub.f32 %v347, %v275
      %v384 = vsub.f32 %v348, %v276
      %v385 = vsub.f32 %v349, %v277
      %v386 = vsub.f32 %v350, %v278
      %v387 = vsub.f32 %v351, %v279
      %v388 = vsub.f32 %v352, %v280
      %v389 = vsub.f32 %v353, %v281
      %v390 = vsub.f32 %v354, %v282
      %v391 = vsub.f32 %v355, %v283
      %v392 = vsub.f32 %v356, %v284
      %v393 = vsub.f32 %v357, %v285
      %v394 = vsub.f32 %v358, %v286
      %v395 = vsub.f32 %v359, %v287
      %v396 = vsub.f32 %v360, %v288
      %v397 = vsub.f32 %v361, %v289
      %v398 = vsub.f32 %v362, %v290
      %v399 = vsub.f32 %v363, %v291
      %v400 = vsub.f32 %v364, %v292
      %v401 = vsub.f32 %v365, %v293
      %v402 = vsub.f32 %v366, %v294
      %v403 = vsub.f32 %v367, %v295
      %v404 = vsub.f32 %v368, %v296
      %v405 = vsub.f32 %v369, %v297
      %v406 = vsub.f32 %v370, %v298
      %v407 = vsub.f32 %v371, %v299
      %v408 = vsub.f32 %v372, %v300
      %v409 = vsub.f32 %v373, %v301
      %v410 = vsub.f32 %v374, %v302
      %v411 = vsub.f32 %v375, %v303
      %v412 = vsub.f32 %v376, %v304
      %v413 = vsub.f32 %v377, %v305
      %v414 = vsub.f32 %v378, %v306
      %v415 = vsub.f32 %v379, %v307
      %v416 = vsub.f32 %v380, %v308
      %vm417 = vcmp.gt.f32.partialorder %v381, 1.0
      %vm418 = vcmp.gt.f32.partialorder %v382, 1.0
      %vm419 = vcmp.gt.f32.partialorder %v383, 1.0
      %vm420 = vcmp.gt.f32.partialorder %v384, 1.0
      %vm421 = vcmp.gt.f32.partialorder %v385, 1.0
      %vm422 = vcmp.gt.f32.partialorder %v386, 1.0
      %vm423 = vcmp.gt.f32.partialorder %v387, 1.0
      %vm424 = vcmp.gt.f32.partialorder %v388, 1.0
      %vm425 = vcmp.gt.f32.partialorder %v389, 1.0
      %vm426 = vcmp.gt.f32.partialorder %v390, 1.0
      %vm427 = vcmp.gt.f32.partialorder %v391, 1.0
      %vm428 = vcmp.gt.f32.partialorder %v392, 1.0
      %vm429 = vcmp.gt.f32.partialorder %v393, 1.0
      %vm430 = vcmp.gt.f32.partialorder %v394, 1.0
      %vm431 = vcmp.gt.f32.partialorder %v395, 1.0
      %vm432 = vcmp.gt.f32.partialorder %v396, 1.0
      %vm433 = vcmp.gt.f32.partialorder %v397, 1.0
      %vm434 = vcmp.gt.f32.partialorder %v398, 1.0
      %vm435 = vcmp.gt.f32.partialorder %v399, 1.0
      %vm436 = vcmp.gt.f32.partialorder %v400, 1.0
      %vm437 = vcmp.gt.f32.partialorder %v401, 1.0
      %vm438 = vcmp.gt.f32.partialorder %v402, 1.0
      %vm439 = vcmp.gt.f32.partialorder %v403, 1.0
      %vm440 = vcmp.gt.f32.partialorder %v404, 1.0
      %vm441 = vcmp.gt.f32.partialorder %v405, 1.0
      %vm442 = vcmp.gt.f32.partialorder %v406, 1.0
      %vm443 = vcmp.gt.f32.partialorder %v407, 1.0
      %vm444 = vcmp.gt.f32.partialorder %v408, 1.0
      %vm445 = vcmp.gt.f32.partialorder %v409, 1.0
      %vm446 = vcmp.gt.f32.partialorder %v410, 1.0
      %vm447 = vcmp.gt.f32.partialorder %v411, 1.0
      %vm448 = vcmp.gt.f32.partialorder %v412, 1.0
      %vm449 = vcmp.gt.f32.partialorder %v413, 1.0
      %vm450 = vcmp.gt.f32.partialorder %v414, 1.0
      %vm451 = vcmp.gt.f32.partialorder %v415, 1.0
      %vm452 = vcmp.gt.f32.partialorder %v416, 1.0
      %v453 = vsel %vm417, 1, 0
      %v454 = vsel %vm418, 1, 0
      %v455 = vsel %vm419, 1, 0
      %v456 = vsel %vm420, 1, 0
      %v457 = vsel %vm421, 1, 0
      %v458 = vsel %vm422, 1, 0
      %v459 = vsel %vm423, 1, 0
      %v460 = vsel %vm424, 1, 0
      %v461 = vsel %vm425, 1, 0
      %v462 = vsel %vm426, 1, 0
      %v463 = vsel %vm427, 1, 0
      %v464 = vsel %vm428, 1, 0
      %v465 = vsel %vm429, 1, 0
      %v466 = vsel %vm430, 1, 0
      %v467 = vsel %vm431, 1, 0
      %v468 = vsel %vm432, 1, 0
      %v469 = vsel %vm433, 1, 0
      %v470 = vsel %vm434, 1, 0
      %v471 = vsel %vm435, 1, 0
      %v472 = vsel %vm436, 1, 0
      %v473 = vsel %vm437, 1, 0
      %v474 = vsel %vm438, 1, 0
      %v475 = vsel %vm439, 1, 0
      %v476 = vsel %vm440, 1, 0
      %v477 = vsel %vm441, 1, 0
      %v478 = vsel %vm442, 1, 0
      %v479 = vsel %vm443, 1, 0
      %v480 = vsel %vm444, 1, 0
      %v481 = vsel %vm445, 1, 0
      %v482 = vsel %vm446, 1, 0
      %v483 = vsel %vm447, 1, 0
      %v484 = vsel %vm448, 1, 0
      %v485 = vsel %vm449, 1, 0
      %v486 = vsel %vm450, 1, 0
      %v487 = vsel %vm451, 1, 0
      %v488 = vsel %vm452, 1, 0
      %v489 = vcvt.s32.f32 %v453
      %v490 = vcvt.s32.f32 %v454
      %v491 = vcvt.s32.f32 %v455
      %v492 = vcvt.s32.f32 %v456
      %v493 = vcvt.s32.f32 %v457
      %v494 = vcvt.s32.f32 %v458
      %v495 = vcvt.s32.f32 %v459
      %v496 = vcvt.s32.f32 %v460
      %v497 = vcvt.s32.f32 %v461
      %v498 = vcvt.s32.f32 %v462
      %v499 = vcvt.s32.f32 %v463
      %v500 = vcvt.s32.f32 %v464
      %v501 = vcvt.s32.f32 %v465
      %v502 = vcvt.s32.f32 %v466
      %v503 = vcvt.s32.f32 %v467
      %v504 = vcvt.s32.f32 %v468
      %v505 = vcvt.s32.f32 %v469
      %v506 = vcvt.s32.f32 %v470
      %v507 = vcvt.s32.f32 %v471
      %v508 = vcvt.s32.f32 %v472
      %v509 = vcvt.s32.f32 %v473
      %v510 = vcvt.s32.f32 %v474
      %v511 = vcvt.s32.f32 %v475
      %v512 = vcvt.s32.f32 %v476
      %v513 = vcvt.s32.f32 %v477
      %v514 = vcvt.s32.f32 %v478
      %v515 = vcvt.s32.f32 %v479
      %v516 = vcvt.s32.f32 %v480
      %v517 = vcvt.s32.f32 %v481
      %v518 = vcvt.s32.f32 %v482
      %v519 = vcvt.s32.f32 %v483
      %v520 = vcvt.s32.f32 %v484
      %v521 = vcvt.s32.f32 %v485
      %v522 = vcvt.s32.f32 %v486
      %v523 = vcvt.s32.f32 %v487
      %v524 = vcvt.s32.f32 %v488
      %525 = vst [vmem:[#allocation2] sm:$0xff] %v381
      %526 = vst [vmem:[#allocation2 + $0x8] sm:$0xff] %v382
      %527 = vst [vmem:[#allocation2 + $0x10] sm:$0xff] %v383
      %528 = vst.msk [vmem:[#allocation2 + $0x18] sm:$0xff] %vm64, %v384
      %529 = vst [vmem:[#allocation2 + $0x20] sm:$0xff] %v385
      %530 = vst [vmem:[#allocation2 + $0x28] sm:$0xff] %v386
      %531 = vst [vmem:[#allocation2 + $0x30] sm:$0xff] %v387
      %532 = vst.msk [vmem:[#allocation2 + $0x38] sm:$0xff] %vm64, %v388
      %533 = vst [vmem:[#allocation2 + $0x40] sm:$0xff] %v389
      %534 = vst [vmem:[#allocation2 + $0x48] sm:$0xff] %v390
      %535 = vst [vmem:[#allocation2 + $0x50] sm:$0xff] %v391
      %536 = vst.msk [vmem:[#allocation2 + $0x58] sm:$0xff] %vm64, %v392
      %537 = vst [vmem:[#allocation2 + $0x60] sm:$0xff] %v393
      %538 = vst [vmem:[#allocation2 + $0x68] sm:$0xff] %v394
      %539 = vst [vmem:[#allocation2 + $0x70] sm:$0xff] %v395
      %540 = vst.msk [vmem:[#allocation2 + $0x78] sm:$0xff] %vm64, %v396
      %541 = vst [vmem:[#allocation2 + $0x80] sm:$0xff] %v397
      %542 = vst [vmem:[#allocation2 + $0x88] sm:$0xff] %v398
      %543 = vst [vmem:[#allocation2 + $0x90] sm:$0xff] %v399
      %544 = vst.msk [vmem:[#allocation2 + $0x98] sm:$0xff] %vm64, %v400
      %545 = vst [vmem:[#allocation2 + $0xa0] sm:$0xff] %v401
      %546 = vst [vmem:[#allocation2 + $0xa8] sm:$0xff] %v402
      %547 = vst [vmem:[#allocation2 + $0xb0] sm:$0xff] %v403
      %548 = vst.msk [vmem:[#allocation2 + $0xb8] sm:$0xff] %vm64, %v404
      %549 = vst [vmem:[#allocation2 + $0xc0] sm:$0xff] %v405
      %550 = vst [vmem:[#allocation2 + $0xc8] sm:$0xff] %v406
      %551 = vst [vmem:[#allocation2 + $0xd0] sm:$0xff] %v407
      %552 = vst.msk [vmem:[#allocation2 + $0xd8] sm:$0xff] %vm64, %v408
      %553 = vst [vmem:[#allocation2 + $0xe0] sm:$0xff] %v409
      %554 = vst [vmem:[#allocation2 + $0xe8] sm:$0xff] %v410
      %555 = vst [vmem:[#allocation2 + $0xf0] sm:$0xff] %v411
      %556 = vst.msk [vmem:[#allocation2 + $0xf8] sm:$0xff] %vm64, %v412
      %557 = vst [vmem:[#allocation2 + $0x100] sm:$0xff] %v413
      %558 = vst [vmem:[#allocation2 + $0x108] sm:$0xff] %v414
      %559 = vst [vmem:[#allocation2 + $0x110] sm:$0xff] %v415
      %560 = vst.msk [vmem:[#allocation2 + $0x118] sm:$0xff] %vm64, %v416
      %v561 = vpack.c.bf16 %v493, %v489
      %v562 = vpack.c.bf16 %v494, %v490
      %v563 = vpack.c.bf16 %v495, %v491
      %v564 = vpack.c.bf16 %v496, %v492
      %v565 = vpack.c.bf16 %v501, %v497
      %v566 = vpack.c.bf16 %v502, %v498
      %v567 = vpack.c.bf16 %v503, %v499
      %v568 = vpack.c.bf16 %v504, %v500
      %v569 = vpack.c.bf16 %v509, %v505
      %v570 = vpack.c.bf16 %v510, %v506
      %v571 = vpack.c.bf16 %v511, %v507
      %v572 = vpack.c.bf16 %v512, %v508
      %v573 = vpack.c.bf16 %v517, %v513
      %v574 = vpack.c.bf16 %v518, %v514
      %v575 = vpack.c.bf16 %v519, %v515
      %v576 = vpack.c.bf16 %v520, %v516
      %v577 = vpack.c.bf16 %v521, %v521
      %v578 = vpack.c.bf16 %v522, %v522
      %v579 = vpack.c.bf16 %v523, %v523
      %v580 = vpack.c.bf16 %v524, %v524
      %v581 = vld [vmem:[%s2] sm:$0xf]
      %v582 = vld [vmem:[%s2 + $0x4] sm:$0xf]
      %v583 = vld [vmem:[%s2 + $0x8] sm:$0xf]
      %v584 = vld [vmem:[%s2 + $0xc] sm:$0xf]
      %v585 = vld [vmem:[%s2 + $0x10] sm:$0xf]
      %v586 = vld [vmem:[%s2 + $0x14] sm:$0xf]
      %v587 = vld [vmem:[%s2 + $0x18] sm:$0xf]
      %v588 = vld [vmem:[%s2 + $0x1c] sm:$0xf]
      %v589 = vld [vmem:[%s2 + $0x20] sm:$0xf]
      %v590 = vld [vmem:[%s2 + $0x24] sm:$0xf]
      %v591 = vld [vmem:[%s2 + $0x28] sm:$0xf]
      %v592 = vld [vmem:[%s2 + $0x2c] sm:$0xf]
      %v593 = vld [vmem:[%s2 + $0x30] sm:$0xf]
      %v594 = vld [vmem:[%s2 + $0x34] sm:$0xf]
      %v595 = vld [vmem:[%s2 + $0x38] sm:$0xf]
      %v596 = vld [vmem:[%s2 + $0x3c] sm:$0xf]
      %v597 = vld [vmem:[%s2 + $0x40] sm:$0xf]
      %v598 = vld [vmem:[%s2 + $0x44] sm:$0xf]
      %v599 = vld [vmem:[%s2 + $0x48] sm:$0xf]
      %v600 = vld [vmem:[%s2 + $0x4c] sm:$0xf]
      %v601 = vld [vmem:[%s2 + $0x50] sm:$0xf]
      %v602 = vld [vmem:[%s2 + $0x54] sm:$0xf]
      %v603 = vld [vmem:[%s2 + $0x58] sm:$0xf]
      %v604 = vld [vmem:[%s2 + $0x5c] sm:$0xf]
      %v605 = vld [vmem:[%s2 + $0x60] sm:$0xf]
      %v606 = vld [vmem:[%s2 + $0x64] sm:$0xf]
      %v607 = vld [vmem:[%s2 + $0x68] sm:$0xf]
      %v608 = vld [vmem:[%s2 + $0x6c] sm:$0xf]
      %v609 = vld [vmem:[%s2 + $0x70] sm:$0xf]
      %v610 = vld [vmem:[%s2 + $0x74] sm:$0xf]
      %v611 = vld [vmem:[%s2 + $0x78] sm:$0xf]
      %v612 = vld [vmem:[%s2 + $0x7c] sm:$0xf]
      %v613 = vld [vmem:[%s2 + $0x80] sm:$0xf]
      %v614 = vld [vmem:[%s2 + $0x84] sm:$0xf]
      %v615 = vld [vmem:[%s2 + $0x88] sm:$0xf]
      %v616 = vld [vmem:[%s2 + $0x8c] sm:$0xf]
      %v617 = vld [vmem:[%s2 + $0x90] sm:$0xf]
      %v618 = vld [vmem:[%s2 + $0x94] sm:$0xf]
      %v619 = vld [vmem:[%s2 + $0x98] sm:$0xf]
      %v620 = vld [vmem:[%s2 + $0x9c] sm:$0xf]
      %v621 = vld [vmem:[%s2 + $0xa0] sm:$0xf]
      %v622 = vld [vmem:[%s2 + $0xa4] sm:$0xf]
      %v623 = vld [vmem:[%s2 + $0xa8] sm:$0xf]
      %v624 = vld [vmem:[%s2 + $0xac] sm:$0xf]
      %v625 = vld [vmem:[%s2 + $0xb0] sm:$0xf]
      %v626 = vld [vmem:[%s2 + $0xb4] sm:$0xf]
      %v627 = vld [vmem:[%s2 + $0xb8] sm:$0xf]
      %v628 = vld [vmem:[%s2 + $0xbc] sm:$0xf]
      %v629 = vld [vmem:[%s2 + $0xc0] sm:$0xf]
      %v630 = vld [vmem:[%s2 + $0xc4] sm:$0xf]
      %v681 = vunpack.c.l.b16 %v581
      %v682 = vunpack.c.l.b16 %v582
      %v683 = vunpack.c.l.b16 %v583
      %v684 = vunpack.c.l.b16 %v584
      %v685 = vunpack.c.l.b16 %v585
      %v686 = vunpack.c.l.b16 %v586
      %v687 = vunpack.c.l.b16 %v587
      %v688 = vunpack.c.l.b16 %v588
      %v689 = vunpack.c.l.b16 %v589
      %v690 = vunpack.c.l.b16 %v590
      %v691 = vunpack.c.l.b16 %v591
      %v692 = vunpack.c.l.b16 %v592
      %v693 = vunpack.c.l.b16 %v593
      %v694 = vunpack.c.l.b16 %v594
      %v695 = vunpack.c.l.b16 %v595
      %v696 = vunpack.c.l.b16 %v596
      %v697 = vunpack.c.l.b16 %v597
      %v698 = vunpack.c.l.b16 %v598
      %v699 = vunpack.c.l.b16 %v599
      %v700 = vunpack.c.l.b16 %v600
      %v701 = vunpack.c.l.b16 %v601
      %v702 = vunpack.c.l.b16 %v602
      %v703 = vunpack.c.l.b16 %v603
      %v704 = vunpack.c.l.b16 %v604
      %v705 = vunpack.c.l.b16 %v605
      %v706 = vunpack.c.l.b16 %v606
      %v707 = vunpack.c.l.b16 %v607
      %v708 = vunpack.c.l.b16 %v608
      %v709 = vunpack.c.l.b16 %v609
      %v710 = vunpack.c.l.b16 %v610
      %v711 = vunpack.c.l.b16 %v611
      %v712 = vunpack.c.l.b16 %v612
      %v713 = vunpack.c.l.b16 %v613
      %v714 = vunpack.c.l.b16 %v614
      %v715 = vunpack.c.l.b16 %v615
      %v716 = vunpack.c.l.b16 %v616
      %v717 = vunpack.c.l.b16 %v617
      %v718 = vunpack.c.l.b16 %v618
      %v719 = vunpack.c.l.b16 %v619
      %v720 = vunpack.c.l.b16 %v620
      %v721 = vunpack.c.l.b16 %v621
      %v722 = vunpack.c.l.b16 %v622
      %v723 = vunpack.c.l.b16 %v623
      %v724 = vunpack.c.l.b16 %v624
      %v725 = vunpack.c.l.b16 %v625
      %v726 = vunpack.c.l.b16 %v626
      %v727 = vunpack.c.l.b16 %v627
      %v728 = vunpack.c.l.b16 %v628
      %v729 = vunpack.c.l.b16 %v629
      %v730 = vunpack.c.l.b16 %v630
      %v731 = vpack.c.b16 %v682, %v681
      %v732 = vpack.c.b16 %v684, %v683
      %v733 = vpack.c.b16 %v686, %v685
      %v734 = vpack.c.b16 %v688, %v687
      %v735 = vpack.c.b16 %v690, %v689
      %v736 = vpack.c.b16 %v692, %v691
      %v737 = vpack.c.b16 %v694, %v693
      %v738 = vpack.c.b16 %v696, %v695
      %v739 = vpack.c.b16 %v698, %v697
      %v740 = vpack.c.b16 %v700, %v699
      %v741 = vpack.c.b16 %v702, %v701
      %v742 = vpack.c.b16 %v704, %v703
      %v743 = vpack.c.b16 %v706, %v705
      %v744 = vpack.c.b16 %v708, %v707
      %v745 = vpack.c.b16 %v710, %v709
      %v746 = vpack.c.b16 %v712, %v711
      %v747 = vpack.c.b16 %v714, %v713
      %v748 = vpack.c.b16 %v716, %v715
      %v749 = vpack.c.b16 %v718, %v717
      %v750 = vpack.c.b16 %v720, %v719
      %v751 = vpack.c.b16 %v722, %v721
      %v752 = vpack.c.b16 %v724, %v723
      %v753 = vpack.c.b16 %v726, %v725
      %v754 = vpack.c.b16 %v728, %v727
      %v755 = vpack.c.b16 %v730, %v729
      %v782 = vsel %vm64, %v564, 0
      %v785 = vsel %vm64, %v568, 0
      %v788 = vsel %vm64, %v572, 0
      %v791 = vsel %vm64, %v576, 0
      %v794 = vsel %vm64, %v580, 0
      %796 = vmatprep.subr.bf16.mxu0 0
      %797 = vmatpush1.bf16.msra.mxu0 %v738
      %798 = vmatprep.subr.bf16.mxu0 0
      %799 = vmatpush1.bf16.msra.mxu0 %v737
      %800 = vmatprep.subr.bf16.mxu0 0
      %801 = vmatpush1.bf16.msra.mxu0 %v736
      %802 = vmatprep.subr.bf16.mxu0 0
      %803 = vmatpush1.bf16.msra.mxu0 %v735
      %804 = vmatprep.subr.bf16.mxu0 0
      %805 = vmatpush1.bf16.msra.mxu0 %v734
      %806 = vmatprep.subr.bf16.mxu0 0
      %807 = vmatpush1.bf16.msra.mxu0 %v733
      %808 = vmatprep.subr.bf16.mxu0 0
      %809 = vmatpush1.bf16.msra.mxu0 %v732
      %810 = vmatprep.subr.bf16.mxu0 0
      %811 = vmatpush1.bf16.msra.mxu0 %v731
      %812 = vmatprep.subr.bf16.mxu0 0
      %813 = vmatpush2.bf16.msra.mxu0 %v746
      %814 = vmatprep.subr.bf16.mxu0 0
      %815 = vmatpush2.bf16.msra.mxu0 %v745
      %816 = vmatprep.subr.bf16.mxu0 0
      %817 = vmatpush2.bf16.msra.mxu0 %v744
      %818 = vmatprep.subr.bf16.mxu0 0
      %819 = vmatpush2.bf16.msra.mxu0 %v743
      %820 = vmatprep.subr.bf16.mxu0 0
      %821 = vmatpush2.bf16.msra.mxu0 %v742
      %822 = vmatprep.subr.bf16.mxu0 0
      %823 = vmatpush2.bf16.msra.mxu0 %v741
      %824 = vmatprep.subr.bf16.mxu0 0
      %825 = vmatpush2.bf16.msra.mxu0 %v740
      %826 = vmatprep.subr.bf16.mxu0 0
      %827 = vmatpush2.bf16.msra.mxu0 %v739
      %828 = vmatprep.mubr.bf16.mxu0 %v562
      %829 = vmatmul.mubr.bf16.gmra.mxu0 %v561
      %v830 = vpop.f32.mrf.mxu0
      %v831 = vadd.f32 0.0, %v830
      %v832 = vpop.f32.mrf.mxu0
      %v833 = vpop.f32.mrf.mxu0
      %v834 = vadd.f32 0.0, %v833
      %v835 = vpop.f32.mrf.mxu0
      %836 = vmatprep.mubr.bf16.mxu0 %v566
      %837 = vmatmul.mubr.bf16.gmra.mxu0 %v565
      %v838 = vpop.f32.mrf.mxu0
      %v839 = vadd.f32 0.0, %v838
      %v840 = vpop.f32.mrf.mxu0
      %v841 = vpop.f32.mrf.mxu0
      %v842 = vadd.f32 0.0, %v841
      %v843 = vpop.f32.mrf.mxu0
      %844 = vmatprep.mubr.bf16.mxu0 %v570
      %845 = vmatmul.mubr.bf16.gmra.mxu0 %v569
      %v846 = vpop.f32.mrf.mxu0
      %v847 = vadd.f32 0.0, %v846
      %v848 = vpop.f32.mrf.mxu0
      %v849 = vpop.f32.mrf.mxu0
      %v850 = vadd.f32 0.0, %v849
      %v851 = vpop.f32.mrf.mxu0
      %852 = vmatprep.mubr.bf16.mxu0 %v574
      %853 = vmatmul.mubr.bf16.gmra.mxu0 %v573
      %v854 = vpop.f32.mrf.mxu0
      %v855 = vadd.f32 0.0, %v854
      %v856 = vpop.f32.mrf.mxu0
      %v857 = vpop.f32.mrf.mxu0
      %v858 = vadd.f32 0.0, %v857
      %v859 = vpop.f32.mrf.mxu0
      %860 = vmatprep.mubr.bf16.mxu0 %v578
      %861 = vmatmul.mubr.bf16.gmra.mxu0 %v577
      %v862 = vpop.f32.mrf.mxu0
      %v863 = vadd.f32 0.0, %v862
      %v864 = vpop.f32.mrf.mxu0
      %v865 = vpop.f32.mrf.mxu0
      %v866 = vpop.f32.mrf.mxu0
      %867 = vdwg.mxu0
      %868 = vmatprep.subr.bf16.mxu0 0
      %869 = vmatpush1.bf16.msra.mxu0 %v754
      %870 = vmatprep.subr.bf16.mxu0 0
      %871 = vmatpush1.bf16.msra.mxu0 %v753
      %872 = vmatprep.subr.bf16.mxu0 0
      %873 = vmatpush1.bf16.msra.mxu0 %v752
      %874 = vmatprep.subr.bf16.mxu0 0
      %875 = vmatpush1.bf16.msra.mxu0 %v751
      %876 = vmatprep.subr.bf16.mxu0 0
      %877 = vmatpush1.bf16.msra.mxu0 %v750
      %878 = vmatprep.subr.bf16.mxu0 0
      %879 = vmatpush1.bf16.msra.mxu0 %v749
      %880 = vmatprep.subr.bf16.mxu0 0
      %881 = vmatpush1.bf16.msra.mxu0 %v748
      %882 = vmatprep.subr.bf16.mxu0 0
      %883 = vmatpush1.bf16.msra.mxu0 %v747
      %884 = vmatprep.subr.bf16.mxu0 0
      %885 = vmatpush2.bf16.msra.mxu0 0
      %886 = vmatprep.subr.bf16.mxu0 0
      %887 = vmatpush2.bf16.msra.mxu0 0
      %888 = vmatprep.subr.bf16.mxu0 0
      %889 = vmatpush2.bf16.msra.mxu0 0
      %890 = vmatprep.subr.bf16.mxu0 0
      %891 = vmatpush2.bf16.msra.mxu0 0
      %892 = vmatprep.subr.bf16.mxu0 0
      %893 = vmatpush2.bf16.msra.mxu0 0
      %894 = vmatprep.subr.bf16.mxu0 0
      %895 = vmatpush2.bf16.msra.mxu0 0
      %896 = vmatprep.subr.bf16.mxu0 0
      %897 = vmatpush2.bf16.msra.mxu0 0
      %898 = vmatprep.subr.bf16.mxu0 0
      %899 = vmatpush2.bf16.msra.mxu0 %v755
      %900 = vmatprep.mubr.bf16.mxu0 %v782
      %901 = vmatmul.mubr.bf16.gmra.mxu0 %v563
      %v902 = vpop.f32.mrf.mxu0
      %v903 = vadd.f32 %v831, %v902
      %v904 = vpop.f32.mrf.mxu0
      %v905 = vpop.f32.mrf.mxu0
      %v906 = vadd.f32 %v834, %v905
      %v907 = vpop.f32.mrf.mxu0
      %908 = vmatprep.mubr.bf16.mxu0 %v785
      %909 = vmatmul.mubr.bf16.gmra.mxu0 %v567
      %v910 = vpop.f32.mrf.mxu0
      %v911 = vadd.f32 %v839, %v910
      %v912 = vpop.f32.mrf.mxu0
      %v913 = vpop.f32.mrf.mxu0
      %v914 = vadd.f32 %v842, %v913
      %v915 = vpop.f32.mrf.mxu0
      %916 = vmatprep.mubr.bf16.mxu0 %v788
      %917 = vmatmul.mubr.bf16.gmra.mxu0 %v571
      %v918 = vpop.f32.mrf.mxu0
      %v919 = vadd.f32 %v847, %v918
      %v920 = vpop.f32.mrf.mxu0
      %v921 = vpop.f32.mrf.mxu0
      %v922 = vadd.f32 %v850, %v921
      %v923 = vpop.f32.mrf.mxu0
      %924 = vmatprep.mubr.bf16.mxu0 %v791
      %925 = vmatmul.mubr.bf16.gmra.mxu0 %v575
      %v926 = vpop.f32.mrf.mxu0
      %v927 = vadd.f32 %v855, %v926
      %v928 = vpop.f32.mrf.mxu0
      %v929 = vpop.f32.mrf.mxu0
      %v930 = vadd.f32 %v858, %v929
      %v931 = vpop.f32.mrf.mxu0
      %932 = vmatprep.mubr.bf16.mxu0 %v794
      %933 = vmatmul.mubr.bf16.gmra.mxu0 %v579
      %v934 = vpop.f32.mrf.mxu0
      %v935 = vadd.f32 %v863, %v934
      %v936 = vpop.f32.mrf.mxu0
      %v937 = vpop.f32.mrf.mxu0
      %v938 = vpop.f32.mrf.mxu0
      %939 = vdwg.mxu0
      %vm940 = vcmp.lt.f32.partialorder %v903, 9.0
      %vm941 = vcmp.lt.f32.partialorder %v906, 9.0
      %vm942 = vcmp.lt.f32.partialorder %v911, 9.0
      %vm943 = vcmp.lt.f32.partialorder %v914, 9.0
      %vm944 = vcmp.lt.f32.partialorder %v919, 9.0
      %vm945 = vcmp.lt.f32.partialorder %v922, 9.0
      %vm946 = vcmp.lt.f32.partialorder %v927, 9.0
      %vm947 = vcmp.lt.f32.partialorder %v930, 9.0
      %vm948 = vcmp.lt.f32.partialorder %v935, 9.0
      %v949 = vsel %vm940, 1, 0
      %v950 = vsel %vm941, 1, 0
      %v951 = vsel %vm942, 1, 0
      %v952 = vsel %vm943, 1, 0
      %v953 = vsel %vm944, 1, 0
      %v954 = vsel %vm945, 1, 0
      %v955 = vsel %vm946, 1, 0
      %v956 = vsel %vm947, 1, 0
      %v957 = vsel %vm948, 1, 0
      %v958 = vcvt.s32.f32 %v949
      %v959 = vcvt.s32.f32 %v950
      %v960 = vcvt.s32.f32 %v951
      %v961 = vcvt.s32.f32 %v952
      %v962 = vcvt.s32.f32 %v953
      %v963 = vcvt.s32.f32 %v954
      %v964 = vcvt.s32.f32 %v955
      %v965 = vcvt.s32.f32 %v956
      %v966 = vcvt.s32.f32 %v957
      %v967 = vpack.c.bf16 %v959, %v958
      %v968 = vpack.c.bf16 %v961, %v960
      %v969 = vpack.c.bf16 %v963, %v962
      %v970 = vpack.c.bf16 %v965, %v964
      %v971 = vpack.c.bf16 %v966, %v966
      %v972 = vld [vmem:[%s3] sm:$0xff]
      %v973 = vld [vmem:[%s3 + $0x8] sm:$0xff]
      %v974 = vld [vmem:[%s3 + $0x10] sm:$0xff]
      %v975 = vld [vmem:[%s3 + $0x18] sm:$0xff]
      %v976 = vld [vmem:[%s3 + $0x20] sm:$0xff]
      %v977 = vld [vmem:[%s3 + $0x28] sm:$0xff]
      %v978 = vld [vmem:[%s3 + $0x30] sm:$0x11]
      %v979 = vld [vmem:[%s3 + $0x38] sm:$0x11]
      %v988 = vunpack.c.l.b16 %v972
      %v989 = vunpack.c.h.b16 %v972
      %v990 = vunpack.c.l.b16 %v973
      %v991 = vunpack.c.h.b16 %v973
      %v992 = vunpack.c.l.b16 %v974
      %v993 = vunpack.c.h.b16 %v974
      %v994 = vunpack.c.l.b16 %v975
      %v995 = vunpack.c.h.b16 %v975
      %v996 = vunpack.c.l.b16 %v976
      %v997 = vunpack.c.h.b16 %v976
      %v998 = vunpack.c.l.b16 %v977
      %v999 = vunpack.c.h.b16 %v977
      %v1000 = vunpack.c.l.b16 %v978
      %v1001 = vunpack.c.h.b16 %v978
      %v1002 = vunpack.c.l.b16 %v979
      %v1003 = vunpack.c.h.b16 %v979
      %v1004 = vpack.c.b16 %v992, %v988
      %v1005 = vpack.c.b16 %v993, %v989
      %v1006 = vpack.c.b16 %v994, %v990
      %v1007 = vpack.c.b16 %v995, %v991
      %v1008 = vpack.c.b16 %v1000, %v996
      %v1009 = vpack.c.b16 %v1001, %v997
      %v1010 = vpack.c.b16 %v1002, %v998
      %v1011 = vpack.c.b16 %v1003, %v999
      %vm1016 = vcmask 203776
      %v1018 = vsel %vm1016, %v967, 0
      %v1021 = vsel %vm1016, %v968, 0
      %v1024 = vsel %vm1016, %v969, 0
      %v1027 = vsel %vm1016, %v970, 0
      %v1030 = vsel %vm1016, %v971, 0
      %vm1032 = vcmask 1043456
      %vm1033 = vcmask 1044480
      %v1034 = vsel %vm1032, 4294967295, 65535
      %v1035 = vsel %vm1033, %v1034, 0
      %v1037 = vand.u32 %v1008, %v1035
      %v1040 = vand.u32 %v1009, %v1035
      %v1043 = vand.u32 %v1010, %v1035
      %v1046 = vand.u32 %v1011, %v1035
      %1048 = vmatprep.subr.bf16.mxu0 0
      %1049 = vmatpush1.bf16.msra.mxu0 0
      %1050 = vmatprep.subr.bf16.mxu0 0
      %1051 = vmatpush1.bf16.msra.mxu0 0
      %1052 = vmatprep.subr.bf16.mxu0 0
      %1053 = vmatpush1.bf16.msra.mxu0 0
      %1054 = vmatprep.subr.bf16.mxu0 0
      %1055 = vmatpush1.bf16.msra.mxu0 0
      %1056 = vmatprep.subr.bf16.mxu0 0
      %1057 = vmatpush1.bf16.msra.mxu0 0
      %1058 = vmatprep.subr.bf16.mxu0 0
      %1059 = vmatpush1.bf16.msra.mxu0 0
      %1060 = vmatprep.subr.bf16.mxu0 %v1040
      %1061 = vmatpush1.bf16.msra.mxu0 %v1037
      %1062 = vmatprep.subr.bf16.mxu0 %v1005
      %1063 = vmatpush1.bf16.msra.mxu0 %v1004
      %1064 = vmatprep.subr.bf16.mxu0 0
      %1065 = vmatpush2.bf16.msra.mxu0 0
      %1066 = vmatprep.subr.bf16.mxu0 0
      %1067 = vmatpush2.bf16.msra.mxu0 0
      %1068 = vmatprep.subr.bf16.mxu0 0
      %1069 = vmatpush2.bf16.msra.mxu0 0
      %1070 = vmatprep.subr.bf16.mxu0 0
      %1071 = vmatpush2.bf16.msra.mxu0 0
      %1072 = vmatprep.subr.bf16.mxu0 0
      %1073 = vmatpush2.bf16.msra.mxu0 0
      %1074 = vmatprep.subr.bf16.mxu0 0
      %1075 = vmatpush2.bf16.msra.mxu0 0
      %1076 = vmatprep.subr.bf16.mxu0 0
      %1077 = vmatpush2.bf16.msra.mxu0 0
      %1078 = vmatprep.subr.bf16.mxu0 0
      %1079 = vmatpush2.bf16.msra.mxu0 0
      %1080 = vmatprep.mubr.bf16.mxu0 0
      %1081 = vmatmul.mubr.bf16.gmra.mxu0 %v1018
      %v1082 = vpop.f32.mrf.mxu0
      %v1083 = vadd.f32 0.0, %v1082
      %v1084 = vpop.f32.mrf.mxu0
      %v1085 = vadd.f32 0.0, %v1084
      %v1086 = vpop.f32.mrf.mxu0
      %v1087 = vadd.f32 0.0, %v1086
      %v1088 = vpop.f32.mrf.mxu0
      %v1089 = vadd.f32 0.0, %v1088
      %1090 = vmatprep.mubr.bf16.mxu0 0
      %1091 = vmatmul.mubr.bf16.gmra.mxu0 %v1021
      %v1092 = vpop.f32.mrf.mxu0
      %v1093 = vadd.f32 0.0, %v1092
      %v1094 = vpop.f32.mrf.mxu0
      %v1095 = vadd.f32 0.0, %v1094
      %v1096 = vpop.f32.mrf.mxu0
      %v1097 = vadd.f32 0.0, %v1096
      %v1098 = vpop.f32.mrf.mxu0
      %v1099 = vadd.f32 0.0, %v1098
      %1100 = vmatprep.mubr.bf16.mxu0 0
      %1101 = vmatmul.mubr.bf16.gmra.mxu0 %v1024
      %v1102 = vpop.f32.mrf.mxu0
      %v1103 = vadd.f32 0.0, %v1102
      %v1104 = vpop.f32.mrf.mxu0
      %v1105 = vadd.f32 0.0, %v1104
      %v1106 = vpop.f32.mrf.mxu0
      %v1107 = vadd.f32 0.0, %v1106
      %v1108 = vpop.f32.mrf.mxu0
      %v1109 = vadd.f32 0.0, %v1108
      %1110 = vmatprep.mubr.bf16.mxu0 0
      %1111 = vmatmul.mubr.bf16.gmra.mxu0 %v1027
      %v1112 = vpop.f32.mrf.mxu0
      %v1113 = vadd.f32 0.0, %v1112
      %v1114 = vpop.f32.mrf.mxu0
      %v1115 = vadd.f32 0.0, %v1114
      %v1116 = vpop.f32.mrf.mxu0
      %v1117 = vadd.f32 0.0, %v1116
      %v1118 = vpop.f32.mrf.mxu0
      %v1119 = vadd.f32 0.0, %v1118
      %1120 = vmatprep.mubr.bf16.mxu0 0
      %1121 = vmatmul.mubr.bf16.gmra.mxu0 %v1030
      %v1122 = vpop.f32.mrf.mxu0
      %v1123 = vadd.f32 0.0, %v1122
      %v1124 = vpop.f32.mrf.mxu0
      %v1125 = vadd.f32 0.0, %v1124
      %v1126 = vpop.f32.mrf.mxu0
      %v1127 = vpop.f32.mrf.mxu0
      %1128 = vdwg.mxu0
      %1129 = vmatprep.subr.bf16.mxu0 0
      %1130 = vmatpush1.bf16.msra.mxu0 0
      %1131 = vmatprep.subr.bf16.mxu0 0
      %1132 = vmatpush1.bf16.msra.mxu0 0
      %1133 = vmatprep.subr.bf16.mxu0 0
      %1134 = vmatpush1.bf16.msra.mxu0 0
      %1135 = vmatprep.subr.bf16.mxu0 0
      %1136 = vmatpush1.bf16.msra.mxu0 0
      %1137 = vmatprep.subr.bf16.mxu0 0
      %1138 = vmatpush1.bf16.msra.mxu0 0
      %1139 = vmatprep.subr.bf16.mxu0 0
      %1140 = vmatpush1.bf16.msra.mxu0 0
      %1141 = vmatprep.subr.bf16.mxu0 %v1046
      %1142 = vmatpush1.bf16.msra.mxu0 %v1043
      %1143 = vmatprep.subr.bf16.mxu0 %v1007
      %1144 = vmatpush1.bf16.msra.mxu0 %v1006
      %1145 = vmatprep.subr.bf16.mxu0 0
      %1146 = vmatpush2.bf16.msra.mxu0 0
      %1147 = vmatprep.subr.bf16.mxu0 0
      %1148 = vmatpush2.bf16.msra.mxu0 0
      %1149 = vmatprep.subr.bf16.mxu0 0
      %1150 = vmatpush2.bf16.msra.mxu0 0
      %1151 = vmatprep.subr.bf16.mxu0 0
      %1152 = vmatpush2.bf16.msra.mxu0 0
      %1153 = vmatprep.subr.bf16.mxu0 0
      %1154 = vmatpush2.bf16.msra.mxu0 0
      %1155 = vmatprep.subr.bf16.mxu0 0
      %1156 = vmatpush2.bf16.msra.mxu0 0
      %1157 = vmatprep.subr.bf16.mxu0 0
      %1158 = vmatpush2.bf16.msra.mxu0 0
      %1159 = vmatprep.subr.bf16.mxu0 0
      %1160 = vmatpush2.bf16.msra.mxu0 0
      %1161 = vmatprep.mubr.bf16.mxu0 0
      %1162 = vmatmul.mubr.bf16.gmra.mxu0 %v1018
      %v1163 = vpop.f32.mrf.mxu0
      %v1164 = vadd.f32 0.0, %v1163
      %v1165 = vpop.f32.mrf.mxu0
      %v1166 = vadd.f32 0.0, %v1165
      %v1167 = vpop.f32.mrf.mxu0
      %v1168 = vadd.f32 0.0, %v1167
      %v1169 = vpop.f32.mrf.mxu0
      %v1170 = vadd.f32 0.0, %v1169
      %1171 = vmatprep.mubr.bf16.mxu0 0
      %1172 = vmatmul.mubr.bf16.gmra.mxu0 %v1021
      %v1173 = vpop.f32.mrf.mxu0
      %v1174 = vadd.f32 0.0, %v1173
      %v1175 = vpop.f32.mrf.mxu0
      %v1176 = vadd.f32 0.0, %v1175
      %v1177 = vpop.f32.mrf.mxu0
      %v1178 = vadd.f32 0.0, %v1177
      %v1179 = vpop.f32.mrf.mxu0
      %v1180 = vadd.f32 0.0, %v1179
      %1181 = vmatprep.mubr.bf16.mxu0 0
      %1182 = vmatmul.mubr.bf16.gmra.mxu0 %v1024
      %v1183 = vpop.f32.mrf.mxu0
      %v1184 = vadd.f32 0.0, %v1183
      %v1185 = vpop.f32.mrf.mxu0
      %v1186 = vadd.f32 0.0, %v1185
      %v1187 = vpop.f32.mrf.mxu0
      %v1188 = vadd.f32 0.0, %v1187
      %v1189 = vpop.f32.mrf.mxu0
      %v1190 = vadd.f32 0.0, %v1189
      %1191 = vmatprep.mubr.bf16.mxu0 0
      %1192 = vmatmul.mubr.bf16.gmra.mxu0 %v1027
      %v1193 = vpop.f32.mrf.mxu0
      %v1194 = vadd.f32 0.0, %v1193
      %v1195 = vpop.f32.mrf.mxu0
      %v1196 = vadd.f32 0.0, %v1195
      %v1197 = vpop.f32.mrf.mxu0
      %v1198 = vadd.f32 0.0, %v1197
      %v1199 = vpop.f32.mrf.mxu0
      %v1200 = vadd.f32 0.0, %v1199
      %1201 = vmatprep.mubr.bf16.mxu0 0
      %1202 = vmatmul.mubr.bf16.gmra.mxu0 %v1030
      %v1203 = vpop.f32.mrf.mxu0
      %v1204 = vadd.f32 0.0, %v1203
      %v1205 = vpop.f32.mrf.mxu0
      %v1206 = vadd.f32 0.0, %v1205
      %v1207 = vpop.f32.mrf.mxu0
      %v1208 = vpop.f32.mrf.mxu0
      %1209 = vdwg.mxu0
      %v1210 = vmul.f32 %v489, %v1083
      %v1211 = vmul.f32 %v490, %v1085
      %v1212 = vmul.f32 %v491, %v1164
      %v1213 = vmul.f32 %v492, %v1166
      %v1214 = vmul.f32 %v493, %v1087
      %v1215 = vmul.f32 %v494, %v1089
      %v1216 = vmul.f32 %v495, %v1168
      %v1217 = vmul.f32 %v496, %v1170
      %v1218 = vmul.f32 %v497, %v1093
      %v1219 = vmul.f32 %v498, %v1095
      %v1220 = vmul.f32 %v499, %v1174
      %v1221 = vmul.f32 %v500, %v1176
      %v1222 = vmul.f32 %v501, %v1097
      %v1223 = vmul.f32 %v502, %v1099
      %v1224 = vmul.f32 %v503, %v1178
      %v1225 = vmul.f32 %v504, %v1180
      %v1226 = vmul.f32 %v505, %v1103
      %v1227 = vmul.f32 %v506, %v1105
      %v1228 = vmul.f32 %v507, %v1184
      %v1229 = vmul.f32 %v508, %v1186
      %v1230 = vmul.f32 %v509, %v1107
      %v1231 = vmul.f32 %v510, %v1109
      %v1232 = vmul.f32 %v511, %v1188
      %v1233 = vmul.f32 %v512, %v1190
      %v1234 = vmul.f32 %v513, %v1113
      %v1235 = vmul.f32 %v514, %v1115
      %v1236 = vmul.f32 %v515, %v1194
      %v1237 = vmul.f32 %v516, %v1196
      %v1238 = vmul.f32 %v517, %v1117
      %v1239 = vmul.f32 %v518, %v1119
      %v1240 = vmul.f32 %v519, %v1198
      %v1241 = vmul.f32 %v520, %v1200
      %v1242 = vmul.f32 %v521, %v1123
      %v1243 = vmul.f32 %v522, %v1125
      %v1244 = vmul.f32 %v523, %v1204
      %v1245 = vmul.f32 %v524, %v1206
      %v1246 = vpack.c.bf16 %v1214, %v1210
      %v1247 = vpack.c.bf16 %v1215, %v1211
      %v1248 = vpack.c.bf16 %v1216, %v1212
      %v1249 = vpack.c.bf16 %v1217, %v1213
      %v1250 = vpack.c.bf16 %v1222, %v1218
      %v1251 = vpack.c.bf16 %v1223, %v1219
      %v1252 = vpack.c.bf16 %v1224, %v1220
      %v1253 = vpack.c.bf16 %v1225, %v1221
      %v1254 = vpack.c.bf16 %v1230, %v1226
      %v1255 = vpack.c.bf16 %v1231, %v1227
      %v1256 = vpack.c.bf16 %v1232, %v1228
      %v1257 = vpack.c.bf16 %v1233, %v1229
      %v1258 = vpack.c.bf16 %v1238, %v1234
      %v1259 = vpack.c.bf16 %v1239, %v1235
      %v1260 = vpack.c.bf16 %v1240, %v1236
      %v1261 = vpack.c.bf16 %v1241, %v1237
      %v1262 = vpack.c.bf16 %v1242, %v1242
      %v1263 = vpack.c.bf16 %v1243, %v1243
      %v1264 = vpack.c.bf16 %v1244, %v1244
      %v1265 = vpack.c.bf16 %v1245, %v1245
      %v1266 = vld [vmem:[%s4] sm:$0xf]
      %v1267 = vld [vmem:[%s4 + $0x4] sm:$0xf]
      %v1268 = vld [vmem:[%s4 + $0x8] sm:$0xf]
      %v1269 = vld [vmem:[%s4 + $0xc] sm:$0xf]
      %v1270 = vld [vmem:[%s4 + $0x10] sm:$0xf]
      %v1271 = vld [vmem:[%s4 + $0x14] sm:$0xf]
      %v1272 = vld [vmem:[%s4 + $0x18] sm:$0xf]
      %v1273 = vld [vmem:[%s4 + $0x1c] sm:$0xf]
      %v1274 = vld [vmem:[%s4 + $0x20] sm:$0xf]
      %v1275 = vld [vmem:[%s4 + $0x24] sm:$0xf]
      %v1276 = vld [vmem:[%s4 + $0x28] sm:$0xf]
      %v1277 = vld [vmem:[%s4 + $0x2c] sm:$0xf]
      %v1278 = vld [vmem:[%s4 + $0x30] sm:$0xf]
      %v1279 = vld [vmem:[%s4 + $0x34] sm:$0xf]
      %v1280 = vld [vmem:[%s4 + $0x38] sm:$0xf]
      %v1281 = vld [vmem:[%s4 + $0x3c] sm:$0xf]
      %v1282 = vld [vmem:[%s4 + $0x40] sm:$0xf]
      %v1283 = vld [vmem:[%s4 + $0x44] sm:$0xf]
      %v1284 = vld [vmem:[%s4 + $0x48] sm:$0xf]
      %v1285 = vld [vmem:[%s4 + $0x4c] sm:$0xf]
      %v1286 = vld [vmem:[%s4 + $0x50] sm:$0xf]
      %v1287 = vld [vmem:[%s4 + $0x54] sm:$0xf]
      %v1288 = vld [vmem:[%s4 + $0x58] sm:$0xf]
      %v1289 = vld [vmem:[%s4 + $0x5c] sm:$0xf]
      %v1290 = vld [vmem:[%s4 + $0x60] sm:$0xf]
      %v1291 = vld [vmem:[%s4 + $0x64] sm:$0xf]
      %v1292 = vld [vmem:[%s4 + $0x68] sm:$0xf]
      %v1293 = vld [vmem:[%s4 + $0x6c] sm:$0xf]
      %v1294 = vld [vmem:[%s4 + $0x70] sm:$0xf]
      %v1295 = vld [vmem:[%s4 + $0x74] sm:$0xf]
      %v1296 = vld [vmem:[%s4 + $0x78] sm:$0xf]
      %v1297 = vld [vmem:[%s4 + $0x7c] sm:$0xf]
      %v1298 = vld [vmem:[%s4 + $0x80] sm:$0xf]
      %v1299 = vld [vmem:[%s4 + $0x84] sm:$0xf]
      %v1300 = vld [vmem:[%s4 + $0x88] sm:$0xf]
      %v1301 = vld [vmem:[%s4 + $0x8c] sm:$0xf]
      %v1302 = vld [vmem:[%s4 + $0x90] sm:$0xf]
      %v1303 = vld [vmem:[%s4 + $0x94] sm:$0xf]
      %v1304 = vld [vmem:[%s4 + $0x98] sm:$0xf]
      %v1305 = vld [vmem:[%s4 + $0x9c] sm:$0xf]
      %v1306 = vld [vmem:[%s4 + $0xa0] sm:$0xf]
      %v1307 = vld [vmem:[%s4 + $0xa4] sm:$0xf]
      %v1308 = vld [vmem:[%s4 + $0xa8] sm:$0xf]
      %v1309 = vld [vmem:[%s4 + $0xac] sm:$0xf]
      %v1310 = vld [vmem:[%s4 + $0xb0] sm:$0xf]
      %v1311 = vld [vmem:[%s4 + $0xb4] sm:$0xf]
      %v1312 = vld [vmem:[%s4 + $0xb8] sm:$0xf]
      %v1313 = vld [vmem:[%s4 + $0xbc] sm:$0xf]
      %v1314 = vld [vmem:[%s4 + $0xc0] sm:$0xf]
      %v1315 = vld [vmem:[%s4 + $0xc4] sm:$0xf]
      %v1366 = vunpack.c.l.b16 %v1266
      %v1367 = vunpack.c.l.b16 %v1267
      %v1368 = vunpack.c.l.b16 %v1268
      %v1369 = vunpack.c.l.b16 %v1269
      %v1370 = vunpack.c.l.b16 %v1270
      %v1371 = vunpack.c.l.b16 %v1271
      %v1372 = vunpack.c.l.b16 %v1272
      %v1373 = vunpack.c.l.b16 %v1273
      %v1374 = vunpack.c.l.b16 %v1274
      %v1375 = vunpack.c.l.b16 %v1275
      %v1376 = vunpack.c.l.b16 %v1276
      %v1377 = vunpack.c.l.b16 %v1277
      %v1378 = vunpack.c.l.b16 %v1278
      %v1379 = vunpack.c.l.b16 %v1279
      %v1380 = vunpack.c.l.b16 %v1280
      %v1381 = vunpack.c.l.b16 %v1281
      %v1382 = vunpack.c.l.b16 %v1282
      %v1383 = vunpack.c.l.b16 %v1283
      %v1384 = vunpack.c.l.b16 %v1284
      %v1385 = vunpack.c.l.b16 %v1285
      %v1386 = vunpack.c.l.b16 %v1286
      %v1387 = vunpack.c.l.b16 %v1287
      %v1388 = vunpack.c.l.b16 %v1288
      %v1389 = vunpack.c.l.b16 %v1289
      %v1390 = vunpack.c.l.b16 %v1290
      %v1391 = vunpack.c.l.b16 %v1291
      %v1392 = vunpack.c.l.b16 %v1292
      %v1393 = vunpack.c.l.b16 %v1293
      %v1394 = vunpack.c.l.b16 %v1294
      %v1395 = vunpack.c.l.b16 %v1295
      %v1396 = vunpack.c.l.b16 %v1296
      %v1397 = vunpack.c.l.b16 %v1297
      %v1398 = vunpack.c.l.b16 %v1298
      %v1399 = vunpack.c.l.b16 %v1299
      %v1400 = vunpack.c.l.b16 %v1300
      %v1401 = vunpack.c.l.b16 %v1301
      %v1402 = vunpack.c.l.b16 %v1302
      %v1403 = vunpack.c.l.b16 %v1303
      %v1404 = vunpack.c.l.b16 %v1304
      %v1405 = vunpack.c.l.b16 %v1305
      %v1406 = vunpack.c.l.b16 %v1306
      %v1407 = vunpack.c.l.b16 %v1307
      %v1408 = vunpack.c.l.b16 %v1308
      %v1409 = vunpack.c.l.b16 %v1309
      %v1410 = vunpack.c.l.b16 %v1310
      %v1411 = vunpack.c.l.b16 %v1311
      %v1412 = vunpack.c.l.b16 %v1312
      %v1413 = vunpack.c.l.b16 %v1313
      %v1414 = vunpack.c.l.b16 %v1314
      %v1415 = vunpack.c.l.b16 %v1315
      %v1416 = vpack.c.b16 %v1367, %v1366
      %v1417 = vpack.c.b16 %v1369, %v1368
      %v1418 = vpack.c.b16 %v1371, %v1370
      %v1419 = vpack.c.b16 %v1373, %v1372
      %v1420 = vpack.c.b16 %v1375, %v1374
      %v1421 = vpack.c.b16 %v1377, %v1376
      %v1422 = vpack.c.b16 %v1379, %v1378
      %v1423 = vpack.c.b16 %v1381, %v1380
      %v1424 = vpack.c.b16 %v1383, %v1382
      %v1425 = vpack.c.b16 %v1385, %v1384
      %v1426 = vpack.c.b16 %v1387, %v1386
      %v1427 = vpack.c.b16 %v1389, %v1388
      %v1428 = vpack.c.b16 %v1391, %v1390
      %v1429 = vpack.c.b16 %v1393, %v1392
      %v1430 = vpack.c.b16 %v1395, %v1394
      %v1431 = vpack.c.b16 %v1397, %v1396
      %v1432 = vpack.c.b16 %v1399, %v1398
      %v1433 = vpack.c.b16 %v1401, %v1400
      %v1434 = vpack.c.b16 %v1403, %v1402
      %v1435 = vpack.c.b16 %v1405, %v1404
      %v1436 = vpack.c.b16 %v1407, %v1406
      %v1437 = vpack.c.b16 %v1409, %v1408
      %v1438 = vpack.c.b16 %v1411, %v1410
      %v1439 = vpack.c.b16 %v1413, %v1412
      %v1440 = vpack.c.b16 %v1415, %v1414
      %v1467 = vsel %vm64, %v1249, 0
      %v1470 = vsel %vm64, %v1253, 0
      %v1473 = vsel %vm64, %v1257, 0
      %v1476 = vsel %vm64, %v1261, 0
      %v1479 = vsel %vm64, %v1265, 0
      %1481 = vmatprep.subr.bf16.mxu0 0
      %1482 = vmatpush1.bf16.msra.mxu0 %v1423
      %1483 = vmatprep.subr.bf16.mxu0 0
      %1484 = vmatpush1.bf16.msra.mxu0 %v1422
      %1485 = vmatprep.subr.bf16.mxu0 0
      %1486 = vmatpush1.bf16.msra.mxu0 %v1421
      %1487 = vmatprep.subr.bf16.mxu0 0
      %1488 = vmatpush1.bf16.msra.mxu0 %v1420
      %1489 = vmatprep.subr.bf16.mxu0 0
      %1490 = vmatpush1.bf16.msra.mxu0 %v1419
      %1491 = vmatprep.subr.bf16.mxu0 0
      %1492 = vmatpush1.bf16.msra.mxu0 %v1418
      %1493 = vmatprep.subr.bf16.mxu0 0
      %1494 = vmatpush1.bf16.msra.mxu0 %v1417
      %1495 = vmatprep.subr.bf16.mxu0 0
      %1496 = vmatpush1.bf16.msra.mxu0 %v1416
      %1497 = vmatprep.subr.bf16.mxu0 0
      %1498 = vmatpush2.bf16.msra.mxu0 %v1431
      %1499 = vmatprep.subr.bf16.mxu0 0
      %1500 = vmatpush2.bf16.msra.mxu0 %v1430
      %1501 = vmatprep.subr.bf16.mxu0 0
      %1502 = vmatpush2.bf16.msra.mxu0 %v1429
      %1503 = vmatprep.subr.bf16.mxu0 0
      %1504 = vmatpush2.bf16.msra.mxu0 %v1428
      %1505 = vmatprep.subr.bf16.mxu0 0
      %1506 = vmatpush2.bf16.msra.mxu0 %v1427
      %1507 = vmatprep.subr.bf16.mxu0 0
      %1508 = vmatpush2.bf16.msra.mxu0 %v1426
      %1509 = vmatprep.subr.bf16.mxu0 0
      %1510 = vmatpush2.bf16.msra.mxu0 %v1425
      %1511 = vmatprep.subr.bf16.mxu0 0
      %1512 = vmatpush2.bf16.msra.mxu0 %v1424
      %1513 = vmatprep.mubr.bf16.mxu0 %v1247
      %1514 = vmatmul.mubr.bf16.gmra.mxu0 %v1246
      %v1515 = vpop.f32.mrf.mxu0
      %v1516 = vadd.f32 0.0, %v1515
      %v1517 = vpop.f32.mrf.mxu0
      %v1518 = vpop.f32.mrf.mxu0
      %v1519 = vadd.f32 0.0, %v1518
      %v1520 = vpop.f32.mrf.mxu0
      %1521 = vmatprep.mubr.bf16.mxu0 %v1251
      %1522 = vmatmul.mubr.bf16.gmra.mxu0 %v1250
      %v1523 = vpop.f32.mrf.mxu0
      %v1524 = vadd.f32 0.0, %v1523
      %v1525 = vpop.f32.mrf.mxu0
      %v1526 = vpop.f32.mrf.mxu0
      %v1527 = vadd.f32 0.0, %v1526
      %v1528 = vpop.f32.mrf.mxu0
      %1529 = vmatprep.mubr.bf16.mxu0 %v1255
      %1530 = vmatmul.mubr.bf16.gmra.mxu0 %v1254
      %v1531 = vpop.f32.mrf.mxu0
      %v1532 = vadd.f32 0.0, %v1531
      %v1533 = vpop.f32.mrf.mxu0
      %v1534 = vpop.f32.mrf.mxu0
      %v1535 = vadd.f32 0.0, %v1534
      %v1536 = vpop.f32.mrf.mxu0
      %1537 = vmatprep.mubr.bf16.mxu0 %v1259
      %1538 = vmatmul.mubr.bf16.gmra.mxu0 %v1258
      %v1539 = vpop.f32.mrf.mxu0
      %v1540 = vadd.f32 0.0, %v1539
      %v1541 = vpop.f32.mrf.mxu0
      %v1542 = vpop.f32.mrf.mxu0
      %v1543 = vadd.f32 0.0, %v1542
      %v1544 = vpop.f32.mrf.mxu0
      %1545 = vmatprep.mubr.bf16.mxu0 %v1263
      %1546 = vmatmul.mubr.bf16.gmra.mxu0 %v1262
      %v1547 = vpop.f32.mrf.mxu0
      %v1548 = vadd.f32 0.0, %v1547
      %v1549 = vpop.f32.mrf.mxu0
      %v1550 = vpop.f32.mrf.mxu0
      %v1551 = vpop.f32.mrf.mxu0
      %1552 = vdwg.mxu0
      %1553 = vmatprep.subr.bf16.mxu0 0
      %1554 = vmatpush1.bf16.msra.mxu0 %v1439
      %1555 = vmatprep.subr.bf16.mxu0 0
      %1556 = vmatpush1.bf16.msra.mxu0 %v1438
      %1557 = vmatprep.subr.bf16.mxu0 0
      %1558 = vmatpush1.bf16.msra.mxu0 %v1437
      %1559 = vmatprep.subr.bf16.mxu0 0
      %1560 = vmatpush1.bf16.msra.mxu0 %v1436
      %1561 = vmatprep.subr.bf16.mxu0 0
      %1562 = vmatpush1.bf16.msra.mxu0 %v1435
      %1563 = vmatprep.subr.bf16.mxu0 0
      %1564 = vmatpush1.bf16.msra.mxu0 %v1434
      %1565 = vmatprep.subr.bf16.mxu0 0
      %1566 = vmatpush1.bf16.msra.mxu0 %v1433
      %1567 = vmatprep.subr.bf16.mxu0 0
      %1568 = vmatpush1.bf16.msra.mxu0 %v1432
      %1569 = vmatprep.subr.bf16.mxu0 0
      %1570 = vmatpush2.bf16.msra.mxu0 0
      %1571 = vmatprep.subr.bf16.mxu0 0
      %1572 = vmatpush2.bf16.msra.mxu0 0
      %1573 = vmatprep.subr.bf16.mxu0 0
      %1574 = vmatpush2.bf16.msra.mxu0 0
      %1575 = vmatprep.subr.bf16.mxu0 0
      %1576 = vmatpush2.bf16.msra.mxu0 0
      %1577 = vmatprep.subr.bf16.mxu0 0
      %1578 = vmatpush2.bf16.msra.mxu0 0
      %1579 = vmatprep.subr.bf16.mxu0 0
      %1580 = vmatpush2.bf16.msra.mxu0 0
      %1581 = vmatprep.subr.bf16.mxu0 0
      %1582 = vmatpush2.bf16.msra.mxu0 0
      %1583 = vmatprep.subr.bf16.mxu0 0
      %1584 = vmatpush2.bf16.msra.mxu0 %v1440
      %1585 = vmatprep.mubr.bf16.mxu0 %v1467
      %1586 = vmatmul.mubr.bf16.gmra.mxu0 %v1248
      %v1587 = vpop.f32.mrf.mxu0
      %v1588 = vadd.f32 %v1516, %v1587
      %v1589 = vpop.f32.mrf.mxu0
      %v1590 = vpop.f32.mrf.mxu0
      %v1591 = vadd.f32 %v1519, %v1590
      %v1592 = vpop.f32.mrf.mxu0
      %1593 = vmatprep.mubr.bf16.mxu0 %v1470
      %1594 = vmatmul.mubr.bf16.gmra.mxu0 %v1252
      %v1595 = vpop.f32.mrf.mxu0
      %v1596 = vadd.f32 %v1524, %v1595
      %v1597 = vpop.f32.mrf.mxu0
      %v1598 = vpop.f32.mrf.mxu0
      %v1599 = vadd.f32 %v1527, %v1598
      %v1600 = vpop.f32.mrf.mxu0
      %1601 = vmatprep.mubr.bf16.mxu0 %v1473
      %1602 = vmatmul.mubr.bf16.gmra.mxu0 %v1256
      %v1603 = vpop.f32.mrf.mxu0
      %v1604 = vadd.f32 %v1532, %v1603
      %v1605 = vpop.f32.mrf.mxu0
      %v1606 = vpop.f32.mrf.mxu0
      %v1607 = vadd.f32 %v1535, %v1606
      %v1608 = vpop.f32.mrf.mxu0
      %1609 = vmatprep.mubr.bf16.mxu0 %v1476
      %1610 = vmatmul.mubr.bf16.gmra.mxu0 %v1260
      %v1611 = vpop.f32.mrf.mxu0
      %v1612 = vadd.f32 %v1540, %v1611
      %v1613 = vpop.f32.mrf.mxu0
      %v1614 = vpop.f32.mrf.mxu0
      %v1615 = vadd.f32 %v1543, %v1614
      %v1616 = vpop.f32.mrf.mxu0
      %1617 = vmatprep.mubr.bf16.mxu0 %v1479
      %1618 = vmatmul.mubr.bf16.gmra.mxu0 %v1264
      %v1619 = vpop.f32.mrf.mxu0
      %v1620 = vadd.f32 %v1548, %v1619
      %v1621 = vpop.f32.mrf.mxu0
      %v1622 = vpop.f32.mrf.mxu0
      %v1623 = vpop.f32.mrf.mxu0
      %1624 = vdwg.mxu0
      %s1625 = smul.f32 %s125, 0.9
      %s1626 = sadd.f32 %s1625, 1.0
      %v1627 = vstv %s1626
      %v1628 = vmul.f32 %v1588, %v1627
      %v1629 = vmul.f32 %v1591, %v1627
      %v1630 = vmul.f32 %v1596, %v1627
      %v1631 = vmul.f32 %v1599, %v1627
      %v1632 = vmul.f32 %v1604, %v1627
      %v1633 = vmul.f32 %v1607, %v1627
      %v1634 = vmul.f32 %v1612, %v1627
      %v1635 = vmul.f32 %v1615, %v1627
      %v1636 = vmul.f32 %v1620, %v1627
      %v1637 = vld [vmem:[%s5] sm:$0x1]
      %v1639 = vlaneseq
      %v1640 = vshrl.u32 %v1639, 7
      %v1641 = vsub.s32 0, %v1640
      %v1642 = vrot.slane %v1637, %v1641
      %v1644 = vadd.f32 %v1628, %v1642
      %v1645 = vadd.f32 %v1629, %v1642
      %v1646 = vadd.f32 %v1630, %v1642
      %v1647 = vadd.f32 %v1631, %v1642
      %v1648 = vadd.f32 %v1632, %v1642
      %v1649 = vadd.f32 %v1633, %v1642
      %v1650 = vadd.f32 %v1634, %v1642
      %v1651 = vadd.f32 %v1635, %v1642
      %v1652 = vadd.f32 %v1636, %v1642
      %v1653 = vld [vmem:[%s1] sm:$0xff]
      %v1654 = vld [vmem:[%s1 + $0x8] sm:$0xff]
      %v1655 = vld [vmem:[%s1 + $0x10] sm:$0xff]
      %v1656 = vld [vmem:[%s1 + $0x18] sm:$0xff]
      %v1657 = vld [vmem:[%s1 + $0x20] sm:$0xff]
      %v1658 = vld [vmem:[%s1 + $0x28] sm:$0xff]
      %v1659 = vld [vmem:[%s1 + $0x30] sm:$0xff]
      %v1660 = vld [vmem:[%s1 + $0x38] sm:$0xff]
      %v1661 = vld [vmem:[%s1 + $0x40] sm:$0xff]
      %1663 = vset.pattern.permute.xlu0 0
      %1664 = vperm.xlu0 %1663, %v1653
      %v1665 = vpop.permute.xlu0 %1664
      %1668 = vset.pattern.permute.xlu0 0
      %1669 = vperm.xlu0 %1668, %v1654
      %v1670 = vpop.permute.xlu0 %1669
      %1673 = vset.pattern.permute.xlu0 0
      %1674 = vperm.xlu0 %1673, %v1655
      %v1675 = vpop.permute.xlu0 %1674
      %1678 = vset.pattern.permute.xlu0 0
      %1679 = vperm.xlu0 %1678, %v1656
      %v1680 = vpop.permute.xlu0 %1679
      %1683 = vset.pattern.permute.xlu0 0
      %1684 = vperm.xlu0 %1683, %v1657
      %v1685 = vpop.permute.xlu0 %1684
      %1688 = vset.pattern.permute.xlu0 0
      %1689 = vperm.xlu0 %1688, %v1658
      %v1690 = vpop.permute.xlu0 %1689
      %1693 = vset.pattern.permute.xlu0 0
      %1694 = vperm.xlu0 %1693, %v1659
      %v1695 = vpop.permute.xlu0 %1694
      %1698 = vset.pattern.permute.xlu0 0
      %1699 = vperm.xlu0 %1698, %v1660
      %v1700 = vpop.permute.xlu0 %1699
      %1703 = vset.pattern.permute.xlu0 0
      %1704 = vperm.xlu0 %1703, %v1661
      %v1705 = vpop.permute.xlu0 %1704
      %v1707 = vmul.f32 %v1644, %v1665
      %v1708 = vmul.f32 %v1645, %v1670
      %v1709 = vmul.f32 %v1646, %v1675
      %v1710 = vmul.f32 %v1647, %v1680
      %v1711 = vmul.f32 %v1648, %v1685
      %v1712 = vmul.f32 %v1649, %v1690
      %v1713 = vmul.f32 %v1650, %v1695
      %v1714 = vmul.f32 %v1651, %v1700
      %v1715 = vmul.f32 %v1652, %v1705
      %v1716 = vsel %vm98, %v1707, 0.0
      %v1717 = vsel %vm98, %v1708, 0.0
      %v1718 = vadd.f32 %v1716, %v1717
      %v1719 = vsel %vm98, %v1709, 0.0
      %v1720 = vadd.f32 %v1718, %v1719
      %v1721 = vsel %vm98, %v1710, 0.0
      %v1722 = vadd.f32 %v1720, %v1721
      %v1723 = vsel %vm98, %v1711, 0.0
      %v1724 = vadd.f32 %v1722, %v1723
      %v1725 = vsel %vm98, %v1712, 0.0
      %v1726 = vadd.f32 %v1724, %v1725
      %v1727 = vsel %vm98, %v1713, 0.0
      %v1728 = vadd.f32 %v1726, %v1727
      %v1729 = vsel %vm98, %v1714, 0.0
      %v1730 = vadd.f32 %v1728, %v1729
      %v1731 = vsel %vm98, %v1715, 0.0
      %v1732 = vadd.f32 %v1730, %v1731
      %v1733 = vrot.slane %v1732, 4
      %v1734 = vadd.f32 %v1732, %v1733
      %v1735 = vrot.slane %v1734, 2
      %v1736 = vadd.f32 %v1734, %v1735
      %v1737 = vrot.slane %v1736, 1
      %v1738 = vadd.f32 %v1736, %v1737
      %v1739 = vmul.f32 %v1738, 0.02
      %v1740 = vsub.f32 %v1644, %v1739
      %v1741 = vsub.f32 %v1645, %v1739
      %v1742 = vsub.f32 %v1646, %v1739
      %v1743 = vsub.f32 %v1647, %v1739
      %v1744 = vsub.f32 %v1648, %v1739
      %v1745 = vsub.f32 %v1649, %v1739
      %v1746 = vsub.f32 %v1650, %v1739
      %v1747 = vsub.f32 %v1651, %v1739
      %v1748 = vsub.f32 %v1652, %v1739
      %v1749 = vmul.f32 %v1740, %v1740
      %v1750 = vmul.f32 %v1741, %v1741
      %v1751 = vmul.f32 %v1742, %v1742
      %v1752 = vmul.f32 %v1743, %v1743
      %v1753 = vmul.f32 %v1744, %v1744
      %v1754 = vmul.f32 %v1745, %v1745
      %v1755 = vmul.f32 %v1746, %v1746
      %v1756 = vmul.f32 %v1747, %v1747
      %v1757 = vmul.f32 %v1748, %v1748
      %v1758 = vmul.f32 %v1749, %v1665
      %v1759 = vmul.f32 %v1750, %v1670
      %v1760 = vmul.f32 %v1751, %v1675
      %v1761 = vmul.f32 %v1752, %v1680
      %v1762 = vmul.f32 %v1753, %v1685
      %v1763 = vmul.f32 %v1754, %v1690
      %v1764 = vmul.f32 %v1755, %v1695
      %v1765 = vmul.f32 %v1756, %v1700
      %v1766 = vmul.f32 %v1757, %v1705
      %v1767 = vsel %vm98, %v1758, 0.0
      %v1768 = vsel %vm98, %v1759, 0.0
      %v1769 = vadd.f32 %v1767, %v1768
      %v1770 = vsel %vm98, %v1760, 0.0
      %v1771 = vadd.f32 %v1769, %v1770
      %v1772 = vsel %vm98, %v1761, 0.0
      %v1773 = vadd.f32 %v1771, %v1772
      %v1774 = vsel %vm98, %v1762, 0.0
      %v1775 = vadd.f32 %v1773, %v1774
      %v1776 = vsel %vm98, %v1763, 0.0
      %v1777 = vadd.f32 %v1775, %v1776
      %v1778 = vsel %vm98, %v1764, 0.0
      %v1779 = vadd.f32 %v1777, %v1778
      %v1780 = vsel %vm98, %v1765, 0.0
      %v1781 = vadd.f32 %v1779, %v1780
      %v1782 = vsel %vm98, %v1766, 0.0
      %v1783 = vadd.f32 %v1781, %v1782
      %v1784 = vrot.slane %v1783, 4
      %v1785 = vadd.f32 %v1783, %v1784
      %v1786 = vrot.slane %v1785, 2
      %v1787 = vadd.f32 %v1785, %v1786
      %v1788 = vrot.slane %v1787, 1
      %v1789 = vadd.f32 %v1787, %v1788
      %v1790 = vmul.f32 %v1789, 0.02
      %v1791 = vadd.f32 %v1790, 1e-05
      %v1792 = vrsqrt.pop %v1791
      %v1793 = vmul.f32 %v1740, %v1792
      %v1794 = vmul.f32 %v1741, %v1792
      %v1795 = vmul.f32 %v1742, %v1792
      %v1796 = vmul.f32 %v1743, %v1792
      %v1797 = vmul.f32 %v1744, %v1792
      %v1798 = vmul.f32 %v1745, %v1792
      %v1799 = vmul.f32 %v1746, %v1792
      %v1800 = vmul.f32 %v1747, %v1792
      %v1801 = vmul.f32 %v1748, %v1792
      %v1802 = vld [vmem:[%s6] sm:$0x1]
      %v1804 = vlaneseq
      %v1805 = vshrl.u32 %v1804, 7
      %v1806 = vsub.s32 0, %v1805
      %v1807 = vrot.slane %v1802, %v1806
      %v1809 = vmul.f32 %v1793, %v1807
      %v1810 = vmul.f32 %v1794, %v1807
      %v1811 = vmul.f32 %v1795, %v1807
      %v1812 = vmul.f32 %v1796, %v1807
      %v1813 = vmul.f32 %v1797, %v1807
      %v1814 = vmul.f32 %v1798, %v1807
      %v1815 = vmul.f32 %v1799, %v1807
      %v1816 = vmul.f32 %v1800, %v1807
      %v1817 = vmul.f32 %v1801, %v1807
      %v1818 = vld [vmem:[%s7] sm:$0x1]
      %v1820 = vlaneseq
      %v1821 = vshrl.u32 %v1820, 7
      %v1822 = vsub.s32 0, %v1821
      %v1823 = vrot.slane %v1818, %v1822
      %v1825 = vadd.f32 %v1809, %v1823
      %v1826 = vadd.f32 %v1810, %v1823
      %v1827 = vadd.f32 %v1811, %v1823
      %v1828 = vadd.f32 %v1812, %v1823
      %v1829 = vadd.f32 %v1813, %v1823
      %v1830 = vadd.f32 %v1814, %v1823
      %v1831 = vadd.f32 %v1815, %v1823
      %v1832 = vadd.f32 %v1816, %v1823
      %v1833 = vadd.f32 %v1817, %v1823
      %v1834 = vld [vmem:[#allocation3] sm:$0xff]
      %v1835 = vld [vmem:[#allocation3 + $0x8] sm:$0xff]
      %v1836 = vld [vmem:[#allocation3 + $0x10] sm:$0xff]
      %v1837 = vld [vmem:[#allocation3 + $0x18] sm:$0xff]
      %v1838 = vld [vmem:[#allocation3 + $0x20] sm:$0xff]
      %v1839 = vld [vmem:[#allocation3 + $0x28] sm:$0xff]
      %v1840 = vld [vmem:[#allocation3 + $0x30] sm:$0xff]
      %v1841 = vld [vmem:[#allocation3 + $0x38] sm:$0xff]
      %v1842 = vld [vmem:[#allocation3 + $0x40] sm:$0xff]
      %vm1843 = vcmp.gt.f32.partialorder %v1834, 1.0
      %vm1844 = vcmp.gt.f32.partialorder %v1835, 1.0
      %vm1845 = vcmp.gt.f32.partialorder %v1836, 1.0
      %vm1846 = vcmp.gt.f32.partialorder %v1837, 1.0
      %vm1847 = vcmp.gt.f32.partialorder %v1838, 1.0
      %vm1848 = vcmp.gt.f32.partialorder %v1839, 1.0
      %vm1849 = vcmp.gt.f32.partialorder %v1840, 1.0
      %vm1850 = vcmp.gt.f32.partialorder %v1841, 1.0
      %vm1851 = vcmp.gt.f32.partialorder %v1842, 1.0
      %v1852 = vsel %vm1843, 1, 0
      %v1853 = vsel %vm1844, 1, 0
      %v1854 = vsel %vm1845, 1, 0
      %v1855 = vsel %vm1846, 1, 0
      %v1856 = vsel %vm1847, 1, 0
      %v1857 = vsel %vm1848, 1, 0
      %v1858 = vsel %vm1849, 1, 0
      %v1859 = vsel %vm1850, 1, 0
      %v1860 = vsel %vm1851, 1, 0
      %v1861 = vcvt.s32.f32 %v1852
      %v1862 = vcvt.s32.f32 %v1853
      %v1863 = vcvt.s32.f32 %v1854
      %v1864 = vcvt.s32.f32 %v1855
      %v1865 = vcvt.s32.f32 %v1856
      %v1866 = vcvt.s32.f32 %v1857
      %v1867 = vcvt.s32.f32 %v1858
      %v1868 = vcvt.s32.f32 %v1859
      %v1869 = vcvt.s32.f32 %v1860
      %v1870 = vmul.f32 %v1834, 0.6
      %v1871 = vmul.f32 %v1835, 0.6
      %v1872 = vmul.f32 %v1836, 0.6
      %v1873 = vmul.f32 %v1837, 0.6
      %v1874 = vmul.f32 %v1838, 0.6
      %v1875 = vmul.f32 %v1839, 0.6
      %v1876 = vmul.f32 %v1840, 0.6
      %v1877 = vmul.f32 %v1841, 0.6
      %v1878 = vmul.f32 %v1842, 0.6
      %v1879 = vadd.f32 %v1870, %v1825
      %v1880 = vadd.f32 %v1871, %v1826
      %v1881 = vadd.f32 %v1872, %v1827
      %v1882 = vadd.f32 %v1873, %v1828
      %v1883 = vadd.f32 %v1874, %v1829
      %v1884 = vadd.f32 %v1875, %v1830
      %v1885 = vadd.f32 %v1876, %v1831
      %v1886 = vadd.f32 %v1877, %v1832
      %v1887 = vadd.f32 %v1878, %v1833
      %v1888 = vsub.f32 %v1879, %v1861
      %v1889 = vsub.f32 %v1880, %v1862
      %v1890 = vsub.f32 %v1881, %v1863
      %v1891 = vsub.f32 %v1882, %v1864
      %v1892 = vsub.f32 %v1883, %v1865
      %v1893 = vsub.f32 %v1884, %v1866
      %v1894 = vsub.f32 %v1885, %v1867
      %v1895 = vsub.f32 %v1886, %v1868
      %v1896 = vsub.f32 %v1887, %v1869
      %vm1897 = vcmp.gt.f32.partialorder %v1888, 1.0
      %vm1898 = vcmp.gt.f32.partialorder %v1889, 1.0
      %vm1899 = vcmp.gt.f32.partialorder %v1890, 1.0
      %vm1900 = vcmp.gt.f32.partialorder %v1891, 1.0
      %vm1901 = vcmp.gt.f32.partialorder %v1892, 1.0
      %vm1902 = vcmp.gt.f32.partialorder %v1893, 1.0
      %vm1903 = vcmp.gt.f32.partialorder %v1894, 1.0
      %vm1904 = vcmp.gt.f32.partialorder %v1895, 1.0
      %vm1905 = vcmp.gt.f32.partialorder %v1896, 1.0
      %v1906 = vsel %vm1897, 1, 0
      %v1907 = vsel %vm1898, 1, 0
      %v1908 = vsel %vm1899, 1, 0
      %v1909 = vsel %vm1900, 1, 0
      %v1910 = vsel %vm1901, 1, 0
      %v1911 = vsel %vm1902, 1, 0
      %v1912 = vsel %vm1903, 1, 0
      %v1913 = vsel %vm1904, 1, 0
      %v1914 = vsel %vm1905, 1, 0
      %v1915 = vcvt.s32.f32 %v1906
      %v1916 = vcvt.s32.f32 %v1907
      %v1917 = vcvt.s32.f32 %v1908
      %v1918 = vcvt.s32.f32 %v1909
      %v1919 = vcvt.s32.f32 %v1910
      %v1920 = vcvt.s32.f32 %v1911
      %v1921 = vcvt.s32.f32 %v1912
      %v1922 = vcvt.s32.f32 %v1913
      %v1923 = vcvt.s32.f32 %v1914
      %1924 = vst.msk [vmem:[#allocation3] sm:$0xff] %vm98, %v1888
      %1925 = vst.msk [vmem:[#allocation3 + $0x8] sm:$0xff] %vm98, %v1889
      %1926 = vst.msk [vmem:[#allocation3 + $0x10] sm:$0xff] %vm98, %v1890
      %1927 = vst.msk [vmem:[#allocation3 + $0x18] sm:$0xff] %vm98, %v1891
      %1928 = vst.msk [vmem:[#allocation3 + $0x20] sm:$0xff] %vm98, %v1892
      %1929 = vst.msk [vmem:[#allocation3 + $0x28] sm:$0xff] %vm98, %v1893
      %1930 = vst.msk [vmem:[#allocation3 + $0x30] sm:$0xff] %vm98, %v1894
      %1931 = vst.msk [vmem:[#allocation3 + $0x38] sm:$0xff] %vm98, %v1895
      %1932 = vst.msk [vmem:[#allocation3 + $0x40] sm:$0xff] %vm98, %v1896
      %1934 = vrot.lane.b32.xlu0 %v1916, 32
      %v1935 = vpop.permute.xlu0 %1934
      %1938 = vrot.lane.b32.xlu0 %v1917, 64
      %v1939 = vpop.permute.xlu0 %1938
      %1942 = vrot.lane.b32.xlu0 %v1918, 96
      %v1943 = vpop.permute.xlu0 %1942
      %1946 = vrot.lane.b32.xlu0 %v1920, 32
      %v1947 = vpop.permute.xlu0 %1946
      %1950 = vrot.lane.b32.xlu0 %v1921, 64
      %v1951 = vpop.permute.xlu0 %1950
      %1954 = vrot.lane.b32.xlu0 %v1922, 96
      %v1955 = vpop.permute.xlu0 %1954
      %v1957 = vsel %vm98, %v1915, %v1935
      %vm1958 = vcmask 523264
      %v1959 = vsel %vm1958, %v1957, %v1939
      %vm1960 = vcmask 785408
      %v1961 = vsel %vm1960, %v1959, %v1943
      %v1962 = vsel %vm98, %v1919, %v1947
      %v1963 = vsel %vm1958, %v1962, %v1951
      %v1964 = vsel %vm1960, %v1963, %v1955
      %v1965 = vpack.c.bf16 %v1961, %v1961
      %v1966 = vpack.c.bf16 %v1964, %v1964
      %v1967 = vpack.c.bf16 %v1923, %v1923
      %v1968 = vld [vmem:[%s8] sm:$0xf]
      %v1969 = vld [vmem:[%s8 + $0x4] sm:$0xf]
      %v1970 = vld [vmem:[%s8 + $0x8] sm:$0xf]
      %v1971 = vld [vmem:[%s8 + $0xc] sm:$0xf]
      %v1972 = vld [vmem:[%s8 + $0x10] sm:$0xf]
      %v1973 = vld [vmem:[%s8 + $0x14] sm:$0xf]
      %v1974 = vld [vmem:[%s8 + $0x18] sm:$0xf]
      %v1975 = vld [vmem:[%s8 + $0x1c] sm:$0xf]
      %v1976 = vld [vmem:[%s8 + $0x20] sm:$0xf]
      %v1977 = vld [vmem:[%s8 + $0x24] sm:$0xf]
      %v1978 = vld [vmem:[%s8 + $0x28] sm:$0xf]
      %v1979 = vld [vmem:[%s8 + $0x2c] sm:$0xf]
      %v1980 = vld [vmem:[%s8 + $0x30] sm:$0xf]
      %v1981 = vld [vmem:[%s8 + $0x34] sm:$0xf]
      %v1982 = vld [vmem:[%s8 + $0x38] sm:$0xf]
      %v1983 = vld [vmem:[%s8 + $0x3c] sm:$0xf]
      %v1984 = vld [vmem:[%s8 + $0x40] sm:$0xf]
      %v1985 = vld [vmem:[%s8 + $0x44] sm:$0xf]
      %v1986 = vld [vmem:[%s8 + $0x48] sm:$0xf]
      %v1987 = vld [vmem:[%s8 + $0x4c] sm:$0xf]
      %v1988 = vld [vmem:[%s8 + $0x50] sm:$0xf]
      %v1989 = vld [vmem:[%s8 + $0x54] sm:$0xf]
      %v1990 = vld [vmem:[%s8 + $0x58] sm:$0xf]
      %v1991 = vld [vmem:[%s8 + $0x5c] sm:$0xf]
      %v1992 = vld [vmem:[%s8 + $0x60] sm:$0xf]
      %v1993 = vld [vmem:[%s8 + $0x64] sm:$0xf]
      %v1994 = vld [vmem:[%s8 + $0x68] sm:$0xf]
      %v1995 = vld [vmem:[%s8 + $0x6c] sm:$0xf]
      %v1996 = vld [vmem:[%s8 + $0x70] sm:$0xf]
      %v1997 = vld [vmem:[%s8 + $0x74] sm:$0xf]
      %v1998 = vld [vmem:[%s8 + $0x78] sm:$0xf]
      %v1999 = vld [vmem:[%s8 + $0x7c] sm:$0xf]
      %v2000 = vld [vmem:[%s8 + $0x80] sm:$0xf]
      %v2001 = vld [vmem:[%s8 + $0x84] sm:$0xf]
      %v2002 = vld [vmem:[%s8 + $0x88] sm:$0xf]
      %v2003 = vld [vmem:[%s8 + $0x8c] sm:$0xf]
      %v2040 = vunpack.c.l.b16 %v1968
      %v2041 = vunpack.c.l.b16 %v1969
      %v2042 = vunpack.c.l.b16 %v1970
      %v2043 = vunpack.c.l.b16 %v1971
      %v2044 = vunpack.c.l.b16 %v1972
      %v2045 = vunpack.c.l.b16 %v1973
      %v2046 = vunpack.c.l.b16 %v1974
      %v2047 = vunpack.c.l.b16 %v1975
      %v2048 = vunpack.c.l.b16 %v1976
      %v2049 = vunpack.c.l.b16 %v1977
      %v2050 = vunpack.c.l.b16 %v1978
      %v2051 = vunpack.c.l.b16 %v1979
      %v2052 = vunpack.c.l.b16 %v1980
      %v2053 = vunpack.c.l.b16 %v1981
      %v2054 = vunpack.c.l.b16 %v1982
      %v2055 = vunpack.c.l.b16 %v1983
      %v2056 = vunpack.c.l.b16 %v1984
      %v2057 = vunpack.c.l.b16 %v1985
      %v2058 = vunpack.c.l.b16 %v1986
      %v2059 = vunpack.c.l.b16 %v1987
      %v2060 = vunpack.c.l.b16 %v1988
      %v2061 = vunpack.c.l.b16 %v1989
      %v2062 = vunpack.c.l.b16 %v1990
      %v2063 = vunpack.c.l.b16 %v1991
      %v2064 = vunpack.c.l.b16 %v1992
      %v2065 = vunpack.c.l.b16 %v1993
      %v2066 = vunpack.c.l.b16 %v1994
      %v2067 = vunpack.c.l.b16 %v1995
      %v2068 = vunpack.c.l.b16 %v1996
      %v2069 = vunpack.c.l.b16 %v1997
      %v2070 = vunpack.c.l.b16 %v1998
      %v2071 = vunpack.c.l.b16 %v1999
      %v2072 = vunpack.c.l.b16 %v2000
      %v2073 = vunpack.c.l.b16 %v2001
      %v2074 = vunpack.c.l.b16 %v2002
      %v2075 = vunpack.c.l.b16 %v2003
      %v2076 = vpack.c.b16 %v2041, %v2040
      %v2077 = vpack.c.b16 %v2043, %v2042
      %v2078 = vpack.c.b16 %v2045, %v2044
      %v2079 = vpack.c.b16 %v2047, %v2046
      %v2080 = vpack.c.b16 %v2049, %v2048
      %v2081 = vpack.c.b16 %v2051, %v2050
      %v2082 = vpack.c.b16 %v2053, %v2052
      %v2083 = vpack.c.b16 %v2055, %v2054
      %v2084 = vpack.c.b16 %v2057, %v2056
      %v2085 = vpack.c.b16 %v2059, %v2058
      %v2086 = vpack.c.b16 %v2061, %v2060
      %v2087 = vpack.c.b16 %v2063, %v2062
      %v2088 = vpack.c.b16 %v2065, %v2064
      %v2089 = vpack.c.b16 %v2067, %v2066
      %v2090 = vpack.c.b16 %v2069, %v2068
      %v2091 = vpack.c.b16 %v2071, %v2070
      %v2092 = vpack.c.b16 %v2073, %v2072
      %v2093 = vpack.c.b16 %v2075, %v2074
      %v2113 = vsel %vm98, %v1967, 0
      %2115 = vmatprep.subr.bf16.mxu0 0
      %2116 = vmatpush1.bf16.msra.mxu0 %v2083
      %2117 = vmatprep.subr.bf16.mxu0 0
      %2118 = vmatpush1.bf16.msra.mxu0 %v2082
      %2119 = vmatprep.subr.bf16.mxu0 0
      %2120 = vmatpush1.bf16.msra.mxu0 %v2081
      %2121 = vmatprep.subr.bf16.mxu0 0
      %2122 = vmatpush1.bf16.msra.mxu0 %v2080
      %2123 = vmatprep.subr.bf16.mxu0 0
      %2124 = vmatpush1.bf16.msra.mxu0 %v2079
      %2125 = vmatprep.subr.bf16.mxu0 0
      %2126 = vmatpush1.bf16.msra.mxu0 %v2078
      %2127 = vmatprep.subr.bf16.mxu0 0
      %2128 = vmatpush1.bf16.msra.mxu0 %v2077
      %2129 = vmatprep.subr.bf16.mxu0 0
      %2130 = vmatpush1.bf16.msra.mxu0 %v2076
      %2131 = vmatprep.subr.bf16.mxu0 0
      %2132 = vmatpush2.bf16.msra.mxu0 %v2091
      %2133 = vmatprep.subr.bf16.mxu0 0
      %2134 = vmatpush2.bf16.msra.mxu0 %v2090
      %2135 = vmatprep.subr.bf16.mxu0 0
      %2136 = vmatpush2.bf16.msra.mxu0 %v2089
      %2137 = vmatprep.subr.bf16.mxu0 0
      %2138 = vmatpush2.bf16.msra.mxu0 %v2088
      %2139 = vmatprep.subr.bf16.mxu0 0
      %2140 = vmatpush2.bf16.msra.mxu0 %v2087
      %2141 = vmatprep.subr.bf16.mxu0 0
      %2142 = vmatpush2.bf16.msra.mxu0 %v2086
      %2143 = vmatprep.subr.bf16.mxu0 0
      %2144 = vmatpush2.bf16.msra.mxu0 %v2085
      %2145 = vmatprep.subr.bf16.mxu0 0
      %2146 = vmatpush2.bf16.msra.mxu0 %v2084
      %2147 = vmatprep.mubr.bf16.mxu0 %v1966
      %2148 = vmatmul.mubr.bf16.gmra.mxu0 %v1965
      %v2149 = vpop.f32.mrf.mxu0
      %v2150 = vadd.f32 0.0, %v2149
      %v2151 = vpop.f32.mrf.mxu0
      %v2152 = vpop.f32.mrf.mxu0
      %v2153 = vpop.f32.mrf.mxu0
      %2154 = vdwg.mxu0
      %2155 = vmatprep.subr.bf16.mxu0 0
      %2156 = vmatpush1.bf16.msra.mxu0 0
      %2157 = vmatprep.subr.bf16.mxu0 0
      %2158 = vmatpush1.bf16.msra.mxu0 0
      %2159 = vmatprep.subr.bf16.mxu0 0
      %2160 = vmatpush1.bf16.msra.mxu0 0
      %2161 = vmatprep.subr.bf16.mxu0 0
      %2162 = vmatpush1.bf16.msra.mxu0 0
      %2163 = vmatprep.subr.bf16.mxu0 0
      %2164 = vmatpush1.bf16.msra.mxu0 0
      %2165 = vmatprep.subr.bf16.mxu0 0
      %2166 = vmatpush1.bf16.msra.mxu0 0
      %2167 = vmatprep.subr.bf16.mxu0 0
      %2168 = vmatpush1.bf16.msra.mxu0 %v2093
      %2169 = vmatprep.subr.bf16.mxu0 0
      %2170 = vmatpush1.bf16.msra.mxu0 %v2092
      %2171 = vmatprep.subr.bf16.mxu0 0
      %2172 = vmatpush2.bf16.msra.mxu0 0
      %2173 = vmatprep.subr.bf16.mxu0 0
      %2174 = vmatpush2.bf16.msra.mxu0 0
      %2175 = vmatprep.subr.bf16.mxu0 0
      %2176 = vmatpush2.bf16.msra.mxu0 0
      %2177 = vmatprep.subr.bf16.mxu0 0
      %2178 = vmatpush2.bf16.msra.mxu0 0
      %2179 = vmatprep.subr.bf16.mxu0 0
      %2180 = vmatpush2.bf16.msra.mxu0 0
      %2181 = vmatprep.subr.bf16.mxu0 0
      %2182 = vmatpush2.bf16.msra.mxu0 0
      %2183 = vmatprep.subr.bf16.mxu0 0
      %2184 = vmatpush2.bf16.msra.mxu0 0
      %2185 = vmatprep.subr.bf16.mxu0 0
      %2186 = vmatpush2.bf16.msra.mxu0 0
      %2187 = vmatprep.mubr.bf16.mxu0 0
      %2188 = vmatmul.mubr.bf16.gmra.mxu0 %v2113
      %v2189 = vpop.f32.mrf.mxu0
      %v2190 = vadd.f32 %v2150, %v2189
      %v2191 = vpop.f32.mrf.mxu0
      %v2192 = vpop.f32.mrf.mxu0
      %v2193 = vpop.f32.mrf.mxu0
      %2194 = vdwg.mxu0
      %s2195 = smul.f32 %s125, 0.8
      %s2196 = sadd.f32 %s2195, 1.0
      %v2197 = vstv %s2196
      %v2198 = vmul.f32 %v2190, %v2197
      %v2199 = vld [vmem:[%s9] sm:$0x1]
      %v2201 = vlaneseq
      %v2202 = vshrl.u32 %v2201, 7
      %v2203 = vsub.s32 0, %v2202
      %v2204 = vrot.slane %v2199, %v2203
      %v2206 = vadd.f32 %v2198, %v2204
      %v2207 = vsel %vm98, %v2206, 0.0
      %v2208 = vrot.slane %v2207, 4
      %v2209 = vadd.f32 %v2207, %v2208
      %v2210 = vrot.slane %v2209, 2
      %v2211 = vadd.f32 %v2209, %v2210
      %v2212 = vrot.slane %v2211, 1
      %v2213 = vadd.f32 %v2211, %v2212
      %v2214 = vmul.f32 %v2213, 0.125
      %v2215 = vsub.f32 %v2206, %v2214
      %v2216 = vmul.f32 %v2215, %v2215
      %v2217 = vsel %vm98, %v2216, 0.0
      %v2218 = vrot.slane %v2217, 4
      %v2219 = vadd.f32 %v2217, %v2218
      %v2220 = vrot.slane %v2219, 2
      %v2221 = vadd.f32 %v2219, %v2220
      %v2222 = vrot.slane %v2221, 1
      %v2223 = vadd.f32 %v2221, %v2222
      %v2224 = vmul.f32 %v2223, 0.125
      %v2225 = vadd.f32 %v2224, 1e-05
      %v2226 = vrsqrt.pop %v2225
      %v2227 = vmul.f32 %v2215, %v2226
      %v2228 = vld [vmem:[%s10] sm:$0x1]
      %v2230 = vlaneseq
      %v2231 = vshrl.u32 %v2230, 7
      %v2232 = vsub.s32 0, %v2231
      %v2233 = vrot.slane %v2228, %v2232
      %v2235 = vmul.f32 %v2227, %v2233
      %v2236 = vld [vmem:[%s11] sm:$0x1]
      %v2238 = vlaneseq
      %v2239 = vshrl.u32 %v2238, 7
      %v2240 = vsub.s32 0, %v2239
      %v2241 = vrot.slane %v2236, %v2240
      %v2243 = vadd.f32 %v2235, %v2241
      %v2244 = vld [vmem:[#allocation4] sm:$0xff]
      %vm2245 = vcmp.gt.f32.partialorder %v2244, 1.0
      %v2246 = vsel %vm2245, 1, 0
      %v2247 = vcvt.s32.f32 %v2246
      %v2248 = vmul.f32 %v2244, 0.7
      %v2249 = vadd.f32 %v2248, %v2243
      %v2250 = vsub.f32 %v2249, %v2247
      %vm2251 = vcmp.gt.f32.partialorder %v2250, 1.0
      %v2252 = vsel %vm2251, 1, 0
      %v2253 = vcvt.s32.f32 %v2252
      %2254 = vst.msk [vmem:[#allocation4] sm:$0xff] %vm98, %v2250
      %v2256 = vrot.slane %v2253, 2
      %2257 = vrot.lane.b32.xlu0 %v2256, 32
      %v2258 = vpop.permute.xlu0 %2257
      %v2260 = vrot.slane %v2253, 4
      %2261 = vrot.lane.b32.xlu0 %v2260, 64
      %v2262 = vpop.permute.xlu0 %2261
      %v2264 = vrot.slane %v2253, 6
      %2265 = vrot.lane.b32.xlu0 %v2264, 96
      %v2266 = vpop.permute.xlu0 %2265
      %v2268 = vsel %vm98, %v2253, %v2258
      %v2269 = vsel %vm1958, %v2268, %v2262
      %v2270 = vsel %vm1960, %v2269, %v2266
      %v2271 = vpack.c.bf16 %v2270, %v2270
      %v2272 = vld [vmem:[%s12] sm:$0xff]
      %v2273 = vld [vmem:[%s12 + $0x8] sm:$0xff]
      %v2274 = vld [vmem:[%s12 + $0x10] sm:$0xff]
      %v2275 = vld [vmem:[%s12 + $0x18] sm:$0xff]
      %v2276 = vld [vmem:[%s12 + $0x20] sm:$0xff]
      %v2277 = vld [vmem:[%s12 + $0x28] sm:$0xff]
      %v2278 = vld [vmem:[%s12 + $0x30] sm:$0xff]
      %v2279 = vld [vmem:[%s12 + $0x38] sm:$0xff]
      %v2280 = vld [vmem:[%s12 + $0x40] sm:$0xff]
      %v2281 = vld [vmem:[%s12 + $0x48] sm:$0xff]
      %v2282 = vld [vmem:[%s12 + $0x50] sm:$0xff]
      %v2283 = vld [vmem:[%s12 + $0x58] sm:$0xff]
      %v2284 = vld [vmem:[%s12 + $0x60] sm:$0xff]
      %v2285 = vld [vmem:[%s12 + $0x68] sm:$0xff]
      %v2286 = vld [vmem:[%s12 + $0x70] sm:$0xff]
      %v2287 = vld [vmem:[%s12 + $0x78] sm:$0xff]
      %v2304 = vunpack.c.l.b16 %v2272
      %v2305 = vunpack.c.h.b16 %v2272
      %v2306 = vunpack.c.l.b16 %v2273
      %v2307 = vunpack.c.h.b16 %v2273
      %v2308 = vunpack.c.l.b16 %v2274
      %v2309 = vunpack.c.h.b16 %v2274
      %v2310 = vunpack.c.l.b16 %v2275
      %v2311 = vunpack.c.h.b16 %v2275
      %v2312 = vunpack.c.l.b16 %v2276
      %v2313 = vunpack.c.h.b16 %v2276
      %v2314 = vunpack.c.l.b16 %v2277
      %v2315 = vunpack.c.h.b16 %v2277
      %v2316 = vunpack.c.l.b16 %v2278
      %v2317 = vunpack.c.h.b16 %v2278
      %v2318 = vunpack.c.l.b16 %v2279
      %v2319 = vunpack.c.h.b16 %v2279
      %v2320 = vunpack.c.l.b16 %v2280
      %v2321 = vunpack.c.h.b16 %v2280
      %v2322 = vunpack.c.l.b16 %v2281
      %v2323 = vunpack.c.h.b16 %v2281
      %v2324 = vunpack.c.l.b16 %v2282
      %v2325 = vunpack.c.h.b16 %v2282
      %v2326 = vunpack.c.l.b16 %v2283
      %v2327 = vunpack.c.h.b16 %v2283
      %v2328 = vunpack.c.l.b16 %v2284
      %v2329 = vunpack.c.h.b16 %v2284
      %v2330 = vunpack.c.l.b16 %v2285
      %v2331 = vunpack.c.h.b16 %v2285
      %v2332 = vunpack.c.l.b16 %v2286
      %v2333 = vunpack.c.h.b16 %v2286
      %v2334 = vunpack.c.l.b16 %v2287
      %v2335 = vunpack.c.h.b16 %v2287
      %v2336 = vpack.c.b16 %v2306, %v2304
      %v2337 = vpack.c.b16 %v2307, %v2305
      %v2338 = vpack.c.b16 %v2310, %v2308
      %v2339 = vpack.c.b16 %v2311, %v2309
      %v2340 = vpack.c.b16 %v2314, %v2312
      %v2341 = vpack.c.b16 %v2315, %v2313
      %v2342 = vpack.c.b16 %v2318, %v2316
      %v2343 = vpack.c.b16 %v2319, %v2317
      %v2344 = vpack.c.b16 %v2322, %v2320
      %v2345 = vpack.c.b16 %v2323, %v2321
      %v2346 = vpack.c.b16 %v2326, %v2324
      %v2347 = vpack.c.b16 %v2327, %v2325
      %v2348 = vpack.c.b16 %v2330, %v2328
      %v2349 = vpack.c.b16 %v2331, %v2329
      %v2350 = vpack.c.b16 %v2334, %v2332
      %v2351 = vpack.c.b16 %v2335, %v2333
      %2368 = vmatprep.subr.bf16.mxu0 %v2351
      %2369 = vmatpush1.bf16.msra.mxu0 %v2350
      %2370 = vmatprep.subr.bf16.mxu0 %v2349
      %2371 = vmatpush1.bf16.msra.mxu0 %v2348
      %2372 = vmatprep.subr.bf16.mxu0 %v2347
      %2373 = vmatpush1.bf16.msra.mxu0 %v2346
      %2374 = vmatprep.subr.bf16.mxu0 %v2345
      %2375 = vmatpush1.bf16.msra.mxu0 %v2344
      %2376 = vmatprep.subr.bf16.mxu0 %v2343
      %2377 = vmatpush1.bf16.msra.mxu0 %v2342
      %2378 = vmatprep.subr.bf16.mxu0 %v2341
      %2379 = vmatpush1.bf16.msra.mxu0 %v2340
      %2380 = vmatprep.subr.bf16.mxu0 %v2339
      %2381 = vmatpush1.bf16.msra.mxu0 %v2338
      %2382 = vmatprep.subr.bf16.mxu0 %v2337
      %2383 = vmatpush1.bf16.msra.mxu0 %v2336
      %2384 = vmatprep.subr.bf16.mxu0 0
      %2385 = vmatpush2.bf16.msra.mxu0 0
      %2386 = vmatprep.subr.bf16.mxu0 0
      %2387 = vmatpush2.bf16.msra.mxu0 0
      %2388 = vmatprep.subr.bf16.mxu0 0
      %2389 = vmatpush2.bf16.msra.mxu0 0
      %2390 = vmatprep.subr.bf16.mxu0 0
      %2391 = vmatpush2.bf16.msra.mxu0 0
      %2392 = vmatprep.subr.bf16.mxu0 0
      %2393 = vmatpush2.bf16.msra.mxu0 0
      %2394 = vmatprep.subr.bf16.mxu0 0
      %2395 = vmatpush2.bf16.msra.mxu0 0
      %2396 = vmatprep.subr.bf16.mxu0 0
      %2397 = vmatpush2.bf16.msra.mxu0 0
      %2398 = vmatprep.subr.bf16.mxu0 0
      %2399 = vmatpush2.bf16.msra.mxu0 0
      %2400 = vmatprep.mubr.bf16.mxu0 0
      %2401 = vmatmul.mubr.bf16.gmra.mxu0 %v2271
      %v2402 = vpop.f32.mrf.mxu0
      %v2403 = vadd.f32 0.0, %v2402
      %v2404 = vpop.f32.mrf.mxu0
      %v2405 = vadd.f32 0.0, %v2404
      %v2406 = vpop.f32.mrf.mxu0
      %v2407 = vpop.f32.mrf.mxu0
      %2408 = vdwg.mxu0
      %s2409 = smul.f32 %s125, 0.7
      %s2410 = sadd.f32 %s2409, 1.0
      %v2411 = vstv %s2410
      %v2412 = vmul.f32 %v2403, %v2411
      %v2413 = vmul.f32 %v2405, %v2411
      %v2414 = vld [vmem:[%s13] sm:$0x3]
      %v2416 = vlaneseq
      %v2417 = vshrl.u32 %v2416, 7
      %v2418 = vsub.s32 0, %v2417
      %v2419 = vrot.slane %v2414, %v2418
      %v2420 = vlaneseq
      %v2421 = vshrl.u32 %v2420, 7
      %v2422 = vsub.s32 1, %v2421
      %v2423 = vrot.slane %v2414, %v2422
      %v2426 = vadd.f32 %v2412, %v2419
      %v2427 = vadd.f32 %v2413, %v2423
      %v2428 = vld [vmem:[#allocation5] sm:$0xf]
      %vm2429 = vcmp.gt.f32.partialorder %v2428, 1.0
      %v2430 = vsel %vm2429, 1, 0
      %v2431 = vcvt.s32.f32 %v2430
      %v2432 = vmul.f32 %v2428, 0.7
      %v2435 = vcombine.low %v2426, %v2427
      %v2437 = vunpack.c.l.s4 1983009808
      %v2438 = vunpack.c.0.s8 %v2437
      %v2439 = vlaneseq
      %v2440 = vshrl.u32 %v2439, 7
      %v2441 = vsub.s32 %v2438, %v2440
      %v2442 = vrot.slane %v2435, %v2441
      %v2444 = vadd.f32 %v2432, %v2442
      %v2445 = vsub.f32 %v2444, %v2431
      %vm2446 = vcmp.gt.f32.partialorder %v2445, 1.0
      %2447 = vst [vmem:[#allocation5] sm:$0xf] %v2445
      %v2448 = vsel %vm2446, 1, 0
      %v2449 = vcvt.s32.f32 %v2448
      %v2452 = vunpack.c.l.s4 1983009808
      %v2453 = vunpack.c.0.s8 %v2452
      %v2454 = vlaneseq
      %v2455 = vshrl.u32 %v2454, 7
      %v2456 = vsub.s32 %v2453, %v2455
      %v2457 = vrot.slane %v2449, %v2456
      %v2458 = vcombine.high %v2457, %v2457
      %v2461 = vpack.c.bf16 %v2457, %v2457
      %v2462 = vpack.c.bf16 %v2458, %v2458
      %v2463 = vld [vmem:[%s14] sm:$0xff]
      %v2464 = vld [vmem:[%s14 + $0x8] sm:$0xff]
      %v2465 = vld [vmem:[%s14 + $0x10] sm:$0xff]
      %v2466 = vld [vmem:[%s14 + $0x18] sm:$0xff]
      %v2467 = vld [vmem:[%s14 + $0x20] sm:$0xff]
      %v2468 = vld [vmem:[%s14 + $0x28] sm:$0xff]
      %v2469 = vld [vmem:[%s14 + $0x30] sm:$0xff]
      %v2470 = vld [vmem:[%s14 + $0x38] sm:$0xff]
      %v2471 = vld [vmem:[%s14 + $0x40] sm:$0xff]
      %v2472 = vld [vmem:[%s14 + $0x48] sm:$0xff]
      %v2473 = vld [vmem:[%s14 + $0x50] sm:$0xff]
      %v2474 = vld [vmem:[%s14 + $0x58] sm:$0xff]
      %v2475 = vld [vmem:[%s14 + $0x60] sm:$0xff]
      %v2476 = vld [vmem:[%s14 + $0x68] sm:$0xff]
      %v2477 = vld [vmem:[%s14 + $0x70] sm:$0xff]
      %v2478 = vld [vmem:[%s14 + $0x78] sm:$0xff]
      %v2479 = vld [vmem:[%s14 + $0x80] sm:$0xff]
      %v2480 = vld [vmem:[%s14 + $0x88] sm:$0xff]
      %v2481 = vld [vmem:[%s14 + $0x90] sm:$0xff]
      %v2482 = vld [vmem:[%s14 + $0x98] sm:$0xff]
      %v2483 = vld [vmem:[%s14 + $0xa0] sm:$0xff]
      %v2484 = vld [vmem:[%s14 + $0xa8] sm:$0xff]
      %v2485 = vld [vmem:[%s14 + $0xb0] sm:$0xff]
      %v2486 = vld [vmem:[%s14 + $0xb8] sm:$0xff]
      %v2487 = vld [vmem:[%s14 + $0xc0] sm:$0xff]
      %v2488 = vld [vmem:[%s14 + $0xc8] sm:$0xff]
      %v2489 = vld [vmem:[%s14 + $0xd0] sm:$0xff]
      %v2490 = vld [vmem:[%s14 + $0xd8] sm:$0xff]
      %v2491 = vld [vmem:[%s14 + $0xe0] sm:$0xff]
      %v2492 = vld [vmem:[%s14 + $0xe8] sm:$0xff]
      %v2493 = vld [vmem:[%s14 + $0xf0] sm:$0xff]
      %v2494 = vld [vmem:[%s14 + $0xf8] sm:$0xff]
      %v2527 = vunpack.c.l.b16 %v2463
      %v2528 = vunpack.c.h.b16 %v2463
      %v2529 = vunpack.c.l.b16 %v2464
      %v2530 = vunpack.c.h.b16 %v2464
      %v2531 = vunpack.c.l.b16 %v2465
      %v2532 = vunpack.c.h.b16 %v2465
      %v2533 = vunpack.c.l.b16 %v2466
      %v2534 = vunpack.c.h.b16 %v2466
      %v2535 = vunpack.c.l.b16 %v2467
      %v2536 = vunpack.c.h.b16 %v2467
      %v2537 = vunpack.c.l.b16 %v2468
      %v2538 = vunpack.c.h.b16 %v2468
      %v2539 = vunpack.c.l.b16 %v2469
      %v2540 = vunpack.c.h.b16 %v2469
      %v2541 = vunpack.c.l.b16 %v2470
      %v2542 = vunpack.c.h.b16 %v2470
      %v2543 = vunpack.c.l.b16 %v2471
      %v2544 = vunpack.c.h.b16 %v2471
      %v2545 = vunpack.c.l.b16 %v2472
      %v2546 = vunpack.c.h.b16 %v2472
      %v2547 = vunpack.c.l.b16 %v2473
      %v2548 = vunpack.c.h.b16 %v2473
      %v2549 = vunpack.c.l.b16 %v2474
      %v2550 = vunpack.c.h.b16 %v2474
      %v2551 = vunpack.c.l.b16 %v2475
      %v2552 = vunpack.c.h.b16 %v2475
      %v2553 = vunpack.c.l.b16 %v2476
      %v2554 = vunpack.c.h.b16 %v2476
      %v2555 = vunpack.c.l.b16 %v2477
      %v2556 = vunpack.c.h.b16 %v2477
      %v2557 = vunpack.c.l.b16 %v2478
      %v2558 = vunpack.c.h.b16 %v2478
      %v2559 = vunpack.c.l.b16 %v2479
      %v2560 = vunpack.c.h.b16 %v2479
      %v2561 = vunpack.c.l.b16 %v2480
      %v2562 = vunpack.c.h.b16 %v2480
      %v2563 = vunpack.c.l.b16 %v2481
      %v2564 = vunpack.c.h.b16 %v2481
      %v2565 = vunpack.c.l.b16 %v2482
      %v2566 = vunpack.c.h.b16 %v2482
      %v2567 = vunpack.c.l.b16 %v2483
      %v2568 = vunpack.c.h.b16 %v2483
      %v2569 = vunpack.c.l.b16 %v2484
      %v2570 = vunpack.c.h.b16 %v2484
      %v2571 = vunpack.c.l.b16 %v2485
      %v2572 = vunpack.c.h.b16 %v2485
      %v2573 = vunpack.c.l.b16 %v2486
      %v2574 = vunpack.c.h.b16 %v2486
      %v2575 = vunpack.c.l.b16 %v2487
      %v2576 = vunpack.c.h.b16 %v2487
      %v2577 = vunpack.c.l.b16 %v2488
      %v2578 = vunpack.c.h.b16 %v2488
      %v2579 = vunpack.c.l.b16 %v2489
      %v2580 = vunpack.c.h.b16 %v2489
      %v2581 = vunpack.c.l.b16 %v2490
      %v2582 = vunpack.c.h.b16 %v2490
      %v2583 = vunpack.c.l.b16 %v2491
      %v2584 = vunpack.c.h.b16 %v2491
      %v2585 = vunpack.c.l.b16 %v2492
      %v2586 = vunpack.c.h.b16 %v2492
      %v2587 = vunpack.c.l.b16 %v2493
      %v2588 = vunpack.c.h.b16 %v2493
      %v2589 = vunpack.c.l.b16 %v2494
      %v2590 = vunpack.c.h.b16 %v2494
      %v2591 = vpack.c.b16 %v2529, %v2527
      %v2592 = vpack.c.b16 %v2530, %v2528
      %v2593 = vpack.c.b16 %v2533, %v2531
      %v2594 = vpack.c.b16 %v2534, %v2532
      %v2595 = vpack.c.b16 %v2537, %v2535
      %v2596 = vpack.c.b16 %v2538, %v2536
      %v2597 = vpack.c.b16 %v2541, %v2539
      %v2598 = vpack.c.b16 %v2542, %v2540
      %v2599 = vpack.c.b16 %v2545, %v2543
      %v2600 = vpack.c.b16 %v2546, %v2544
      %v2601 = vpack.c.b16 %v2549, %v2547
      %v2602 = vpack.c.b16 %v2550, %v2548
      %v2603 = vpack.c.b16 %v2553, %v2551
      %v2604 = vpack.c.b16 %v2554, %v2552
      %v2605 = vpack.c.b16 %v2557, %v2555
      %v2606 = vpack.c.b16 %v2558, %v2556
      %v2607 = vpack.c.b16 %v2561, %v2559
      %v2608 = vpack.c.b16 %v2562, %v2560
      %v2609 = vpack.c.b16 %v2565, %v2563
      %v2610 = vpack.c.b16 %v2566, %v2564
      %v2611 = vpack.c.b16 %v2569, %v2567
      %v2612 = vpack.c.b16 %v2570, %v2568
      %v2613 = vpack.c.b16 %v2573, %v2571
      %v2614 = vpack.c.b16 %v2574, %v2572
      %v2615 = vpack.c.b16 %v2577, %v2575
      %v2616 = vpack.c.b16 %v2578, %v2576
      %v2617 = vpack.c.b16 %v2581, %v2579
      %v2618 = vpack.c.b16 %v2582, %v2580
      %v2619 = vpack.c.b16 %v2585, %v2583
      %v2620 = vpack.c.b16 %v2586, %v2584
      %v2621 = vpack.c.b16 %v2589, %v2587
      %v2622 = vpack.c.b16 %v2590, %v2588
      %2655 = vmatprep.subr.bf16.mxu0 %v2606
      %2656 = vmatpush1.bf16.msra.mxu0 %v2605
      %2657 = vmatprep.subr.bf16.mxu0 %v2604
      %2658 = vmatpush1.bf16.msra.mxu0 %v2603
      %2659 = vmatprep.subr.bf16.mxu0 %v2602
      %2660 = vmatpush1.bf16.msra.mxu0 %v2601
      %2661 = vmatprep.subr.bf16.mxu0 %v2600
      %2662 = vmatpush1.bf16.msra.mxu0 %v2599
      %2663 = vmatprep.subr.bf16.mxu0 %v2598
      %2664 = vmatpush1.bf16.msra.mxu0 %v2597
      %2665 = vmatprep.subr.bf16.mxu0 %v2596
      %2666 = vmatpush1.bf16.msra.mxu0 %v2595
      %2667 = vmatprep.subr.bf16.mxu0 %v2594
      %2668 = vmatpush1.bf16.msra.mxu0 %v2593
      %2669 = vmatprep.subr.bf16.mxu0 %v2592
      %2670 = vmatpush1.bf16.msra.mxu0 %v2591
      %2671 = vmatprep.subr.bf16.mxu0 %v2622
      %2672 = vmatpush2.bf16.msra.mxu0 %v2621
      %2673 = vmatprep.subr.bf16.mxu0 %v2620
      %2674 = vmatpush2.bf16.msra.mxu0 %v2619
      %2675 = vmatprep.subr.bf16.mxu0 %v2618
      %2676 = vmatpush2.bf16.msra.mxu0 %v2617
      %2677 = vmatprep.subr.bf16.mxu0 %v2616
      %2678 = vmatpush2.bf16.msra.mxu0 %v2615
      %2679 = vmatprep.subr.bf16.mxu0 %v2614
      %2680 = vmatpush2.bf16.msra.mxu0 %v2613
      %2681 = vmatprep.subr.bf16.mxu0 %v2612
      %2682 = vmatpush2.bf16.msra.mxu0 %v2611
      %2683 = vmatprep.subr.bf16.mxu0 %v2610
      %2684 = vmatpush2.bf16.msra.mxu0 %v2609
      %2685 = vmatprep.subr.bf16.mxu0 %v2608
      %2686 = vmatpush2.bf16.msra.mxu0 %v2607
      %2687 = vmatprep.mubr.bf16.mxu0 %v2462
      %2688 = vmatmul.mubr.bf16.gmra.mxu0 %v2461
      %v2689 = vpop.f32.mrf.mxu0
      %v2690 = vadd.f32 0.0, %v2689
      %v2691 = vpop.f32.mrf.mxu0
      %v2692 = vadd.f32 0.0, %v2691
      %v2693 = vpop.f32.mrf.mxu0
      %v2694 = vpop.f32.mrf.mxu0
      %2695 = vdwg.mxu0
      %s2696 = smul.f32 %s125, 0.6
      %s2697 = sadd.f32 %s2696, 1.0
      %v2698 = vstv %s2697
      %v2699 = vmul.f32 %v2690, %v2698
      %v2700 = vmul.f32 %v2692, %v2698
      %v2701 = vld [vmem:[%s15] sm:$0x3]
      %v2703 = vlaneseq
      %v2704 = vshrl.u32 %v2703, 7
      %v2705 = vsub.s32 0, %v2704
      %v2706 = vrot.slane %v2701, %v2705
      %v2707 = vlaneseq
      %v2708 = vshrl.u32 %v2707, 7
      %v2709 = vsub.s32 1, %v2708
      %v2710 = vrot.slane %v2701, %v2709
      %v2713 = vadd.f32 %v2699, %v2706
      %v2714 = vadd.f32 %v2700, %v2710
      %v2715 = vld [vmem:[#allocation6] sm:$0xf]
      %vm2716 = vcmp.gt.f32.partialorder %v2715, 1.0
      %v2717 = vsel %vm2716, 1, 0
      %v2718 = vcvt.s32.f32 %v2717
      %v2719 = vmul.f32 %v2715, 0.75
      %v2722 = vcombine.low %v2713, %v2714
      %v2724 = vunpack.c.l.s4 1983009808
      %v2725 = vunpack.c.0.s8 %v2724
      %v2726 = vlaneseq
      %v2727 = vshrl.u32 %v2726, 7
      %v2728 = vsub.s32 %v2725, %v2727
      %v2729 = vrot.slane %v2722, %v2728
      %v2731 = vadd.f32 %v2719, %v2729
      %v2732 = vsub.f32 %v2731, %v2718
      %vm2733 = vcmp.gt.f32.partialorder %v2732, 1.0
      %2734 = vst.msk [vmem:[#allocation6] sm:$0xf] %vm112, %v2732
      %v2735 = vsel %vm2733, 1, 0
      %v2736 = vcvt.s32.f32 %v2735
      %v2739 = vunpack.c.l.s4 1983009808
      %v2740 = vunpack.c.0.s8 %v2739
      %v2741 = vlaneseq
      %v2742 = vshrl.u32 %v2741, 7
      %v2743 = vsub.s32 %v2740, %v2742
      %v2744 = vrot.slane %v2736, %v2743
      %v2745 = vcombine.high %v2744, %v2744
      %v2748 = vpack.c.bf16 %v2744, %v2744
      %v2749 = vpack.c.bf16 %v2745, %v2745
      %v2750 = vld [vmem:[%s16] sm:$0xf]
      %v2751 = vld [vmem:[%s16 + $0x4] sm:$0xf]
      %v2752 = vld [vmem:[%s16 + $0x8] sm:$0xf]
      %v2753 = vld [vmem:[%s16 + $0xc] sm:$0xf]
      %v2754 = vld [vmem:[%s16 + $0x10] sm:$0xf]
      %v2755 = vld [vmem:[%s16 + $0x14] sm:$0xf]
      %v2756 = vld [vmem:[%s16 + $0x18] sm:$0xf]
      %v2757 = vld [vmem:[%s16 + $0x1c] sm:$0xf]
      %v2758 = vld [vmem:[%s16 + $0x20] sm:$0xf]
      %v2759 = vld [vmem:[%s16 + $0x24] sm:$0xf]
      %v2760 = vld [vmem:[%s16 + $0x28] sm:$0xf]
      %v2761 = vld [vmem:[%s16 + $0x2c] sm:$0xf]
      %v2762 = vld [vmem:[%s16 + $0x30] sm:$0xf]
      %v2763 = vld [vmem:[%s16 + $0x34] sm:$0xf]
      %v2764 = vld [vmem:[%s16 + $0x38] sm:$0xf]
      %v2765 = vld [vmem:[%s16 + $0x3c] sm:$0xf]
      %v2766 = vld [vmem:[%s16 + $0x40] sm:$0xf]
      %v2767 = vld [vmem:[%s16 + $0x44] sm:$0xf]
      %v2768 = vld [vmem:[%s16 + $0x48] sm:$0xf]
      %v2769 = vld [vmem:[%s16 + $0x4c] sm:$0xf]
      %v2770 = vld [vmem:[%s16 + $0x50] sm:$0xf]
      %v2771 = vld [vmem:[%s16 + $0x54] sm:$0xf]
      %v2772 = vld [vmem:[%s16 + $0x58] sm:$0xf]
      %v2773 = vld [vmem:[%s16 + $0x5c] sm:$0xf]
      %v2774 = vld [vmem:[%s17] sm:$0x1]
      %v2776 = vlaneseq
      %v2777 = vshrl.u32 %v2776, 7
      %v2778 = vsub.s32 0, %v2777
      %v2779 = vrot.slane %v2774, %v2778
      %v2805 = vunpack.c.l.b16 %v2750
      %v2806 = vunpack.c.l.b16 %v2751
      %v2807 = vunpack.c.l.b16 %v2752
      %v2808 = vunpack.c.l.b16 %v2753
      %v2809 = vunpack.c.l.b16 %v2754
      %v2810 = vunpack.c.l.b16 %v2755
      %v2811 = vunpack.c.l.b16 %v2756
      %v2812 = vunpack.c.l.b16 %v2757
      %v2813 = vunpack.c.l.b16 %v2758
      %v2814 = vunpack.c.l.b16 %v2759
      %v2815 = vunpack.c.l.b16 %v2760
      %v2816 = vunpack.c.l.b16 %v2761
      %v2817 = vunpack.c.l.b16 %v2762
      %v2818 = vunpack.c.l.b16 %v2763
      %v2819 = vunpack.c.l.b16 %v2764
      %v2820 = vunpack.c.l.b16 %v2765
      %v2821 = vunpack.c.l.b16 %v2766
      %v2822 = vunpack.c.l.b16 %v2767
      %v2823 = vunpack.c.l.b16 %v2768
      %v2824 = vunpack.c.l.b16 %v2769
      %v2825 = vunpack.c.l.b16 %v2770
      %v2826 = vunpack.c.l.b16 %v2771
      %v2827 = vunpack.c.l.b16 %v2772
      %v2828 = vunpack.c.l.b16 %v2773
      %v2829 = vpack.c.b16 %v2806, %v2805
      %v2830 = vpack.c.b16 %v2808, %v2807
      %v2831 = vpack.c.b16 %v2810, %v2809
      %v2832 = vpack.c.b16 %v2812, %v2811
      %v2833 = vpack.c.b16 %v2814, %v2813
      %v2834 = vpack.c.b16 %v2816, %v2815
      %v2835 = vpack.c.b16 %v2818, %v2817
      %v2836 = vpack.c.b16 %v2820, %v2819
      %v2837 = vpack.c.b16 %v2822, %v2821
      %v2838 = vpack.c.b16 %v2824, %v2823
      %v2839 = vpack.c.b16 %v2826, %v2825
      %v2840 = vpack.c.b16 %v2828, %v2827
      %v2854 = vsel %vm1958, %v2749, 0
      %2856 = vmatprep.subr.bf16.mxu0 0
      %2857 = vmatpush1.bf16.msra.mxu0 %v2836
      %2858 = vmatprep.subr.bf16.mxu0 0
      %2859 = vmatpush1.bf16.msra.mxu0 %v2835
      %2860 = vmatprep.subr.bf16.mxu0 0
      %2861 = vmatpush1.bf16.msra.mxu0 %v2834
      %2862 = vmatprep.subr.bf16.mxu0 0
      %2863 = vmatpush1.bf16.msra.mxu0 %v2833
      %2864 = vmatprep.subr.bf16.mxu0 0
      %2865 = vmatpush1.bf16.msra.mxu0 %v2832
      %2866 = vmatprep.subr.bf16.mxu0 0
      %2867 = vmatpush1.bf16.msra.mxu0 %v2831
      %2868 = vmatprep.subr.bf16.mxu0 0
      %2869 = vmatpush1.bf16.msra.mxu0 %v2830
      %2870 = vmatprep.subr.bf16.mxu0 0
      %2871 = vmatpush1.bf16.msra.mxu0 %v2829
      %2872 = vmatprep.subr.bf16.mxu0 0
      %2873 = vmatpush2.bf16.msra.mxu0 0
      %2874 = vmatprep.subr.bf16.mxu0 0
      %2875 = vmatpush2.bf16.msra.mxu0 0
      %2876 = vmatprep.subr.bf16.mxu0 0
      %2877 = vmatpush2.bf16.msra.mxu0 0
      %2878 = vmatprep.subr.bf16.mxu0 0
      %2879 = vmatpush2.bf16.msra.mxu0 0
      %2880 = vmatprep.subr.bf16.mxu0 0
      %2881 = vmatpush2.bf16.msra.mxu0 %v2840
      %2882 = vmatprep.subr.bf16.mxu0 0
      %2883 = vmatpush2.bf16.msra.mxu0 %v2839
      %2884 = vmatprep.subr.bf16.mxu0 0
      %2885 = vmatpush2.bf16.msra.mxu0 %v2838
      %2886 = vmatprep.subr.bf16.mxu0 0
      %2887 = vmatpush2.bf16.msra.mxu0 %v2837
      %2888 = vmatprep.mubr.bf16.mxu0 %v2854
      %2889 = vmatmul.mubr.bf16.gmra.mxu0 %v2748
      %v2890 = vpop.f32.mrf.mxu0
      %v2891 = vadd.f32 %v2779, %v2890
      %v2892 = vpop.f32.mrf.mxu0
      %v2893 = vpop.f32.mrf.mxu0
      %v2894 = vpop.f32.mrf.mxu0
      %2895 = vdwg.mxu0
      %v2896 = vld [vmem:[#allocation7] sm:$0x3]
      %vm2897 = vcmp.gt.f32.partialorder %v2896, 1.0
      %v2898 = vsel %vm2897, 1, 0
      %v2899 = vcvt.s32.f32 %v2898
      %v2900 = vmul.f32 %v2896, 0.9
      %v2901 = vadd.f32 %v2900, %v2891
      %v2902 = vsub.f32 %v2901, %v2899
      %vm2903 = vcmp.gt.f32.partialorder %v2902, 1.0
      %v2904 = vsel %vm2903, 1, 0
      %v2905 = vcvt.s32.f32 %v2904
      %2906 = vst.msk [vmem:[#allocation7] sm:$0x3] %vm114, %v2902
    $region78: #{forward.1} parent=1 // loop_footer
      %s121 = sadd.s32 1, %s117
    $region79: #{forward.1} parent=1 // loop_footer_branch
      %116 = sbr.rel target = $region75
    $region80: #{forward.1} parent=1 // loop_exit
      _
    %2907 = vst.msk [vmem:[#allocation8] sm:$0x3] %vm114, %v122
    // Predicated region
    $region81: #{forward.1} parent=1 // pred_check
      _
    $region82: #{forward.1} parent=1 // pred_check_branch
      %2909 = sbr.rel (0) target = $region84
    $region83: #{forward.1} parent=1 // pred_region
      %s2911 = ssub.s32 32, 32
      %2912 = vsyncadd [#allocation9], %s2911
      %s2914 = sshll.u32 [#allocation8], 4
      %s2915 = int_to_ptr.vmem [resolvable:$true] %s2914
      %2917 = dma.vmem_to_hbm [thread:$0]  %s2915, 32, %s18, [#allocation9]
    $region84: #{forward.1} parent=1 // pred_fallthru
      _
    // Predicated region
    $region85: #{forward.1} parent=1 // pred_check
      _
    $region86: #{forward.1} parent=1 // pred_check_branch
      %2919 = sbr.rel (0) target = $region88
    $region87: #{forward.1} parent=1 // pred_region
      %2920 = dma.done [#allocation9], 32
    $region88: #{forward.1} parent=1 // pred_fallthru
      _
    %2921 = vsyncpa [#allocation9], 1

</llo_original>
